<compile_context>
chip_gen: v6e
topology: v6e:2x2x1
jax: 0.10.0
libtpu: 0.0.40
codegen_flags: <defaults>
</compile_context>

<pallas_src>
import functools
import math

import jax
import jax.numpy as jnp
from jax import lax
from jax.experimental import pallas as pl
from jax.experimental.pallas import tpu as pltpu

EPS = 1e-5


def _gln_per_sample(h, gamma, beta, bblk, t_len):
    """Global layer norm over (C, T) independently for each of the bblk samples.

    h is (C, bblk*t_len) with sample b occupying the lane range [b*t_len, (b+1)*t_len).
    Single reduction pass per sample: var = max(E[h^2] - mean^2, 0); EUP rsqrt.
    Static, 128-aligned lane slices / concatenate -> no relayout.
    """
    segs = []
    for b in range(bblk):
        seg = h[:, b * t_len:(b + 1) * t_len]
        mean = jnp.mean(seg)
        mean_sq = jnp.mean(seg * seg)
        var = jnp.maximum(mean_sq - mean * mean, 0.0)   # clamp: no NaN from cancellation
        inv_std = lax.rsqrt(var + EPS)                  # EUP rsqrt (no VPU divide)
        scale = gamma * inv_std                         # (C, 1)
        shift = beta - gamma * (mean * inv_std)         # (C, 1)
        segs.append(seg * scale + shift)
    return segs[0] if bblk == 1 else jnp.concatenate(segs, axis=1)


def conv1d_block_kernel(
    x_ref,                     # (Cin, Nblk) f32 VMEM, Nblk = bblk * t_len
    w1_ref, b1_ref, a1_ref,    # (Cout, Cin) bf16, (Cout, 1) f32, SMEM (1,) f32
    g1_ref, be1_ref,           # GLN1: (Cout, 1), (Cout, 1)
    wd_ref, bd_ref, a2_ref,    # depthwise: (Cout, 3), (Cout, 1), SMEM (1,)
    g2_ref, be2_ref,           # GLN2: (Cout, 1), (Cout, 1)
    w3_ref, b3_ref,            # end 1x1 conv: (Cin, Cout) bf16, (Cin, 1)
    o_ref,                     # (Cin, Nblk) f32 VMEM
    *, bblk, t_len,
):
    x = x_ref[...]                                         # (Cin, Nblk) f32

    # ---- 1x1 conv: (Cout,Cin)@(Cin,Nblk); bf16 operands, f32 accumulate (MXU) ----
    h = jnp.dot(w1_ref[...], x.astype(jnp.bfloat16),
                preferred_element_type=jnp.float32) + b1_ref[...]

    # ---- PReLU 1 (single shared parameter, scalar from SMEM) ----
    a1 = a1_ref[0]
    h = jnp.where(h > 0, h, a1 * h)

    # ---- GlobalLayerNorm 1 (per sample) ----
    h = _gln_per_sample(h, g1_ref[...], be1_ref[...], bblk, t_len)

    # ---- depthwise conv, k=3, dilation=1, pad=1 (same length, per sample) ----
    n = h.shape[1]
    lane = lax.broadcasted_iota(jnp.int32, (1, n), 1)
    if (t_len & (t_len - 1)) == 0:                         # power-of-two: avoid int div
        tmod = jnp.bitwise_and(lane, t_len - 1)
    else:
        tmod = lane % t_len
    lmask = (tmod != 0).astype(h.dtype)                    # zero h[t-1] at sample t=0
    rmask = (tmod != t_len - 1).astype(h.dtype)            # zero h[t+1] at sample t=T-1
    left = pltpu.roll(h, shift=1, axis=1)                  # XLU rotate: left[t] = h[t-1]
    right = pltpu.roll(h, shift=n - 1, axis=1)             # right[t] = h[t+1]
    wd = wd_ref[...]
    h = (wd[:, 0:1] * (left * lmask)
         + wd[:, 1:2] * h
         + wd[:, 2:3] * (right * rmask)) + bd_ref[...]

    # ---- PReLU 2 ----
    a2 = a2_ref[0]
    h = jnp.where(h > 0, h, a2 * h)

    # ---- GlobalLayerNorm 2 ----
    h = _gln_per_sample(h, g2_ref[...], be2_ref[...], bblk, t_len)

    # ---- end 1x1 conv (bf16/MXU, f32 accumulate) + residual ----
    y = jnp.dot(w3_ref[...], h.astype(jnp.bfloat16),
                preferred_element_type=jnp.float32) + b3_ref[...]
    o_ref[...] = (x + y).astype(o_ref.dtype)


def _vmem_limit_bytes(cin, cout, bblk, t_len):
    """Size the scoped VMEM limit from the actual buffers (with margin), <= 64 MiB."""
    f32, bf16 = 4, 2
    n = bblk * t_len
    io = 2 * 2 * (cin * n * f32)                    # x + out blocks, double-buffered
    wts = 2 * cout * cin * bf16 + (3 + 6) * cout * f32 + 2 * cin * f32  # single-buffered
    live = 8 * cout * n * f32                       # generous bound on live intermediates
    est = io + wts + live
    return int(min(max(2 * est, 32 << 20), 64 << 20))


def conv1d_block(x, params, *, batch_block=4):
    """x: [B, Cin, T] float32. params: dict of weights (see init_params)."""
    B, Cin, T = x.shape
    Cout = params["w1"].shape[0]

    bblk = math.gcd(B, batch_block)
    if T % 128 != 0:
        bblk = 1            # keep per-sample lane segments 128-aligned
    nblk = bblk * T

    # Samples laid out contiguously along the lane axis: (B, Cin, T) -> (Cin, B*T).
    x2d = jnp.transpose(x, (1, 0, 2)).reshape(Cin, B * T)

    # Pre-cast matmul weights to bf16 once in the wrapper (f32 accumulate in-kernel).
    weights = dict(params)
    weights["w1"] = params["w1"].astype(jnp.bfloat16)
    weights["w3"] = params["w3"].astype(jnp.bfloat16)

    order = ["w1", "b1", "a1", "g1", "be1",
             "wd", "bd", "a2", "g2", "be2",
             "w3", "b3"]
    smem_keys = {"a1", "a2"}     # PReLU scalars -> SMEM (cheap scalar read)

    def resident_spec(arr):
        nd = arr.ndim
        # Same block index every grid step -> single-buffered resident weight block.
        return pl.BlockSpec(arr.shape, lambda g: (0,) * nd,
                            pipeline_mode=pl.Buffered(1))

    smem_spec = pl.BlockSpec(memory_space=pltpu.MemorySpace.SMEM)

    act_in_spec = pl.BlockSpec((Cin, nblk), lambda g: (0, g))
    in_specs = [act_in_spec]
    args = [x2d]
    for k in order:
        arr = weights[k]
        args.append(arr)
        in_specs.append(smem_spec if k in smem_keys else resident_spec(arr))

    kernel = functools.partial(conv1d_block_kernel, bblk=bblk, t_len=T)

    out2d = pl.pallas_call(
        kernel,
        out_shape=jax.ShapeDtypeStruct((Cin, B * T), x.dtype),
        grid=(B // bblk,),
        in_specs=in_specs,
        out_specs=pl.BlockSpec((Cin, nblk), lambda g: (0, g)),
        compiler_params=pltpu.CompilerParams(
            dimension_semantics=("parallel",),          # both v7x TCs get batch blocks
            vmem_limit_bytes=_vmem_limit_bytes(Cin, Cout, bblk, T),
        ),
    )(*args)

    return out2d.reshape(Cin, B, T).transpose(1, 0, 2)


def init_params(key, in_channels, out_channels, kernel_size=3):
    """Deterministic synthetic parameters matching the PyTorch module shapes."""
    ks = jax.random.split(key, 6)
    scale = 0.1
    return {
        # conv1x1: weight (Cout, Cin, 1) -> (Cout, Cin); bias (Cout,) -> (Cout, 1)
        "w1": scale * jax.random.normal(ks[0], (out_channels, in_channels), jnp.float32),
        "b1": scale * jax.random.normal(ks[1], (out_channels, 1), jnp.float32),
        # PReLU1 (single param, PyTorch default init 0.25)
        "a1": jnp.full((1,), 0.25, jnp.float32),
        # GLN1: weight/bias (Cout, 1), init ones/zeros
        "g1": jnp.ones((out_channels, 1), jnp.float32),
        "be1": jnp.zeros((out_channels, 1), jnp.float32),
        # depthwise conv: weight (Cout, 1, k) -> (Cout, k); bias (Cout,) -> (Cout, 1)
        "wd": scale * jax.random.normal(ks[2], (out_channels, kernel_size), jnp.float32),
        "bd": scale * jax.random.normal(ks[3], (out_channels, 1), jnp.float32),
        # PReLU2
        "a2": jnp.full((1,), 0.25, jnp.float32),
        # GLN2
        "g2": jnp.ones((out_channels, 1), jnp.float32),
        "be2": jnp.zeros((out_channels, 1), jnp.float32),
        # end_conv1x1: weight (Cin, Cout, 1) -> (Cin, Cout); bias (Cin,) -> (Cin, 1)
        "w3": scale * jax.random.normal(ks[4], (in_channels, out_channels), jnp.float32),
        "b3": scale * jax.random.normal(ks[5], (in_channels, 1), jnp.float32),
    }


def reference_forward(x, p):
    """Pure-JAX f32 reference mirroring the PyTorch module (for validation)."""
    def gln(h, g, be):
        mean = jnp.mean(h, axis=(1, 2), keepdims=True)
        var = jnp.mean((h - mean) ** 2, axis=(1, 2), keepdims=True)
        return g[None] * (h - mean) / jnp.sqrt(var + EPS) + be[None]

    def prelu(h, a):
        return jnp.where(h > 0, h, a[0] * h)

    h = jnp.einsum("oc,bct->bot", p["w1"], x) + p["b1"][None]
    h = prelu(h, p["a1"])
    h = gln(h, p["g1"], p["be1"])
    hp = jnp.pad(h, ((0, 0), (0, 0), (1, 1)))
    h = (p["wd"][None, :, 0:1] * hp[:, :, :-2]
         + p["wd"][None, :, 1:2] * hp[:, :, 1:-1]
         + p["wd"][None, :, 2:3] * hp[:, :, 2:]) + p["bd"][None]
    h = prelu(h, p["a2"])
    h = gln(h, p["g2"], p["be2"])
    y = jnp.einsum("co,bot->bct", p["w3"], h) + p["b3"][None]
    return x + y


if __name__ == "__main__":
    B, Cin, Cout, T = 8, 32, 64, 128   # small demo shapes; Bblk=4 -> matmul N = 512

    key = jax.random.PRNGKey(0)
    kx, kp = jax.random.split(key)
    x = jax.random.normal(kx, (B, Cin, T), jnp.float32)
    params = init_params(kp, Cin, Cout, kernel_size=3)

    out = jax.block_until_ready(conv1d_block(x, params, batch_block=4))

    ref = reference_forward(x, params)
    assert out.shape == (B, Cin, T)
    # Tolerance loosened vs pure-f32 because the MXU matmuls use bf16 operands
    # (f32 accumulation); structural errors would be O(1).
    assert jnp.allclose(out, ref, atol=5e-2, rtol=5e-2), "mismatch vs reference"

    print("KERNEL_OK")
</pallas_src>

<mosaic_0001>
module attributes {stable_mosaic.version = 11 : i64} {
  func.func @conv1d_block_kernel(%arg0: i32, %arg1: memref<32x512xf32, #tpu.memory_space<vmem>>, %arg2: memref<64x32xbf16, #tpu.memory_space<vmem>>, %arg3: memref<64x1xf32, #tpu.memory_space<vmem>>, %arg4: memref<1xf32, #tpu.memory_space<smem>>, %arg5: memref<64x1xf32, #tpu.memory_space<vmem>>, %arg6: memref<64x1xf32, #tpu.memory_space<vmem>>, %arg7: memref<64x3xf32, #tpu.memory_space<vmem>>, %arg8: memref<64x1xf32, #tpu.memory_space<vmem>>, %arg9: memref<1xf32, #tpu.memory_space<smem>>, %arg10: memref<64x1xf32, #tpu.memory_space<vmem>>, %arg11: memref<64x1xf32, #tpu.memory_space<vmem>>, %arg12: memref<32x64xbf16, #tpu.memory_space<vmem>>, %arg13: memref<32x1xf32, #tpu.memory_space<vmem>>, %arg14: memref<32x512xf32, #tpu.memory_space<vmem>>) attributes {dimension_semantics = [#tpu.dimension_semantics<parallel>], iteration_bounds = array<i64: 2>, scalar_prefetch = 0 : i64, scratch_operands = 0 : i64, tpu.core_type = #tpu.core_type<tc>, window_params = [{transform_indices = @transform_0, window_bounds = array<i64: 32, 512>}, {pipeline_mode = #tpu.pipeline_mode<synchronous>, transform_indices = @transform_1, window_bounds = array<i64: 64, 32>}, {pipeline_mode = #tpu.pipeline_mode<synchronous>, transform_indices = @transform_2, window_bounds = array<i64: 64, 1>}, {transform_indices = @transform_3, window_bounds = array<i64: 1>}, {pipeline_mode = #tpu.pipeline_mode<synchronous>, transform_indices = @transform_4, window_bounds = array<i64: 64, 1>}, {pipeline_mode = #tpu.pipeline_mode<synchronous>, transform_indices = @transform_5, window_bounds = array<i64: 64, 1>}, {pipeline_mode = #tpu.pipeline_mode<synchronous>, transform_indices = @transform_6, window_bounds = array<i64: 64, 3>}, {pipeline_mode = #tpu.pipeline_mode<synchronous>, transform_indices = @transform_7, window_bounds = array<i64: 64, 1>}, {transform_indices = @transform_8, window_bounds = array<i64: 1>}, {pipeline_mode = #tpu.pipeline_mode<synchronous>, transform_indices = @transform_9, window_bounds = array<i64: 64, 1>}, {pipeline_mode = #tpu.pipeline_mode<synchronous>, transform_indices = @transform_10, window_bounds = array<i64: 64, 1>}, {pipeline_mode = #tpu.pipeline_mode<synchronous>, transform_indices = @transform_11, window_bounds = array<i64: 32, 64>}, {pipeline_mode = #tpu.pipeline_mode<synchronous>, transform_indices = @transform_12, window_bounds = array<i64: 32, 1>}, {transform_indices = @transform_13, window_bounds = array<i64: 32, 512>}]} {
    %c0 = arith.constant 0 : index
    %c0_0 = arith.constant 0 : index
    %0 = vector.load %arg1[%c0, %c0_0] : memref<32x512xf32, #tpu.memory_space<vmem>>, vector<32x512xf32>
    %c0_1 = arith.constant 0 : index
    %c0_2 = arith.constant 0 : index
    %1 = vector.load %arg2[%c0_1, %c0_2] : memref<64x32xbf16, #tpu.memory_space<vmem>>, vector<64x32xbf16>
    %2 = arith.truncf %0 : vector<32x512xf32> to vector<32x512xbf16>
    %cst = arith.constant dense<0.000000e+00> : vector<64x512xf32>
    %3 = tpu.matmul %1, %2, %cst {dimension_numbers = #tpu.dot_dimension_numbers<[1], [0], [0], [1], [0, 0, 1, 1], [], []>} : vector<64x32xbf16>, vector<32x512xbf16>, vector<64x512xf32> -> vector<64x512xf32>
    %c0_3 = arith.constant 0 : index
    %c0_4 = arith.constant 0 : index
    %4 = vector.load %arg3[%c0_3, %c0_4] : memref<64x1xf32, #tpu.memory_space<vmem>>, vector<64x1xf32>
    %5 = vector.broadcast %4 : vector<64x1xf32> to vector<64x512xf32>
    %6 = arith.addf %3, %5 : vector<64x512xf32>
    %c0_5 = arith.constant 0 : index
    %7 = memref.load %arg4[%c0_5] : memref<1xf32, #tpu.memory_space<smem>>
    %cst_6 = arith.constant 0.000000e+00 : f32
    %8 = vector.broadcast %cst_6 : f32 to vector<64x512xf32>
    %9 = arith.cmpf ogt, %6, %8 : vector<64x512xf32>
    %10 = vector.broadcast %7 : f32 to vector<64x512xf32>
    %11 = arith.mulf %10, %6 : vector<64x512xf32>
    %12 = arith.select %9, %6, %11 : vector<64x512xi1>, vector<64x512xf32>
    %c0_7 = arith.constant 0 : index
    %c0_8 = arith.constant 0 : index
    %13 = vector.load %arg5[%c0_7, %c0_8] : memref<64x1xf32, #tpu.memory_space<vmem>>, vector<64x1xf32>
    %c0_9 = arith.constant 0 : index
    %c0_10 = arith.constant 0 : index
    %14 = vector.load %arg6[%c0_9, %c0_10] : memref<64x1xf32, #tpu.memory_space<vmem>>, vector<64x1xf32>
    %15 = vector.extract_strided_slice %12 {offsets = [0, 0], sizes = [64, 128], strides = [1, 1]} : vector<64x512xf32> to vector<64x128xf32>
    %16 = vector.shape_cast %15 : vector<64x128xf32> to vector<1x64x128xf32>
    %cst_11 = arith.constant dense<0.000000e+00> : vector<1xf32>
    %17 = vector.multi_reduction <add>, %16, %cst_11 [1, 2] : vector<1x64x128xf32> to vector<1xf32>
    %18 = vector.shape_cast %17 : vector<1xf32> to vector<1x1x1xf32>
    %19 = vector.extract %18[0, 0, 0] : f32 from vector<1x1x1xf32>
    %cst_12 = arith.constant 8.192000e+03 : f32
    %20 = arith.divf %19, %cst_12 : f32
    %21 = arith.mulf %15, %15 : vector<64x128xf32>
    %22 = vector.shape_cast %21 : vector<64x128xf32> to vector<1x64x128xf32>
    %cst_13 = arith.constant dense<0.000000e+00> : vector<1xf32>
    %23 = vector.multi_reduction <add>, %22, %cst_13 [1, 2] : vector<1x64x128xf32> to vector<1xf32>
    %24 = vector.shape_cast %23 : vector<1xf32> to vector<1x1x1xf32>
    %25 = vector.extract %24[0, 0, 0] : f32 from vector<1x1x1xf32>
    %cst_14 = arith.constant 8.192000e+03 : f32
    %26 = arith.divf %25, %cst_14 : f32
    %27 = arith.mulf %20, %20 : f32
    %28 = arith.subf %26, %27 : f32
    %cst_15 = arith.constant 0.000000e+00 : f32
    %29 = arith.maximumf %28, %cst_15 : f32
    %cst_16 = arith.constant 9.99999974E-6 : f32
    %30 = arith.addf %29, %cst_16 : f32
    %31 = math.rsqrt %30 : f32
    %32 = vector.broadcast %31 : f32 to vector<64x1xf32>
    %33 = arith.mulf %13, %32 : vector<64x1xf32>
    %34 = arith.mulf %20, %31 : f32
    %35 = vector.broadcast %34 : f32 to vector<64x1xf32>
    %36 = arith.mulf %13, %35 : vector<64x1xf32>
    %37 = arith.subf %14, %36 : vector<64x1xf32>
    %38 = vector.broadcast %33 : vector<64x1xf32> to vector<64x128xf32>
    %39 = arith.mulf %15, %38 : vector<64x128xf32>
    %40 = vector.broadcast %37 : vector<64x1xf32> to vector<64x128xf32>
    %41 = arith.addf %39, %40 : vector<64x128xf32>
    %42 = vector.extract_strided_slice %12 {offsets = [0, 128], sizes = [64, 128], strides = [1, 1]} : vector<64x512xf32> to vector<64x128xf32>
    %43 = vector.shape_cast %42 : vector<64x128xf32> to vector<1x64x128xf32>
    %cst_17 = arith.constant dense<0.000000e+00> : vector<1xf32>
    %44 = vector.multi_reduction <add>, %43, %cst_17 [1, 2] : vector<1x64x128xf32> to vector<1xf32>
    %45 = vector.shape_cast %44 : vector<1xf32> to vector<1x1x1xf32>
    %46 = vector.extract %45[0, 0, 0] : f32 from vector<1x1x1xf32>
    %cst_18 = arith.constant 8.192000e+03 : f32
    %47 = arith.divf %46, %cst_18 : f32
    %48 = arith.mulf %42, %42 : vector<64x128xf32>
    %49 = vector.shape_cast %48 : vector<64x128xf32> to vector<1x64x128xf32>
    %cst_19 = arith.constant dense<0.000000e+00> : vector<1xf32>
    %50 = vector.multi_reduction <add>, %49, %cst_19 [1, 2] : vector<1x64x128xf32> to vector<1xf32>
    %51 = vector.shape_cast %50 : vector<1xf32> to vector<1x1x1xf32>
    %52 = vector.extract %51[0, 0, 0] : f32 from vector<1x1x1xf32>
    %cst_20 = arith.constant 8.192000e+03 : f32
    %53 = arith.divf %52, %cst_20 : f32
    %54 = arith.mulf %47, %47 : f32
    %55 = arith.subf %53, %54 : f32
    %cst_21 = arith.constant 0.000000e+00 : f32
    %56 = arith.maximumf %55, %cst_21 : f32
    %cst_22 = arith.constant 9.99999974E-6 : f32
    %57 = arith.addf %56, %cst_22 : f32
    %58 = math.rsqrt %57 : f32
    %59 = vector.broadcast %58 : f32 to vector<64x1xf32>
    %60 = arith.mulf %13, %59 : vector<64x1xf32>
    %61 = arith.mulf %47, %58 : f32
    %62 = vector.broadcast %61 : f32 to vector<64x1xf32>
    %63 = arith.mulf %13, %62 : vector<64x1xf32>
    %64 = arith.subf %14, %63 : vector<64x1xf32>
    %65 = vector.broadcast %60 : vector<64x1xf32> to vector<64x128xf32>
    %66 = arith.mulf %42, %65 : vector<64x128xf32>
    %67 = vector.broadcast %64 : vector<64x1xf32> to vector<64x128xf32>
    %68 = arith.addf %66, %67 : vector<64x128xf32>
    %69 = vector.extract_strided_slice %12 {offsets = [0, 256], sizes = [64, 128], strides = [1, 1]} : vector<64x512xf32> to vector<64x128xf32>
    %70 = vector.shape_cast %69 : vector<64x128xf32> to vector<1x64x128xf32>
    %cst_23 = arith.constant dense<0.000000e+00> : vector<1xf32>
    %71 = vector.multi_reduction <add>, %70, %cst_23 [1, 2] : vector<1x64x128xf32> to vector<1xf32>
    %72 = vector.shape_cast %71 : vector<1xf32> to vector<1x1x1xf32>
    %73 = vector.extract %72[0, 0, 0] : f32 from vector<1x1x1xf32>
    %cst_24 = arith.constant 8.192000e+03 : f32
    %74 = arith.divf %73, %cst_24 : f32
    %75 = arith.mulf %69, %69 : vector<64x128xf32>
    %76 = vector.shape_cast %75 : vector<64x128xf32> to vector<1x64x128xf32>
    %cst_25 = arith.constant dense<0.000000e+00> : vector<1xf32>
    %77 = vector.multi_reduction <add>, %76, %cst_25 [1, 2] : vector<1x64x128xf32> to vector<1xf32>
    %78 = vector.shape_cast %77 : vector<1xf32> to vector<1x1x1xf32>
    %79 = vector.extract %78[0, 0, 0] : f32 from vector<1x1x1xf32>
    %cst_26 = arith.constant 8.192000e+03 : f32
    %80 = arith.divf %79, %cst_26 : f32
    %81 = arith.mulf %74, %74 : f32
    %82 = arith.subf %80, %81 : f32
    %cst_27 = arith.constant 0.000000e+00 : f32
    %83 = arith.maximumf %82, %cst_27 : f32
    %cst_28 = arith.constant 9.99999974E-6 : f32
    %84 = arith.addf %83, %cst_28 : f32
    %85 = math.rsqrt %84 : f32
    %86 = vector.broadcast %85 : f32 to vector<64x1xf32>
    %87 = arith.mulf %13, %86 : vector<64x1xf32>
    %88 = arith.mulf %74, %85 : f32
    %89 = vector.broadcast %88 : f32 to vector<64x1xf32>
    %90 = arith.mulf %13, %89 : vector<64x1xf32>
    %91 = arith.subf %14, %90 : vector<64x1xf32>
    %92 = vector.broadcast %87 : vector<64x1xf32> to vector<64x128xf32>
    %93 = arith.mulf %69, %92 : vector<64x128xf32>
    %94 = vector.broadcast %91 : vector<64x1xf32> to vector<64x128xf32>
    %95 = arith.addf %93, %94 : vector<64x128xf32>
    %96 = vector.extract_strided_slice %12 {offsets = [0, 384], sizes = [64, 128], strides = [1, 1]} : vector<64x512xf32> to vector<64x128xf32>
    %97 = vector.shape_cast %96 : vector<64x128xf32> to vector<1x64x128xf32>
    %cst_29 = arith.constant dense<0.000000e+00> : vector<1xf32>
    %98 = vector.multi_reduction <add>, %97, %cst_29 [1, 2] : vector<1x64x128xf32> to vector<1xf32>
    %99 = vector.shape_cast %98 : vector<1xf32> to vector<1x1x1xf32>
    %100 = vector.extract %99[0, 0, 0] : f32 from vector<1x1x1xf32>
    %cst_30 = arith.constant 8.192000e+03 : f32
    %101 = arith.divf %100, %cst_30 : f32
    %102 = arith.mulf %96, %96 : vector<64x128xf32>
    %103 = vector.shape_cast %102 : vector<64x128xf32> to vector<1x64x128xf32>
    %cst_31 = arith.constant dense<0.000000e+00> : vector<1xf32>
    %104 = vector.multi_reduction <add>, %103, %cst_31 [1, 2] : vector<1x64x128xf32> to vector<1xf32>
    %105 = vector.shape_cast %104 : vector<1xf32> to vector<1x1x1xf32>
    %106 = vector.extract %105[0, 0, 0] : f32 from vector<1x1x1xf32>
    %cst_32 = arith.constant 8.192000e+03 : f32
    %107 = arith.divf %106, %cst_32 : f32
    %108 = arith.mulf %101, %101 : f32
    %109 = arith.subf %107, %108 : f32
    %cst_33 = arith.constant 0.000000e+00 : f32
    %110 = arith.maximumf %109, %cst_33 : f32
    %cst_34 = arith.constant 9.99999974E-6 : f32
    %111 = arith.addf %110, %cst_34 : f32
    %112 = math.rsqrt %111 : f32
    %113 = vector.broadcast %112 : f32 to vector<64x1xf32>
    %114 = arith.mulf %13, %113 : vector<64x1xf32>
    %115 = arith.mulf %101, %112 : f32
    %116 = vector.broadcast %115 : f32 to vector<64x1xf32>
    %117 = arith.mulf %13, %116 : vector<64x1xf32>
    %118 = arith.subf %14, %117 : vector<64x1xf32>
    %119 = vector.broadcast %114 : vector<64x1xf32> to vector<64x128xf32>
    %120 = arith.mulf %96, %119 : vector<64x128xf32>
    %121 = vector.broadcast %118 : vector<64x1xf32> to vector<64x128xf32>
    %122 = arith.addf %120, %121 : vector<64x128xf32>
    %123 = tpu.concatenate %41, %68, %95, %122 in 1 : vector<64x128xf32>, vector<64x128xf32>, vector<64x128xf32>, vector<64x128xf32> -> vector<64x512xf32>
    %124 = tpu.iota {dimensions = array<i32: 1>} : vector<1x512xi32>
    %c127_i32 = arith.constant 127 : i32
    %125 = vector.broadcast %c127_i32 : i32 to vector<1x512xi32>
    %126 = arith.andi %124, %125 : vector<1x512xi32>
    %c0_i32 = arith.constant 0 : i32
    %127 = vector.broadcast %c0_i32 : i32 to vector<1x512xi32>
    %128 = arith.cmpi ne, %126, %127 : vector<1x512xi32>
    %129 = arith.extui %128 : vector<1x512xi1> to vector<1x512xi32>
    %130 = arith.sitofp %129 : vector<1x512xi32> to vector<1x512xf32>
    %c127_i32_35 = arith.constant 127 : i32
    %131 = vector.broadcast %c127_i32_35 : i32 to vector<1x512xi32>
    %132 = arith.cmpi ne, %126, %131 : vector<1x512xi32>
    %133 = arith.extui %132 : vector<1x512xi1> to vector<1x512xi32>
    %134 = arith.sitofp %133 : vector<1x512xi32> to vector<1x512xf32>
    %c1_i32 = arith.constant 1 : i32
    %135 = tpu.dynamic_rotate %123 by %c1_i32 dim 1 : vector<64x512xf32>, i32 -> vector<64x512xf32>
    %c511_i32 = arith.constant 511 : i32
    %136 = tpu.dynamic_rotate %123 by %c511_i32 dim 1 : vector<64x512xf32>, i32 -> vector<64x512xf32>
    %c0_36 = arith.constant 0 : index
    %c0_37 = arith.constant 0 : index
    %137 = vector.load %arg7[%c0_36, %c0_37] : memref<64x3xf32, #tpu.memory_space<vmem>>, vector<64x3xf32>
    %138 = vector.extract_strided_slice %137 {offsets = [0, 0], sizes = [64, 1], strides = [1, 1]} : vector<64x3xf32> to vector<64x1xf32>
    %139 = vector.broadcast %130 : vector<1x512xf32> to vector<64x512xf32>
    %140 = arith.mulf %135, %139 : vector<64x512xf32>
    %141 = vector.broadcast %138 : vector<64x1xf32> to vector<64x512xf32>
    %142 = arith.mulf %141, %140 : vector<64x512xf32>
    %143 = vector.extract_strided_slice %137 {offsets = [0, 1], sizes = [64, 1], strides = [1, 1]} : vector<64x3xf32> to vector<64x1xf32>
    %144 = vector.broadcast %143 : vector<64x1xf32> to vector<64x512xf32>
    %145 = arith.mulf %144, %123 : vector<64x512xf32>
    %146 = arith.addf %142, %145 : vector<64x512xf32>
    %147 = vector.extract_strided_slice %137 {offsets = [0, 2], sizes = [64, 1], strides = [1, 1]} : vector<64x3xf32> to vector<64x1xf32>
    %148 = vector.broadcast %134 : vector<1x512xf32> to vector<64x512xf32>
    %149 = arith.mulf %136, %148 : vector<64x512xf32>
    %150 = vector.broadcast %147 : vector<64x1xf32> to vector<64x512xf32>
    %151 = arith.mulf %150, %149 : vector<64x512xf32>
    %152 = arith.addf %146, %151 : vector<64x512xf32>
    %c0_38 = arith.constant 0 : index
    %c0_39 = arith.constant 0 : index
    %153 = vector.load %arg8[%c0_38, %c0_39] : memref<64x1xf32, #tpu.memory_space<vmem>>, vector<64x1xf32>
    %154 = vector.broadcast %153 : vector<64x1xf32> to vector<64x512xf32>
    %155 = arith.addf %152, %154 : vector<64x512xf32>
    %c0_40 = arith.constant 0 : index
    %156 = memref.load %arg9[%c0_40] : memref<1xf32, #tpu.memory_space<smem>>
    %cst_41 = arith.constant 0.000000e+00 : f32
    %157 = vector.broadcast %cst_41 : f32 to vector<64x512xf32>
    %158 = arith.cmpf ogt, %155, %157 : vector<64x512xf32>
    %159 = vector.broadcast %156 : f32 to vector<64x512xf32>
    %160 = arith.mulf %159, %155 : vector<64x512xf32>
    %161 = arith.select %158, %155, %160 : vector<64x512xi1>, vector<64x512xf32>
    %c0_42 = arith.constant 0 : index
    %c0_43 = arith.constant 0 : index
    %162 = vector.load %arg10[%c0_42, %c0_43] : memref<64x1xf32, #tpu.memory_space<vmem>>, vector<64x1xf32>
    %c0_44 = arith.constant 0 : index
    %c0_45 = arith.constant 0 : index
    %163 = vector.load %arg11[%c0_44, %c0_45] : memref<64x1xf32, #tpu.memory_space<vmem>>, vector<64x1xf32>
    %164 = vector.extract_strided_slice %161 {offsets = [0, 0], sizes = [64, 128], strides = [1, 1]} : vector<64x512xf32> to vector<64x128xf32>
    %165 = vector.shape_cast %164 : vector<64x128xf32> to vector<1x64x128xf32>
    %cst_46 = arith.constant dense<0.000000e+00> : vector<1xf32>
    %166 = vector.multi_reduction <add>, %165, %cst_46 [1, 2] : vector<1x64x128xf32> to vector<1xf32>
    %167 = vector.shape_cast %166 : vector<1xf32> to vector<1x1x1xf32>
    %168 = vector.extract %167[0, 0, 0] : f32 from vector<1x1x1xf32>
    %cst_47 = arith.constant 8.192000e+03 : f32
    %169 = arith.divf %168, %cst_47 : f32
    %170 = arith.mulf %164, %164 : vector<64x128xf32>
    %171 = vector.shape_cast %170 : vector<64x128xf32> to vector<1x64x128xf32>
    %cst_48 = arith.constant dense<0.000000e+00> : vector<1xf32>
    %172 = vector.multi_reduction <add>, %171, %cst_48 [1, 2] : vector<1x64x128xf32> to vector<1xf32>
    %173 = vector.shape_cast %172 : vector<1xf32> to vector<1x1x1xf32>
    %174 = vector.extract %173[0, 0, 0] : f32 from vector<1x1x1xf32>
    %cst_49 = arith.constant 8.192000e+03 : f32
    %175 = arith.divf %174, %cst_49 : f32
    %176 = arith.mulf %169, %169 : f32
    %177 = arith.subf %175, %176 : f32
    %cst_50 = arith.constant 0.000000e+00 : f32
    %178 = arith.maximumf %177, %cst_50 : f32
    %cst_51 = arith.constant 9.99999974E-6 : f32
    %179 = arith.addf %178, %cst_51 : f32
    %180 = math.rsqrt %179 : f32
    %181 = vector.broadcast %180 : f32 to vector<64x1xf32>
    %182 = arith.mulf %162, %181 : vector<64x1xf32>
    %183 = arith.mulf %169, %180 : f32
    %184 = vector.broadcast %183 : f32 to vector<64x1xf32>
    %185 = arith.mulf %162, %184 : vector<64x1xf32>
    %186 = arith.subf %163, %185 : vector<64x1xf32>
    %187 = vector.broadcast %182 : vector<64x1xf32> to vector<64x128xf32>
    %188 = arith.mulf %164, %187 : vector<64x128xf32>
    %189 = vector.broadcast %186 : vector<64x1xf32> to vector<64x128xf32>
    %190 = arith.addf %188, %189 : vector<64x128xf32>
    %191 = vector.extract_strided_slice %161 {offsets = [0, 128], sizes = [64, 128], strides = [1, 1]} : vector<64x512xf32> to vector<64x128xf32>
    %192 = vector.shape_cast %191 : vector<64x128xf32> to vector<1x64x128xf32>
    %cst_52 = arith.constant dense<0.000000e+00> : vector<1xf32>
    %193 = vector.multi_reduction <add>, %192, %cst_52 [1, 2] : vector<1x64x128xf32> to vector<1xf32>
    %194 = vector.shape_cast %193 : vector<1xf32> to vector<1x1x1xf32>
    %195 = vector.extract %194[0, 0, 0] : f32 from vector<1x1x1xf32>
    %cst_53 = arith.constant 8.192000e+03 : f32
    %196 = arith.divf %195, %cst_53 : f32
    %197 = arith.mulf %191, %191 : vector<64x128xf32>
    %198 = vector.shape_cast %197 : vector<64x128xf32> to vector<1x64x128xf32>
    %cst_54 = arith.constant dense<0.000000e+00> : vector<1xf32>
    %199 = vector.multi_reduction <add>, %198, %cst_54 [1, 2] : vector<1x64x128xf32> to vector<1xf32>
    %200 = vector.shape_cast %199 : vector<1xf32> to vector<1x1x1xf32>
    %201 = vector.extract %200[0, 0, 0] : f32 from vector<1x1x1xf32>
    %cst_55 = arith.constant 8.192000e+03 : f32
    %202 = arith.divf %201, %cst_55 : f32
    %203 = arith.mulf %196, %196 : f32
    %204 = arith.subf %202, %203 : f32
    %cst_56 = arith.constant 0.000000e+00 : f32
    %205 = arith.maximumf %204, %cst_56 : f32
    %cst_57 = arith.constant 9.99999974E-6 : f32
    %206 = arith.addf %205, %cst_57 : f32
    %207 = math.rsqrt %206 : f32
    %208 = vector.broadcast %207 : f32 to vector<64x1xf32>
    %209 = arith.mulf %162, %208 : vector<64x1xf32>
    %210 = arith.mulf %196, %207 : f32
    %211 = vector.broadcast %210 : f32 to vector<64x1xf32>
    %212 = arith.mulf %162, %211 : vector<64x1xf32>
    %213 = arith.subf %163, %212 : vector<64x1xf32>
    %214 = vector.broadcast %209 : vector<64x1xf32> to vector<64x128xf32>
    %215 = arith.mulf %191, %214 : vector<64x128xf32>
    %216 = vector.broadcast %213 : vector<64x1xf32> to vector<64x128xf32>
    %217 = arith.addf %215, %216 : vector<64x128xf32>
    %218 = vector.extract_strided_slice %161 {offsets = [0, 256], sizes = [64, 128], strides = [1, 1]} : vector<64x512xf32> to vector<64x128xf32>
    %219 = vector.shape_cast %218 : vector<64x128xf32> to vector<1x64x128xf32>
    %cst_58 = arith.constant dense<0.000000e+00> : vector<1xf32>
    %220 = vector.multi_reduction <add>, %219, %cst_58 [1, 2] : vector<1x64x128xf32> to vector<1xf32>
    %221 = vector.shape_cast %220 : vector<1xf32> to vector<1x1x1xf32>
    %222 = vector.extract %221[0, 0, 0] : f32 from vector<1x1x1xf32>
    %cst_59 = arith.constant 8.192000e+03 : f32
    %223 = arith.divf %222, %cst_59 : f32
    %224 = arith.mulf %218, %218 : vector<64x128xf32>
    %225 = vector.shape_cast %224 : vector<64x128xf32> to vector<1x64x128xf32>
    %cst_60 = arith.constant dense<0.000000e+00> : vector<1xf32>
    %226 = vector.multi_reduction <add>, %225, %cst_60 [1, 2] : vector<1x64x128xf32> to vector<1xf32>
    %227 = vector.shape_cast %226 : vector<1xf32> to vector<1x1x1xf32>
    %228 = vector.extract %227[0, 0, 0] : f32 from vector<1x1x1xf32>
    %cst_61 = arith.constant 8.192000e+03 : f32
    %229 = arith.divf %228, %cst_61 : f32
    %230 = arith.mulf %223, %223 : f32
    %231 = arith.subf %229, %230 : f32
    %cst_62 = arith.constant 0.000000e+00 : f32
    %232 = arith.maximumf %231, %cst_62 : f32
    %cst_63 = arith.constant 9.99999974E-6 : f32
    %233 = arith.addf %232, %cst_63 : f32
    %234 = math.rsqrt %233 : f32
    %235 = vector.broadcast %234 : f32 to vector<64x1xf32>
    %236 = arith.mulf %162, %235 : vector<64x1xf32>
    %237 = arith.mulf %223, %234 : f32
    %238 = vector.broadcast %237 : f32 to vector<64x1xf32>
    %239 = arith.mulf %162, %238 : vector<64x1xf32>
    %240 = arith.subf %163, %239 : vector<64x1xf32>
    %241 = vector.broadcast %236 : vector<64x1xf32> to vector<64x128xf32>
    %242 = arith.mulf %218, %241 : vector<64x128xf32>
    %243 = vector.broadcast %240 : vector<64x1xf32> to vector<64x128xf32>
    %244 = arith.addf %242, %243 : vector<64x128xf32>
    %245 = vector.extract_strided_slice %161 {offsets = [0, 384], sizes = [64, 128], strides = [1, 1]} : vector<64x512xf32> to vector<64x128xf32>
    %246 = vector.shape_cast %245 : vector<64x128xf32> to vector<1x64x128xf32>
    %cst_64 = arith.constant dense<0.000000e+00> : vector<1xf32>
    %247 = vector.multi_reduction <add>, %246, %cst_64 [1, 2] : vector<1x64x128xf32> to vector<1xf32>
    %248 = vector.shape_cast %247 : vector<1xf32> to vector<1x1x1xf32>
    %249 = vector.extract %248[0, 0, 0] : f32 from vector<1x1x1xf32>
    %cst_65 = arith.constant 8.192000e+03 : f32
    %250 = arith.divf %249, %cst_65 : f32
    %251 = arith.mulf %245, %245 : vector<64x128xf32>
    %252 = vector.shape_cast %251 : vector<64x128xf32> to vector<1x64x128xf32>
    %cst_66 = arith.constant dense<0.000000e+00> : vector<1xf32>
    %253 = vector.multi_reduction <add>, %252, %cst_66 [1, 2] : vector<1x64x128xf32> to vector<1xf32>
    %254 = vector.shape_cast %253 : vector<1xf32> to vector<1x1x1xf32>
    %255 = vector.extract %254[0, 0, 0] : f32 from vector<1x1x1xf32>
    %cst_67 = arith.constant 8.192000e+03 : f32
    %256 = arith.divf %255, %cst_67 : f32
    %257 = arith.mulf %250, %250 : f32
    %258 = arith.subf %256, %257 : f32
    %cst_68 = arith.constant 0.000000e+00 : f32
    %259 = arith.maximumf %258, %cst_68 : f32
    %cst_69 = arith.constant 9.99999974E-6 : f32
    %260 = arith.addf %259, %cst_69 : f32
    %261 = math.rsqrt %260 : f32
    %262 = vector.broadcast %261 : f32 to vector<64x1xf32>
    %263 = arith.mulf %162, %262 : vector<64x1xf32>
    %264 = arith.mulf %250, %261 : f32
    %265 = vector.broadcast %264 : f32 to vector<64x1xf32>
    %266 = arith.mulf %162, %265 : vector<64x1xf32>
    %267 = arith.subf %163, %266 : vector<64x1xf32>
    %268 = vector.broadcast %263 : vector<64x1xf32> to vector<64x128xf32>
    %269 = arith.mulf %245, %268 : vector<64x128xf32>
    %270 = vector.broadcast %267 : vector<64x1xf32> to vector<64x128xf32>
    %271 = arith.addf %269, %270 : vector<64x128xf32>
    %272 = tpu.concatenate %190, %217, %244, %271 in 1 : vector<64x128xf32>, vector<64x128xf32>, vector<64x128xf32>, vector<64x128xf32> -> vector<64x512xf32>
    %c0_70 = arith.constant 0 : index
    %c0_71 = arith.constant 0 : index
    %273 = vector.load %arg12[%c0_70, %c0_71] : memref<32x64xbf16, #tpu.memory_space<vmem>>, vector<32x64xbf16>
    %274 = arith.truncf %272 : vector<64x512xf32> to vector<64x512xbf16>
    %cst_72 = arith.constant dense<0.000000e+00> : vector<32x512xf32>
    %275 = tpu.matmul %273, %274, %cst_72 {dimension_numbers = #tpu.dot_dimension_numbers<[1], [0], [0], [1], [0, 0, 1, 1], [], []>} : vector<32x64xbf16>, vector<64x512xbf16>, vector<32x512xf32> -> vector<32x512xf32>
    %c0_73 = arith.constant 0 : index
    %c0_74 = arith.constant 0 : index
    %276 = vector.load %arg13[%c0_73, %c0_74] : memref<32x1xf32, #tpu.memory_space<vmem>>, vector<32x1xf32>
    %277 = vector.broadcast %276 : vector<32x1xf32> to vector<32x512xf32>
    %278 = arith.addf %275, %277 : vector<32x512xf32>
    %279 = arith.addf %0, %278 : vector<32x512xf32>
    %c0_75 = arith.constant 0 : index
    %c0_76 = arith.constant 0 : index
    %280 = vector.load %arg14[%c0_75, %c0_76] : memref<32x512xf32, #tpu.memory_space<vmem>>, vector<32x512xf32>
    tpu.vector_store %arg14[%c0_75, %c0_76], %279 {strides = array<i32>} : memref<32x512xf32, #tpu.memory_space<vmem>>, vector<32x512xf32>,
    return
  }
  func.func @transform_0(%arg0: i32) -> (i32, i32) {
    %c0_i32 = arith.constant 0 : i32
    %c0_i32_0 = arith.constant 0 : i32
    return %c0_i32, %arg0 : i32, i32
  }
  func.func @transform_1(%arg0: i32) -> (i32, i32) {
    %c0_i32 = arith.constant 0 : i32
    %c0_i32_0 = arith.constant 0 : i32
    %c0_i32_1 = arith.constant 0 : i32
    return %c0_i32, %c0_i32_0 : i32, i32
  }
  func.func @transform_2(%arg0: i32) -> (i32, i32) {
    %c0_i32 = arith.constant 0 : i32
    %c0_i32_0 = arith.constant 0 : i32
    %c0_i32_1 = arith.constant 0 : i32
    return %c0_i32, %c0_i32_0 : i32, i32
  }
  func.func @transform_3(%arg0: i32) -> i32 {
    %c0_i32 = arith.constant 0 : i32
    %c0_i32_0 = arith.constant 0 : i32
    return %c0_i32 : i32
  }
  func.func @transform_4(%arg0: i32) -> (i32, i32) {
    %c0_i32 = arith.constant 0 : i32
    %c0_i32_0 = arith.constant 0 : i32
    %c0_i32_1 = arith.constant 0 : i32
    return %c0_i32, %c0_i32_0 : i32, i32
  }
  func.func @transform_5(%arg0: i32) -> (i32, i32) {
    %c0_i32 = arith.constant 0 : i32
    %c0_i32_0 = arith.constant 0 : i32
    %c0_i32_1 = arith.constant 0 : i32
    return %c0_i32, %c0_i32_0 : i32, i32
  }
  func.func @transform_6(%arg0: i32) -> (i32, i32) {
    %c0_i32 = arith.constant 0 : i32
    %c0_i32_0 = arith.constant 0 : i32
    %c0_i32_1 = arith.constant 0 : i32
    return %c0_i32, %c0_i32_0 : i32, i32
  }
  func.func @transform_7(%arg0: i32) -> (i32, i32) {
    %c0_i32 = arith.constant 0 : i32
    %c0_i32_0 = arith.constant 0 : i32
    %c0_i32_1 = arith.constant 0 : i32
    return %c0_i32, %c0_i32_0 : i32, i32
  }
  func.func @transform_8(%arg0: i32) -> i32 {
    %c0_i32 = arith.constant 0 : i32
    %c0_i32_0 = arith.constant 0 : i32
    return %c0_i32 : i32
  }
  func.func @transform_9(%arg0: i32) -> (i32, i32) {
    %c0_i32 = arith.constant 0 : i32
    %c0_i32_0 = arith.constant 0 : i32
    %c0_i32_1 = arith.constant 0 : i32
    return %c0_i32, %c0_i32_0 : i32, i32
  }
  func.func @transform_10(%arg0: i32) -> (i32, i32) {
    %c0_i32 = arith.constant 0 : i32
    %c0_i32_0 = arith.constant 0 : i32
    %c0_i32_1 = arith.constant 0 : i32
    return %c0_i32, %c0_i32_0 : i32, i32
  }
  func.func @transform_11(%arg0: i32) -> (i32, i32) {
    %c0_i32 = arith.constant 0 : i32
    %c0_i32_0 = arith.constant 0 : i32
    %c0_i32_1 = arith.constant 0 : i32
    return %c0_i32, %c0_i32_0 : i32, i32
  }
  func.func @transform_12(%arg0: i32) -> (i32, i32) {
    %c0_i32 = arith.constant 0 : i32
    %c0_i32_0 = arith.constant 0 : i32
    %c0_i32_1 = arith.constant 0 : i32
    return %c0_i32, %c0_i32_0 : i32, i32
  }
  func.func @transform_13(%arg0: i32) -> (i32, i32) {
    %c0_i32 = arith.constant 0 : i32
    %c0_i32_0 = arith.constant 0 : i32
    return %c0_i32, %arg0 : i32, i32
  }
}

</mosaic_0001>

<llo_original>
// kernel: tpu_custom_call.1
$region0: #{tpu_custom_call.1}
  #allocation0 [shape = 'u32[]', space=smem, size = 0x4, offset = 0x4, fixed_abs, tag = 'smem constant byte address 0x4 - core index']
  #allocation1 [shape = 'u32[144,128]{1,0:T(1,128)}', space=vmem, size = 0x12000, scoped, tag = 'internal scratch']
  #allocation2 [shape = 'f32[1]{0:T(128)S(6)}', space=smem, size = 0x200, scoped, tag = 'scoped memory for tpu_custom_call.1']
  #allocation3 [shape = 'f32[1]{0:T(128)S(6)}', space=smem, size = 0x200, scoped, tag = 'scoped memory for tpu_custom_call.1']
  %s0 = inlined_call_operand.vmem [shape: f32[32,1024], index: 0, kind: input, shape index: {}]
  %s1 = inlined_call_operand.vmem [shape: bf16[64,32], index: 1, kind: input, shape index: {}]
  %s2 = inlined_call_operand.vmem [shape: f32[64,1], index: 2, kind: input, shape index: {}]
  %s3 = inlined_call_operand.<no memory space> [shape: f32[1], index: 3, kind: input, shape index: {}]
  %s4 = inlined_call_operand.vmem [shape: f32[64,1], index: 4, kind: input, shape index: {}]
  %s5 = inlined_call_operand.vmem [shape: f32[64,1], index: 5, kind: input, shape index: {}]
  %s6 = inlined_call_operand.vmem [shape: f32[64,3], index: 6, kind: input, shape index: {}]
  %s7 = inlined_call_operand.vmem [shape: f32[64,1], index: 7, kind: input, shape index: {}]
  %s8 = inlined_call_operand.<no memory space> [shape: f32[1], index: 8, kind: input, shape index: {}]
  %s9 = inlined_call_operand.vmem [shape: f32[64,1], index: 9, kind: input, shape index: {}]
  %s10 = inlined_call_operand.vmem [shape: f32[64,1], index: 10, kind: input, shape index: {}]
  %s11 = inlined_call_operand.vmem [shape: bf16[32,64], index: 11, kind: input, shape index: {}]
  %s12 = inlined_call_operand.vmem [shape: f32[32,1], index: 12, kind: input, shape index: {}]
  %s13 = inlined_call_operand.hbm [shape: f32[32,1024], index: 13, kind: output, shape index: {}]
  %s14 = sld [smem:[#allocation0]]
  $region108: #{tpu_custom_call.1} parent=0
    _
  %s16 = ssub.s32 1, %s14
  %s17 = scalar_select 0, %s16, %s14
  %18 = sst [smem:[#allocation2]] %s3
  %19 = sst [smem:[#allocation3]] %s8
  $region1: #{tpu_custom_call.1} parent=0
    #allocation4 [shape = 'u8[131072]{0}', space=vmem, size = 0x20000, scoped, tag = 'input window, operand 0']
    #allocation5 [shape = 'u8[131072]{0}', space=vmem, size = 0x20000, scoped, tag = 'output window, operand 0']
    #allocation6 [shape = 's32[2]{0}', space=sflag, size = 0x8, scoped, tag = 'scoped memory for tpu_custom_call.1']
    %20 = vsyncpa [#allocation6], 0
    %s21 = scalar_lea.sflag [#allocation6], 1
    %22 = vsyncpa %s21, 0
    loop: start=0, step=1, limit=4
    $region2: #{tpu_custom_call.1} parent=1 // loop_pre_header
      _
    $region3: #{tpu_custom_call.1} parent=1 // loop_header
      %s24 = sphi 0, %s28
      %p25 = scmp.ge.s32.totalorder %s24, 4
      %s34 = sphi 0, %s36
      %s37 = sphi 0, %s34
      %s38 = sphi 0, %s37
      %s54 = sphi 0, %s38
      %s58 = sphi 0, %s58
      %s60 = sphi 0, %s58
      %s61 = sphi 0, %s60
      %s75 = sphi 0, %s61
      %s79 = sphi 0, %s79
      %s81 = sphi 0, %s79
      %s82 = sphi 0, %s81
      %s96 = sphi 0, %s82
      %s100 = sphi 0, %s100
      %s102 = sphi 0, %s100
      %s103 = sphi 0, %s102
      %s117 = sphi 0, %s103
      %s121 = sphi 0, %s121
      %s123 = sphi 0, %s121
      %s124 = sphi 0, %s123
      %s138 = sphi 0, %s124
      %s142 = sphi 0, %s142
      %s144 = sphi 0, %s142
      %s145 = sphi 0, %s144
      %s159 = sphi 0, %s145
      %s163 = sphi 0, %s163
      %s165 = sphi 0, %s163
      %s166 = sphi 0, %s165
      %s180 = sphi 0, %s166
      %s184 = sphi 0, %s184
      %s186 = sphi 0, %s184
      %s187 = sphi 0, %s186
      %s201 = sphi 0, %s187
      %s205 = sphi 0, %s205
      %s207 = sphi 0, %s205
      %s208 = sphi 0, %s207
      %s222 = sphi 0, %s208
      %s226 = sphi 0, %s226
      %s228 = sphi 0, %s226
      %s229 = sphi 0, %s228
      %s243 = sphi 0, %s229
      %s247 = sphi 0, %s247
      %s249 = sphi 0, %s247
      %s250 = sphi 0, %s249
      %s264 = sphi 0, %s250
      %s268 = sphi 0, %s268
      %s270 = sphi 0, %s268
      %s271 = sphi 0, %s270
      %s285 = sphi 0, %s271
      %s289 = sphi 0, %s289
      %s291 = sphi 0, %s289
      %s292 = sphi 0, %s291
      %s306 = sphi 0, %s292
      %s312 = sphi 0, %s314
      %s315 = sphi 0, %s312
      %s316 = sphi 0, %s315
      %s332 = sphi 0, %s316
    $region4: #{tpu_custom_call.1} parent=1 // loop_header_branch
      %27 = sbr.rel (%p25) target = $region8
    $region5: #{tpu_custom_call.1} parent=1 // loop_body
      %s29 = ssub.s32 %s24, 1
      %s30 = ssub.s32 %s24, 2
      %s31 = sadd.s32 %s24, 1
      %s32 = ssub.s32 %s24, %s31
      %p33 = scmp.eq.s32.totalorder %s32, 0
      %s35 = sadd.s32 %s34, 1
      %s36 = scalar_select %p33, %s34, %s35
      %p39 = pneg %p33
      %p40 = scmp.eq.s32.totalorder %s24, 1
      %p41 = por %p39, %p40
      %p42 = scmp.ne.s32.totalorder %s34, %s37
      %p43 = scmp.eq.s32.totalorder %s24, 0
      %p44 = por %p42, %p43
      %p45 = scmp.ne.s32.totalorder %s34, %s37
      %p46 = scmp.eq.s32.totalorder %s29, 1
      %p47 = por %p45, %p46
      %p48 = scmp.ne.s32.totalorder %s37, %s38
      %p49 = scmp.eq.s32.totalorder %s29, 0
      %p50 = por %p48, %p49
      %p51 = scmp.ne.s32.totalorder %s37, %s38
      %p52 = scmp.eq.s32.totalorder %s30, 1
      %p53 = por %p51, %p52
      %p55 = scmp.ne.s32.totalorder %s38, %s54
      %p56 = scmp.eq.s32.totalorder %s30, 0
      %p57 = por %p55, %p56
      %s59 = sadd.s32 %s58, 1
      %p62 = scmp.eq.s32.totalorder %s24, 1
      %p63 = scmp.ne.s32.totalorder %s58, %s60
      %p64 = scmp.eq.s32.totalorder %s24, 0
      %p65 = por %p63, %p64
      %p66 = scmp.ne.s32.totalorder %s58, %s60
      %p67 = scmp.eq.s32.totalorder %s29, 1
      %p68 = por %p66, %p67
      %p69 = scmp.ne.s32.totalorder %s60, %s61
      %p70 = scmp.eq.s32.totalorder %s29, 0
      %p71 = por %p69, %p70
      %p72 = scmp.ne.s32.totalorder %s60, %s61
      %p73 = scmp.eq.s32.totalorder %s30, 1
      %p74 = por %p72, %p73
      %p76 = scmp.ne.s32.totalorder %s61, %s75
      %p77 = scmp.eq.s32.totalorder %s30, 0
      %p78 = por %p76, %p77
      %s80 = sadd.s32 %s79, 1
      %p83 = scmp.eq.s32.totalorder %s24, 1
      %p84 = scmp.ne.s32.totalorder %s79, %s81
      %p85 = scmp.eq.s32.totalorder %s24, 0
      %p86 = por %p84, %p85
      %p87 = scmp.ne.s32.totalorder %s79, %s81
      %p88 = scmp.eq.s32.totalorder %s29, 1
      %p89 = por %p87, %p88
      %p90 = scmp.ne.s32.totalorder %s81, %s82
      %p91 = scmp.eq.s32.totalorder %s29, 0
      %p92 = por %p90, %p91
      %p93 = scmp.ne.s32.totalorder %s81, %s82
      %p94 = scmp.eq.s32.totalorder %s30, 1
      %p95 = por %p93, %p94
      %p97 = scmp.ne.s32.totalorder %s82, %s96
      %p98 = scmp.eq.s32.totalorder %s30, 0
      %p99 = por %p97, %p98
      %s101 = sadd.s32 %s100, 1
      %p104 = scmp.eq.s32.totalorder %s24, 1
      %p105 = scmp.ne.s32.totalorder %s100, %s102
      %p106 = scmp.eq.s32.totalorder %s24, 0
      %p107 = por %p105, %p106
      %p108 = scmp.ne.s32.totalorder %s100, %s102
      %p109 = scmp.eq.s32.totalorder %s29, 1
      %p110 = por %p108, %p109
      %p111 = scmp.ne.s32.totalorder %s102, %s103
      %p112 = scmp.eq.s32.totalorder %s29, 0
      %p113 = por %p111, %p112
      %p114 = scmp.ne.s32.totalorder %s102, %s103
      %p115 = scmp.eq.s32.totalorder %s30, 1
      %p116 = por %p114, %p115
      %p118 = scmp.ne.s32.totalorder %s103, %s117
      %p119 = scmp.eq.s32.totalorder %s30, 0
      %p120 = por %p118, %p119
      %s122 = sadd.s32 %s121, 1
      %p125 = scmp.eq.s32.totalorder %s24, 1
      %p126 = scmp.ne.s32.totalorder %s121, %s123
      %p127 = scmp.eq.s32.totalorder %s24, 0
      %p128 = por %p126, %p127
      %p129 = scmp.ne.s32.totalorder %s121, %s123
      %p130 = scmp.eq.s32.totalorder %s29, 1
      %p131 = por %p129, %p130
      %p132 = scmp.ne.s32.totalorder %s123, %s124
      %p133 = scmp.eq.s32.totalorder %s29, 0
      %p134 = por %p132, %p133
      %p135 = scmp.ne.s32.totalorder %s123, %s124
      %p136 = scmp.eq.s32.totalorder %s30, 1
      %p137 = por %p135, %p136
      %p139 = scmp.ne.s32.totalorder %s124, %s138
      %p140 = scmp.eq.s32.totalorder %s30, 0
      %p141 = por %p139, %p140
      %s143 = sadd.s32 %s142, 1
      %p146 = scmp.eq.s32.totalorder %s24, 1
      %p147 = scmp.ne.s32.totalorder %s142, %s144
      %p148 = scmp.eq.s32.totalorder %s24, 0
      %p149 = por %p147, %p148
      %p150 = scmp.ne.s32.totalorder %s142, %s144
      %p151 = scmp.eq.s32.totalorder %s29, 1
      %p152 = por %p150, %p151
      %p153 = scmp.ne.s32.totalorder %s144, %s145
      %p154 = scmp.eq.s32.totalorder %s29, 0
      %p155 = por %p153, %p154
      %p156 = scmp.ne.s32.totalorder %s144, %s145
      %p157 = scmp.eq.s32.totalorder %s30, 1
      %p158 = por %p156, %p157
      %p160 = scmp.ne.s32.totalorder %s145, %s159
      %p161 = scmp.eq.s32.totalorder %s30, 0
      %p162 = por %p160, %p161
      %s164 = sadd.s32 %s163, 1
      %p167 = scmp.eq.s32.totalorder %s24, 1
      %p168 = scmp.ne.s32.totalorder %s163, %s165
      %p169 = scmp.eq.s32.totalorder %s24, 0
      %p170 = por %p168, %p169
      %p171 = scmp.ne.s32.totalorder %s163, %s165
      %p172 = scmp.eq.s32.totalorder %s29, 1
      %p173 = por %p171, %p172
      %p174 = scmp.ne.s32.totalorder %s165, %s166
      %p175 = scmp.eq.s32.totalorder %s29, 0
      %p176 = por %p174, %p175
      %p177 = scmp.ne.s32.totalorder %s165, %s166
      %p178 = scmp.eq.s32.totalorder %s30, 1
      %p179 = por %p177, %p178
      %p181 = scmp.ne.s32.totalorder %s166, %s180
      %p182 = scmp.eq.s32.totalorder %s30, 0
      %p183 = por %p181, %p182
      %s185 = sadd.s32 %s184, 1
      %p188 = scmp.eq.s32.totalorder %s24, 1
      %p189 = scmp.ne.s32.totalorder %s184, %s186
      %p190 = scmp.eq.s32.totalorder %s24, 0
      %p191 = por %p189, %p190
      %p192 = scmp.ne.s32.totalorder %s184, %s186
      %p193 = scmp.eq.s32.totalorder %s29, 1
      %p194 = por %p192, %p193
      %p195 = scmp.ne.s32.totalorder %s186, %s187
      %p196 = scmp.eq.s32.totalorder %s29, 0
      %p197 = por %p195, %p196
      %p198 = scmp.ne.s32.totalorder %s186, %s187
      %p199 = scmp.eq.s32.totalorder %s30, 1
      %p200 = por %p198, %p199
      %p202 = scmp.ne.s32.totalorder %s187, %s201
      %p203 = scmp.eq.s32.totalorder %s30, 0
      %p204 = por %p202, %p203
      %s206 = sadd.s32 %s205, 1
      %p209 = scmp.eq.s32.totalorder %s24, 1
      %p210 = scmp.ne.s32.totalorder %s205, %s207
      %p211 = scmp.eq.s32.totalorder %s24, 0
      %p212 = por %p210, %p211
      %p213 = scmp.ne.s32.totalorder %s205, %s207
      %p214 = scmp.eq.s32.totalorder %s29, 1
      %p215 = por %p213, %p214
      %p216 = scmp.ne.s32.totalorder %s207, %s208
      %p217 = scmp.eq.s32.totalorder %s29, 0
      %p218 = por %p216, %p217
      %p219 = scmp.ne.s32.totalorder %s207, %s208
      %p220 = scmp.eq.s32.totalorder %s30, 1
      %p221 = por %p219, %p220
      %p223 = scmp.ne.s32.totalorder %s208, %s222
      %p224 = scmp.eq.s32.totalorder %s30, 0
      %p225 = por %p223, %p224
      %s227 = sadd.s32 %s226, 1
      %p230 = scmp.eq.s32.totalorder %s24, 1
      %p231 = scmp.ne.s32.totalorder %s226, %s228
      %p232 = scmp.eq.s32.totalorder %s24, 0
      %p233 = por %p231, %p232
      %p234 = scmp.ne.s32.totalorder %s226, %s228
      %p235 = scmp.eq.s32.totalorder %s29, 1
      %p236 = por %p234, %p235
      %p237 = scmp.ne.s32.totalorder %s228, %s229
      %p238 = scmp.eq.s32.totalorder %s29, 0
      %p239 = por %p237, %p238
      %p240 = scmp.ne.s32.totalorder %s228, %s229
      %p241 = scmp.eq.s32.totalorder %s30, 1
      %p242 = por %p240, %p241
      %p244 = scmp.ne.s32.totalorder %s229, %s243
      %p245 = scmp.eq.s32.totalorder %s30, 0
      %p246 = por %p244, %p245
      %s248 = sadd.s32 %s247, 1
      %p251 = scmp.eq.s32.totalorder %s24, 1
      %p252 = scmp.ne.s32.totalorder %s247, %s249
      %p253 = scmp.eq.s32.totalorder %s24, 0
      %p254 = por %p252, %p253
      %p255 = scmp.ne.s32.totalorder %s247, %s249
      %p256 = scmp.eq.s32.totalorder %s29, 1
      %p257 = por %p255, %p256
      %p258 = scmp.ne.s32.totalorder %s249, %s250
      %p259 = scmp.eq.s32.totalorder %s29, 0
      %p260 = por %p258, %p259
      %p261 = scmp.ne.s32.totalorder %s249, %s250
      %p262 = scmp.eq.s32.totalorder %s30, 1
      %p263 = por %p261, %p262
      %p265 = scmp.ne.s32.totalorder %s250, %s264
      %p266 = scmp.eq.s32.totalorder %s30, 0
      %p267 = por %p265, %p266
      %s269 = sadd.s32 %s268, 1
      %p272 = scmp.eq.s32.totalorder %s24, 1
      %p273 = scmp.ne.s32.totalorder %s268, %s270
      %p274 = scmp.eq.s32.totalorder %s24, 0
      %p275 = por %p273, %p274
      %p276 = scmp.ne.s32.totalorder %s268, %s270
      %p277 = scmp.eq.s32.totalorder %s29, 1
      %p278 = por %p276, %p277
      %p279 = scmp.ne.s32.totalorder %s270, %s271
      %p280 = scmp.eq.s32.totalorder %s29, 0
      %p281 = por %p279, %p280
      %p282 = scmp.ne.s32.totalorder %s270, %s271
      %p283 = scmp.eq.s32.totalorder %s30, 1
      %p284 = por %p282, %p283
      %p286 = scmp.ne.s32.totalorder %s271, %s285
      %p287 = scmp.eq.s32.totalorder %s30, 0
      %p288 = por %p286, %p287
      %s290 = sadd.s32 %s289, 1
      %p293 = scmp.eq.s32.totalorder %s24, 1
      %p294 = scmp.ne.s32.totalorder %s289, %s291
      %p295 = scmp.eq.s32.totalorder %s24, 0
      %p296 = por %p294, %p295
      %p297 = scmp.ne.s32.totalorder %s289, %s291
      %p298 = scmp.eq.s32.totalorder %s29, 1
      %p299 = por %p297, %p298
      %p300 = scmp.ne.s32.totalorder %s291, %s292
      %p301 = scmp.eq.s32.totalorder %s29, 0
      %p302 = por %p300, %p301
      %p303 = scmp.ne.s32.totalorder %s291, %s292
      %p304 = scmp.eq.s32.totalorder %s30, 1
      %p305 = por %p303, %p304
      %p307 = scmp.ne.s32.totalorder %s292, %s306
      %p308 = scmp.eq.s32.totalorder %s30, 0
      %p309 = por %p307, %p308
      %s310 = ssub.s32 %s24, %s31
      %p311 = scmp.eq.s32.totalorder %s310, 0
      %s313 = sadd.s32 %s312, 1
      %s314 = scalar_select %p311, %s312, %s313
      %p317 = pneg %p311
      %p318 = scmp.eq.s32.totalorder %s24, 1
      %p319 = por %p317, %p318
      %p320 = scmp.ne.s32.totalorder %s312, %s315
      %p321 = scmp.eq.s32.totalorder %s24, 0
      %p322 = por %p320, %p321
      %p323 = scmp.ne.s32.totalorder %s312, %s315
      %p324 = scmp.eq.s32.totalorder %s29, 1
      %p325 = por %p323, %p324
      %p326 = scmp.ne.s32.totalorder %s315, %s316
      %p327 = scmp.eq.s32.totalorder %s29, 0
      %p328 = por %p326, %p327
      %p329 = scmp.ne.s32.totalorder %s315, %s316
      %p330 = scmp.eq.s32.totalorder %s30, 1
      %p331 = por %p329, %p330
      %p333 = scmp.ne.s32.totalorder %s316, %s332
      %p334 = scmp.eq.s32.totalorder %s30, 0
      %p335 = por %p333, %p334
      %p336 = scmp.le.s32.totalorder 1, %s24
      %p337 = scmp.lt.s32.totalorder %s24, 3
      %p338 = pnand %p336, %p337
      %p339 = pneg %p338
      // Predicated region
      $region9: #{tpu_custom_call.1} parent=5 // pred_check
        _
      $region10: #{tpu_custom_call.1} parent=5 // pred_check_branch
        %341 = sbr.rel (%p338) target = $region12
      $region11: #{tpu_custom_call.1} parent=5 // pred_region
        %s342 = ssub.s32 %s24, 1
        // Predicated region
        $region13: #{tpu_custom_call.1} parent=11 // pred_check
          %p343 = pneg %p71
        $region14: #{tpu_custom_call.1} parent=11 // pred_check_branch
          %345 = sbr.rel (%p343) target = $region16
        $region15: #{tpu_custom_call.1} parent=11 // pred_region
          _
        $region16: #{tpu_custom_call.1} parent=11 // pred_fallthru
          _
        // Predicated region
        $region17: #{tpu_custom_call.1} parent=11 // pred_check
          %p346 = pneg %p92
        $region18: #{tpu_custom_call.1} parent=11 // pred_check_branch
          %348 = sbr.rel (%p346) target = $region20
        $region19: #{tpu_custom_call.1} parent=11 // pred_region
          _
        $region20: #{tpu_custom_call.1} parent=11 // pred_fallthru
          _
        // Predicated region
        $region21: #{tpu_custom_call.1} parent=11 // pred_check
          %p349 = pneg %p113
        $region22: #{tpu_custom_call.1} parent=11 // pred_check_branch
          %351 = sbr.rel (%p349) target = $region24
        $region23: #{tpu_custom_call.1} parent=11 // pred_region
          _
        $region24: #{tpu_custom_call.1} parent=11 // pred_fallthru
          _
        // Predicated region
        $region25: #{tpu_custom_call.1} parent=11 // pred_check
          %p352 = pneg %p134
        $region26: #{tpu_custom_call.1} parent=11 // pred_check_branch
          %354 = sbr.rel (%p352) target = $region28
        $region27: #{tpu_custom_call.1} parent=11 // pred_region
          _
        $region28: #{tpu_custom_call.1} parent=11 // pred_fallthru
          _
        // Predicated region
        $region29: #{tpu_custom_call.1} parent=11 // pred_check
          %p355 = pneg %p155
        $region30: #{tpu_custom_call.1} parent=11 // pred_check_branch
          %357 = sbr.rel (%p355) target = $region32
        $region31: #{tpu_custom_call.1} parent=11 // pred_region
          _
        $region32: #{tpu_custom_call.1} parent=11 // pred_fallthru
          _
        // Predicated region
        $region33: #{tpu_custom_call.1} parent=11 // pred_check
          %p358 = pneg %p176
        $region34: #{tpu_custom_call.1} parent=11 // pred_check_branch
          %360 = sbr.rel (%p358) target = $region36
        $region35: #{tpu_custom_call.1} parent=11 // pred_region
          _
        $region36: #{tpu_custom_call.1} parent=11 // pred_fallthru
          _
        // Predicated region
        $region37: #{tpu_custom_call.1} parent=11 // pred_check
          %p361 = pneg %p197
        $region38: #{tpu_custom_call.1} parent=11 // pred_check_branch
          %363 = sbr.rel (%p361) target = $region40
        $region39: #{tpu_custom_call.1} parent=11 // pred_region
          _
        $region40: #{tpu_custom_call.1} parent=11 // pred_fallthru
          _
        // Predicated region
        $region41: #{tpu_custom_call.1} parent=11 // pred_check
          %p364 = pneg %p218
        $region42: #{tpu_custom_call.1} parent=11 // pred_check_branch
          %366 = sbr.rel (%p364) target = $region44
        $region43: #{tpu_custom_call.1} parent=11 // pred_region
          _
        $region44: #{tpu_custom_call.1} parent=11 // pred_fallthru
          _
        // Predicated region
        $region45: #{tpu_custom_call.1} parent=11 // pred_check
          %p367 = pneg %p239
        $region46: #{tpu_custom_call.1} parent=11 // pred_check_branch
          %369 = sbr.rel (%p367) target = $region48
        $region47: #{tpu_custom_call.1} parent=11 // pred_region
          _
        $region48: #{tpu_custom_call.1} parent=11 // pred_fallthru
          _
        // Predicated region
        $region49: #{tpu_custom_call.1} parent=11 // pred_check
          %p370 = pneg %p260
        $region50: #{tpu_custom_call.1} parent=11 // pred_check_branch
          %372 = sbr.rel (%p370) target = $region52
        $region51: #{tpu_custom_call.1} parent=11 // pred_region
          _
        $region52: #{tpu_custom_call.1} parent=11 // pred_fallthru
          _
        // Predicated region
        $region53: #{tpu_custom_call.1} parent=11 // pred_check
          %p373 = pneg %p281
        $region54: #{tpu_custom_call.1} parent=11 // pred_check_branch
          %375 = sbr.rel (%p373) target = $region56
        $region55: #{tpu_custom_call.1} parent=11 // pred_region
          _
        $region56: #{tpu_custom_call.1} parent=11 // pred_fallthru
          _
        // Predicated region
        $region57: #{tpu_custom_call.1} parent=11 // pred_check
          %p376 = pneg %p302
        $region58: #{tpu_custom_call.1} parent=11 // pred_check_branch
          %378 = sbr.rel (%p376) target = $region60
        $region59: #{tpu_custom_call.1} parent=11 // pred_region
          _
        $region60: #{tpu_custom_call.1} parent=11 // pred_fallthru
          _
      $region12: #{tpu_custom_call.1} parent=5 // pred_fallthru
        _
      %p379 = scmp.lt.s32.totalorder %s24, 2
      // Predicated region
      $region61: #{tpu_custom_call.1} parent=5 // pred_check
        %p380 = pneg %p379
      $region62: #{tpu_custom_call.1} parent=5 // pred_check_branch
        %382 = sbr.rel (%p380) target = $region64
      $region63: #{tpu_custom_call.1} parent=5 // pred_region
        // Predicated region
        $region65: #{tpu_custom_call.1} parent=63 // pred_check
          %p383 = pneg %p44
        $region66: #{tpu_custom_call.1} parent=63 // pred_check_branch
          %385 = sbr.rel (%p383) target = $region68
        $region67: #{tpu_custom_call.1} parent=63 // pred_region
          %s386 = sand.u32 %s34, 1
          %s387 = sand.u32 %s34, 1
          %s388 = smul.addr %s387, 128
          %s389 = scalar_lea.vmem [#allocation4], %s388
          %s390 = smul.u32 4, %s24
          %s391 = smul.addr %s390, 8
          %s392 = scalar_lea.vmem %s0, %s391
          // Predicated region
          $region69: #{tpu_custom_call.1} parent=67 // pred_check
            _
          $region70: #{tpu_custom_call.1} parent=67 // pred_check_branch
            %394 = sbr.rel (0) target = $region72
          $region71: #{tpu_custom_call.1} parent=67 // pred_region
            // Predicated region
            $region73: #{tpu_custom_call.1} parent=71 // pred_check
              _
            $region74: #{tpu_custom_call.1} parent=71 // pred_check_branch
              %396 = sbr.rel (0) target = $region76
            $region75: #{tpu_custom_call.1} parent=71 // pred_region
              loop: start=0, step=1, limit=1
              $region77: #{tpu_custom_call.1} parent=75 // loop_pre_header
                _
              $region78: #{tpu_custom_call.1} parent=75 // loop_header
                %s398 = sphi 0, %s402
                %p399 = scmp.ge.s32.totalorder %s398, 1
                %s403 = sphi %s392, %s392
                %s404 = sphi %s389, %s389
              $region79: #{tpu_custom_call.1} parent=75 // loop_header_branch
                %401 = sbr.rel (%p399) target = $region83
              $region80: #{tpu_custom_call.1} parent=75 // loop_body
                %v405 = vld [vmem:[%s403] sm:$0xff]
                %406 = vst [vmem:[%s404] sm:$0xff] %v405
                %v407 = vld [vmem:[%s403 + $0x8] sm:$0xff]
                %408 = vst [vmem:[%s404 + $0x8] sm:$0xff] %v407
                %v409 = vld [vmem:[%s403 + $0x10] sm:$0xff]
                %410 = vst [vmem:[%s404 + $0x10] sm:$0xff] %v409
                %v411 = vld [vmem:[%s403 + $0x18] sm:$0xff]
                %412 = vst [vmem:[%s404 + $0x18] sm:$0xff] %v411
                %v413 = vld [vmem:[%s403 + $0x40] sm:$0xff]
                %414 = vst [vmem:[%s404 + $0x20] sm:$0xff] %v413
                %v415 = vld [vmem:[%s403 + $0x48] sm:$0xff]
                %416 = vst [vmem:[%s404 + $0x28] sm:$0xff] %v415
                %v417 = vld [vmem:[%s403 + $0x50] sm:$0xff]
                %418 = vst [vmem:[%s404 + $0x30] sm:$0xff] %v417
                %v419 = vld [vmem:[%s403 + $0x58] sm:$0xff]
                %420 = vst [vmem:[%s404 + $0x38] sm:$0xff] %v419
                %v421 = vld [vmem:[%s403 + $0x80] sm:$0xff]
                %422 = vst [vmem:[%s404 + $0x40] sm:$0xff] %v421
                %v423 = vld [vmem:[%s403 + $0x88] sm:$0xff]
                %424 = vst [vmem:[%s404 + $0x48] sm:$0xff] %v423
                %v425 = vld [vmem:[%s403 + $0x90] sm:$0xff]
                %426 = vst [vmem:[%s404 + $0x50] sm:$0xff] %v425
                %v427 = vld [vmem:[%s403 + $0x98] sm:$0xff]
                %428 = vst [vmem:[%s404 + $0x58] sm:$0xff] %v427
                %v429 = vld [vmem:[%s403 + $0xc0] sm:$0xff]
                %430 = vst [vmem:[%s404 + $0x60] sm:$0xff] %v429
                %v431 = vld [vmem:[%s403 + $0xc8] sm:$0xff]
                %432 = vst [vmem:[%s404 + $0x68] sm:$0xff] %v431
                %v433 = vld [vmem:[%s403 + $0xd0] sm:$0xff]
                %434 = vst [vmem:[%s404 + $0x70] sm:$0xff] %v433
                %v435 = vld [vmem:[%s403 + $0xd8] sm:$0xff]
                %436 = vst [vmem:[%s404 + $0x78] sm:$0xff] %v435
              $region81: #{tpu_custom_call.1} parent=75 // loop_footer
                %s402 = sadd.s32 1, %s398
              $region82: #{tpu_custom_call.1} parent=75 // loop_footer_branch
                %397 = sbr.rel target = $region78
              $region83: #{tpu_custom_call.1} parent=75 // loop_exit
                _
            $region76: #{tpu_custom_call.1} parent=71 // pred_fallthru
              _
            // Predicated region
            $region84: #{tpu_custom_call.1} parent=71 // pred_check
              _
            $region85: #{tpu_custom_call.1} parent=71 // pred_check_branch
              %438 = sbr.rel target = $region87
            $region86: #{tpu_custom_call.1} parent=71 // pred_region
              _
            $region87: #{tpu_custom_call.1} parent=71 // pred_fallthru
              _
          $region72: #{tpu_custom_call.1} parent=67 // pred_fallthru
            _
          %439 = vnop
        $region68: #{tpu_custom_call.1} parent=63 // pred_fallthru
          _
      $region64: #{tpu_custom_call.1} parent=5 // pred_fallthru
        _
      %p440 = scmp.le.s32.totalorder 1, %s24
      %p441 = scmp.lt.s32.totalorder %s24, 3
      %p442 = pnand %p440, %p441
      %p443 = pneg %p442
      // Predicated region
      $region88: #{tpu_custom_call.1} parent=5 // pred_check
        _
      $region89: #{tpu_custom_call.1} parent=5 // pred_check_branch
        %445 = sbr.rel (%p442) target = $region91
      $region90: #{tpu_custom_call.1} parent=5 // pred_region
        %s446 = ssub.s32 %s24, 1
        %s447 = sand.u32 %s37, 1
        %s448 = sand.u32 %s37, 1
        %s449 = smul.addr %s448, 128
        %s450 = scalar_lea.vmem [#allocation4], %s449
        // Predicated region
        $region92: #{tpu_custom_call.1} parent=90 // pred_check
          %p451 = pneg %p50
        $region93: #{tpu_custom_call.1} parent=90 // pred_check_branch
          %453 = sbr.rel (%p451) target = $region95
        $region94: #{tpu_custom_call.1} parent=90 // pred_region
          _
        $region95: #{tpu_custom_call.1} parent=90 // pred_fallthru
          _
        %s454 = sand.u32 %s37, 1
        %s455 = sand.u32 %s37, 1
        %s456 = smul.addr %s455, 128
        %s457 = scalar_lea.vmem [#allocation4], %s456
        %p458 = pneg %p50
        %p459 = pneg %p47
        %p460 = pneg %p71
        %p461 = pneg %p68
        %p462 = pneg %p92
        %p463 = pneg %p89
        %p464 = pneg %p113
        %p465 = pneg %p110
        %p466 = pneg %p134
        %p467 = pneg %p131
        %p468 = pneg %p155
        %p469 = pneg %p152
        %p470 = pneg %p176
        %p471 = pneg %p173
        %p472 = pneg %p197
        %p473 = pneg %p194
        %p474 = pneg %p218
        %p475 = pneg %p215
        %p476 = pneg %p239
        %p477 = pneg %p236
        %p478 = pneg %p260
        %p479 = pneg %p257
        %p480 = pneg %p281
        %p481 = pneg %p278
        %p482 = pneg %p302
        %p483 = pneg %p299
        %p484 = pneg %p328
        %p485 = pneg %p325
        %s486 = sand.u32 %s315, 1
        %s487 = scalar_lea.sflag [#allocation6], %s486
        %s488 = sand.u32 %s315, 1
        %s489 = smul.addr %s488, 128
        %s490 = scalar_lea.vmem [#allocation5], %s489
        %s491 = smul.u32 4, %s29
        %s492 = smul.u32 4, %s29
        %v494 = vld [vmem:[%s450] sm:$0xff]
        %v495 = vld [vmem:[%s450 + $0x8] sm:$0xff]
        %v496 = vld [vmem:[%s450 + $0x10] sm:$0xff]
        %v497 = vld [vmem:[%s450 + $0x18] sm:$0xff]
        %v498 = vld [vmem:[%s450 + $0x20] sm:$0xff]
        %v499 = vld [vmem:[%s450 + $0x28] sm:$0xff]
        %v500 = vld [vmem:[%s450 + $0x30] sm:$0xff]
        %v501 = vld [vmem:[%s450 + $0x38] sm:$0xff]
        %v502 = vld [vmem:[%s450 + $0x40] sm:$0xff]
        %v503 = vld [vmem:[%s450 + $0x48] sm:$0xff]
        %v504 = vld [vmem:[%s450 + $0x50] sm:$0xff]
        %v505 = vld [vmem:[%s450 + $0x58] sm:$0xff]
        %v506 = vld [vmem:[%s450 + $0x60] sm:$0xff]
        %v507 = vld [vmem:[%s450 + $0x68] sm:$0xff]
        %v508 = vld [vmem:[%s450 + $0x70] sm:$0xff]
        %v509 = vld [vmem:[%s450 + $0x78] sm:$0xff]
        %v510 = vld [vmem:[%s1] sm:$0xf]
        %v511 = vld [vmem:[%s1 + $0x4] sm:$0xf]
        %v512 = vld [vmem:[%s1 + $0x8] sm:$0xf]
        %v513 = vld [vmem:[%s1 + $0xc] sm:$0xf]
        %v514 = vld [vmem:[%s1 + $0x10] sm:$0xf]
        %v515 = vld [vmem:[%s1 + $0x14] sm:$0xf]
        %v516 = vld [vmem:[%s1 + $0x18] sm:$0xf]
        %v517 = vld [vmem:[%s1 + $0x1c] sm:$0xf]
        %v518 = vpack.c.bf16 %v498, %v494
        %v519 = vpack.c.bf16 %v499, %v495
        %v520 = vpack.c.bf16 %v500, %v496
        %v521 = vpack.c.bf16 %v501, %v497
        %v522 = vpack.c.bf16 %v506, %v502
        %v523 = vpack.c.bf16 %v507, %v503
        %v524 = vpack.c.bf16 %v508, %v504
        %v525 = vpack.c.bf16 %v509, %v505
        %v526 = vld [vmem:[%s2] sm:$0xff]
        %v527 = vld [vmem:[%s2 + $0x8] sm:$0xff]
        %v528 = vld [vmem:[%s2 + $0x10] sm:$0xff]
        %v529 = vld [vmem:[%s2 + $0x18] sm:$0xff]
        %v530 = vld [vmem:[%s2 + $0x20] sm:$0xff]
        %v531 = vld [vmem:[%s2 + $0x28] sm:$0xff]
        %v532 = vld [vmem:[%s2 + $0x30] sm:$0xff]
        %v533 = vld [vmem:[%s2 + $0x38] sm:$0xff]
        %535 = vset.pattern.permute.xlu0 0
        %536 = vperm.xlu0 %535, %v526
        %v537 = vpop.permute.xlu0 %536
        %540 = vset.pattern.permute.xlu0 0
        %541 = vperm.xlu0 %540, %v527
        %v542 = vpop.permute.xlu0 %541
        %545 = vset.pattern.permute.xlu0 0
        %546 = vperm.xlu0 %545, %v528
        %v547 = vpop.permute.xlu0 %546
        %550 = vset.pattern.permute.xlu0 0
        %551 = vperm.xlu0 %550, %v529
        %v552 = vpop.permute.xlu0 %551
        %555 = vset.pattern.permute.xlu0 0
        %556 = vperm.xlu0 %555, %v530
        %v557 = vpop.permute.xlu0 %556
        %560 = vset.pattern.permute.xlu0 0
        %561 = vperm.xlu0 %560, %v531
        %v562 = vpop.permute.xlu0 %561
        %565 = vset.pattern.permute.xlu0 0
        %566 = vperm.xlu0 %565, %v532
        %v567 = vpop.permute.xlu0 %566
        %570 = vset.pattern.permute.xlu0 0
        %571 = vperm.xlu0 %570, %v533
        %v572 = vpop.permute.xlu0 %571
        %v582 = vunpack.c.l.b16 %v510
        %v583 = vunpack.c.l.b16 %v511
        %v584 = vunpack.c.l.b16 %v512
        %v585 = vunpack.c.l.b16 %v513
        %v586 = vunpack.c.l.b16 %v514
        %v587 = vunpack.c.l.b16 %v515
        %v588 = vunpack.c.l.b16 %v516
        %v589 = vunpack.c.l.b16 %v517
        %v590 = vpack.c.b16 %v583, %v582
        %v591 = vpack.c.b16 %v585, %v584
        %v592 = vpack.c.b16 %v587, %v586
        %v593 = vpack.c.b16 %v589, %v588
        %vm594 = vcmask 261120
        %v596 = vsel %vm594, %v590, 0
        %v599 = vsel %vm594, %v591, 0
        %v602 = vsel %vm594, %v592, 0
        %v605 = vsel %vm594, %v593, 0
        %607 = vmatprep.subr.bf16.mxu0 0
        %608 = vmatpush1.bf16.msra.mxu0 0
        %609 = vmatprep.subr.bf16.mxu0 0
        %610 = vmatpush1.bf16.msra.mxu0 0
        %611 = vmatprep.subr.bf16.mxu0 0
        %612 = vmatpush1.bf16.msra.mxu0 0
        %613 = vmatprep.subr.bf16.mxu0 0
        %614 = vmatpush1.bf16.msra.mxu0 0
        %615 = vmatprep.subr.bf16.mxu0 0
        %616 = vmatpush1.bf16.msra.mxu0 0
        %617 = vmatprep.subr.bf16.mxu0 0
        %618 = vmatpush1.bf16.msra.mxu0 0
        %619 = vmatprep.subr.bf16.mxu0 %v523
        %620 = vmatpush1.bf16.msra.mxu0 %v522
        %621 = vmatprep.subr.bf16.mxu0 %v519
        %622 = vmatpush1.bf16.msra.mxu0 %v518
        %623 = vmatprep.subr.bf16.mxu0 0
        %624 = vmatpush2.bf16.msra.mxu0 0
        %625 = vmatprep.subr.bf16.mxu0 0
        %626 = vmatpush2.bf16.msra.mxu0 0
        %627 = vmatprep.subr.bf16.mxu0 0
        %628 = vmatpush2.bf16.msra.mxu0 0
        %629 = vmatprep.subr.bf16.mxu0 0
        %630 = vmatpush2.bf16.msra.mxu0 0
        %631 = vmatprep.subr.bf16.mxu0 0
        %632 = vmatpush2.bf16.msra.mxu0 0
        %633 = vmatprep.subr.bf16.mxu0 0
        %634 = vmatpush2.bf16.msra.mxu0 0
        %635 = vmatprep.subr.bf16.mxu0 0
        %636 = vmatpush2.bf16.msra.mxu0 0
        %637 = vmatprep.subr.bf16.mxu0 0
        %638 = vmatpush2.bf16.msra.mxu0 0
        %639 = vmatprep.mubr.bf16.mxu0 0
        %640 = vmatmul.mubr.bf16.gmra.mxu0 %v596
        %v641 = vpop.f32.mrf.mxu0
        %v642 = vadd.f32 %v537, %v641
        %v643 = vpop.f32.mrf.mxu0
        %v644 = vadd.f32 %v537, %v643
        %v645 = vpop.f32.mrf.mxu0
        %v646 = vadd.f32 %v542, %v645
        %v647 = vpop.f32.mrf.mxu0
        %v648 = vadd.f32 %v542, %v647
        %649 = vmatprep.mubr.bf16.mxu0 0
        %650 = vmatmul.mubr.bf16.gmra.mxu0 %v599
        %v651 = vpop.f32.mrf.mxu0
        %v652 = vadd.f32 %v547, %v651
        %v653 = vpop.f32.mrf.mxu0
        %v654 = vadd.f32 %v547, %v653
        %v655 = vpop.f32.mrf.mxu0
        %v656 = vadd.f32 %v552, %v655
        %v657 = vpop.f32.mrf.mxu0
        %v658 = vadd.f32 %v552, %v657
        %659 = vmatprep.mubr.bf16.mxu0 0
        %660 = vmatmul.mubr.bf16.gmra.mxu0 %v602
        %v661 = vpop.f32.mrf.mxu0
        %v662 = vadd.f32 %v557, %v661
        %v663 = vpop.f32.mrf.mxu0
        %v664 = vadd.f32 %v557, %v663
        %v665 = vpop.f32.mrf.mxu0
        %v666 = vadd.f32 %v562, %v665
        %v667 = vpop.f32.mrf.mxu0
        %v668 = vadd.f32 %v562, %v667
        %669 = vmatprep.mubr.bf16.mxu0 0
        %670 = vmatmul.mubr.bf16.gmra.mxu0 %v605
        %v671 = vpop.f32.mrf.mxu0
        %v672 = vadd.f32 %v567, %v671
        %v673 = vpop.f32.mrf.mxu0
        %v674 = vadd.f32 %v567, %v673
        %v675 = vpop.f32.mrf.mxu0
        %v676 = vadd.f32 %v572, %v675
        %v677 = vpop.f32.mrf.mxu0
        %v678 = vadd.f32 %v572, %v677
        %679 = vdwg.mxu0
        %680 = vmatprep.subr.bf16.mxu0 0
        %681 = vmatpush1.bf16.msra.mxu0 0
        %682 = vmatprep.subr.bf16.mxu0 0
        %683 = vmatpush1.bf16.msra.mxu0 0
        %684 = vmatprep.subr.bf16.mxu0 0
        %685 = vmatpush1.bf16.msra.mxu0 0
        %686 = vmatprep.subr.bf16.mxu0 0
        %687 = vmatpush1.bf16.msra.mxu0 0
        %688 = vmatprep.subr.bf16.mxu0 0
        %689 = vmatpush1.bf16.msra.mxu0 0
        %690 = vmatprep.subr.bf16.mxu0 0
        %691 = vmatpush1.bf16.msra.mxu0 0
        %692 = vmatprep.subr.bf16.mxu0 %v525
        %693 = vmatpush1.bf16.msra.mxu0 %v524
        %694 = vmatprep.subr.bf16.mxu0 %v521
        %695 = vmatpush1.bf16.msra.mxu0 %v520
        %696 = vmatprep.subr.bf16.mxu0 0
        %697 = vmatpush2.bf16.msra.mxu0 0
        %698 = vmatprep.subr.bf16.mxu0 0
        %699 = vmatpush2.bf16.msra.mxu0 0
        %700 = vmatprep.subr.bf16.mxu0 0
        %701 = vmatpush2.bf16.msra.mxu0 0
        %702 = vmatprep.subr.bf16.mxu0 0
        %703 = vmatpush2.bf16.msra.mxu0 0
        %704 = vmatprep.subr.bf16.mxu0 0
        %705 = vmatpush2.bf16.msra.mxu0 0
        %706 = vmatprep.subr.bf16.mxu0 0
        %707 = vmatpush2.bf16.msra.mxu0 0
        %708 = vmatprep.subr.bf16.mxu0 0
        %709 = vmatpush2.bf16.msra.mxu0 0
        %710 = vmatprep.subr.bf16.mxu0 0
        %711 = vmatpush2.bf16.msra.mxu0 0
        %712 = vmatprep.mubr.bf16.mxu0 0
        %713 = vmatmul.mubr.bf16.gmra.mxu0 %v596
        %v714 = vpop.f32.mrf.mxu0
        %v715 = vadd.f32 %v537, %v714
        %v716 = vpop.f32.mrf.mxu0
        %v717 = vadd.f32 %v537, %v716
        %v718 = vpop.f32.mrf.mxu0
        %v719 = vadd.f32 %v542, %v718
        %v720 = vpop.f32.mrf.mxu0
        %v721 = vadd.f32 %v542, %v720
        %722 = vmatprep.mubr.bf16.mxu0 0
        %723 = vmatmul.mubr.bf16.gmra.mxu0 %v599
        %v724 = vpop.f32.mrf.mxu0
        %v725 = vadd.f32 %v547, %v724
        %v726 = vpop.f32.mrf.mxu0
        %v727 = vadd.f32 %v547, %v726
        %v728 = vpop.f32.mrf.mxu0
        %v729 = vadd.f32 %v552, %v728
        %v730 = vpop.f32.mrf.mxu0
        %v731 = vadd.f32 %v552, %v730
        %732 = vmatprep.mubr.bf16.mxu0 0
        %733 = vmatmul.mubr.bf16.gmra.mxu0 %v602
        %v734 = vpop.f32.mrf.mxu0
        %v735 = vadd.f32 %v557, %v734
        %v736 = vpop.f32.mrf.mxu0
        %v737 = vadd.f32 %v557, %v736
        %v738 = vpop.f32.mrf.mxu0
        %v739 = vadd.f32 %v562, %v738
        %v740 = vpop.f32.mrf.mxu0
        %v741 = vadd.f32 %v562, %v740
        %742 = vmatprep.mubr.bf16.mxu0 0
        %743 = vmatmul.mubr.bf16.gmra.mxu0 %v605
        %v744 = vpop.f32.mrf.mxu0
        %v745 = vadd.f32 %v567, %v744
        %v746 = vpop.f32.mrf.mxu0
        %v747 = vadd.f32 %v567, %v746
        %v748 = vpop.f32.mrf.mxu0
        %v749 = vadd.f32 %v572, %v748
        %v750 = vpop.f32.mrf.mxu0
        %v751 = vadd.f32 %v572, %v750
        %752 = vdwg.mxu0
        %s753 = sld [smem:[#allocation2]]
        %vm754 = vcmp.gt.f32.partialorder %v642, 0.0
        %vm755 = vcmp.gt.f32.partialorder %v644, 0.0
        %vm756 = vcmp.gt.f32.partialorder %v715, 0.0
        %vm757 = vcmp.gt.f32.partialorder %v717, 0.0
        %vm758 = vcmp.gt.f32.partialorder %v646, 0.0
        %vm759 = vcmp.gt.f32.partialorder %v648, 0.0
        %vm760 = vcmp.gt.f32.partialorder %v719, 0.0
        %vm761 = vcmp.gt.f32.partialorder %v721, 0.0
        %vm762 = vcmp.gt.f32.partialorder %v652, 0.0
        %vm763 = vcmp.gt.f32.partialorder %v654, 0.0
        %vm764 = vcmp.gt.f32.partialorder %v725, 0.0
        %vm765 = vcmp.gt.f32.partialorder %v727, 0.0
        %vm766 = vcmp.gt.f32.partialorder %v656, 0.0
        %vm767 = vcmp.gt.f32.partialorder %v658, 0.0
        %vm768 = vcmp.gt.f32.partialorder %v729, 0.0
        %vm769 = vcmp.gt.f32.partialorder %v731, 0.0
        %vm770 = vcmp.gt.f32.partialorder %v662, 0.0
        %vm771 = vcmp.gt.f32.partialorder %v664, 0.0
        %vm772 = vcmp.gt.f32.partialorder %v735, 0.0
        %vm773 = vcmp.gt.f32.partialorder %v737, 0.0
        %vm774 = vcmp.gt.f32.partialorder %v666, 0.0
        %vm775 = vcmp.gt.f32.partialorder %v668, 0.0
        %vm776 = vcmp.gt.f32.partialorder %v739, 0.0
        %vm777 = vcmp.gt.f32.partialorder %v741, 0.0
        %vm778 = vcmp.gt.f32.partialorder %v672, 0.0
        %vm779 = vcmp.gt.f32.partialorder %v674, 0.0
        %vm780 = vcmp.gt.f32.partialorder %v745, 0.0
        %vm781 = vcmp.gt.f32.partialorder %v747, 0.0
        %vm782 = vcmp.gt.f32.partialorder %v676, 0.0
        %vm783 = vcmp.gt.f32.partialorder %v678, 0.0
        %vm784 = vcmp.gt.f32.partialorder %v749, 0.0
        %vm785 = vcmp.gt.f32.partialorder %v751, 0.0
        %v786 = vstv %s753
        %v787 = vmul.f32 %v786, %v642
        %v788 = vmul.f32 %v786, %v644
        %v789 = vmul.f32 %v786, %v715
        %v790 = vmul.f32 %v786, %v717
        %v791 = vmul.f32 %v786, %v646
        %v792 = vmul.f32 %v786, %v648
        %v793 = vmul.f32 %v786, %v719
        %v794 = vmul.f32 %v786, %v721
        %v795 = vmul.f32 %v786, %v652
        %v796 = vmul.f32 %v786, %v654
        %v797 = vmul.f32 %v786, %v725
        %v798 = vmul.f32 %v786, %v727
        %v799 = vmul.f32 %v786, %v656
        %v800 = vmul.f32 %v786, %v658
        %v801 = vmul.f32 %v786, %v729
        %v802 = vmul.f32 %v786, %v731
        %v803 = vmul.f32 %v786, %v662
        %v804 = vmul.f32 %v786, %v664
        %v805 = vmul.f32 %v786, %v735
        %v806 = vmul.f32 %v786, %v737
        %v807 = vmul.f32 %v786, %v666
        %v808 = vmul.f32 %v786, %v668
        %v809 = vmul.f32 %v786, %v739
        %v810 = vmul.f32 %v786, %v741
        %v811 = vmul.f32 %v786, %v672
        %v812 = vmul.f32 %v786, %v674
        %v813 = vmul.f32 %v786, %v745
        %v814 = vmul.f32 %v786, %v747
        %v815 = vmul.f32 %v786, %v676
        %v816 = vmul.f32 %v786, %v678
        %v817 = vmul.f32 %v786, %v749
        %v818 = vmul.f32 %v786, %v751
        %v819 = vsel %vm754, %v642, %v787
        %v820 = vsel %vm755, %v644, %v788
        %v821 = vsel %vm756, %v715, %v789
        %v822 = vsel %vm757, %v717, %v790
        %v823 = vsel %vm758, %v646, %v791
        %v824 = vsel %vm759, %v648, %v792
        %v825 = vsel %vm760, %v719, %v793
        %v826 = vsel %vm761, %v721, %v794
        %v827 = vsel %vm762, %v652, %v795
        %v828 = vsel %vm763, %v654, %v796
        %v829 = vsel %vm764, %v725, %v797
        %v830 = vsel %vm765, %v727, %v798
        %v831 = vsel %vm766, %v656, %v799
        %v832 = vsel %vm767, %v658, %v800
        %v833 = vsel %vm768, %v729, %v801
        %v834 = vsel %vm769, %v731, %v802
        %v835 = vsel %vm770, %v662, %v803
        %v836 = vsel %vm771, %v664, %v804
        %v837 = vsel %vm772, %v735, %v805
        %v838 = vsel %vm773, %v737, %v806
        %v839 = vsel %vm774, %v666, %v807
        %v840 = vsel %vm775, %v668, %v808
        %v841 = vsel %vm776, %v739, %v809
        %v842 = vsel %vm777, %v741, %v810
        %v843 = vsel %vm778, %v672, %v811
        %v844 = vsel %vm779, %v674, %v812
        %v845 = vsel %vm780, %v745, %v813
        %v846 = vsel %vm781, %v747, %v814
        %v847 = vsel %vm782, %v676, %v815
        %v848 = vsel %vm783, %v678, %v816
        %v849 = vsel %vm784, %v749, %v817
        %v850 = vsel %vm785, %v751, %v818
        %v851 = vld [vmem:[%s4] sm:$0xff]
        %v852 = vld [vmem:[%s4 + $0x8] sm:$0xff]
        %v853 = vld [vmem:[%s4 + $0x10] sm:$0xff]
        %v854 = vld [vmem:[%s4 + $0x18] sm:$0xff]
        %v855 = vld [vmem:[%s4 + $0x20] sm:$0xff]
        %v856 = vld [vmem:[%s4 + $0x28] sm:$0xff]
        %v857 = vld [vmem:[%s4 + $0x30] sm:$0xff]
        %v858 = vld [vmem:[%s4 + $0x38] sm:$0xff]
        %v859 = vld [vmem:[%s5] sm:$0xff]
        %v860 = vld [vmem:[%s5 + $0x8] sm:$0xff]
        %v861 = vld [vmem:[%s5 + $0x10] sm:$0xff]
        %v862 = vld [vmem:[%s5 + $0x18] sm:$0xff]
        %v863 = vld [vmem:[%s5 + $0x20] sm:$0xff]
        %v864 = vld [vmem:[%s5 + $0x28] sm:$0xff]
        %v865 = vld [vmem:[%s5 + $0x30] sm:$0xff]
        %v866 = vld [vmem:[%s5 + $0x38] sm:$0xff]
        %v867 = vadd.f32 %v819, %v823
        %v868 = vadd.f32 %v867, %v827
        %v869 = vadd.f32 %v868, %v831
        %v870 = vadd.f32 %v869, %v835
        %v871 = vadd.f32 %v870, %v839
        %v872 = vadd.f32 %v871, %v843
        %v873 = vadd.f32 %v872, %v847
        %874 = vadd.xlane.f32.xlu0 %v873
        %v875 = vpop.xlane.xlu0 %874
        %v876 = vrot.slane %v875, 4
        %v877 = vadd.f32 %v875, %v876
        %v878 = vrot.slane %v877, 2
        %v879 = vadd.f32 %v877, %v878
        %v880 = vrot.slane %v879, 1
        %v881 = vadd.f32 %v879, %v880
        %s882 = vtos %v881
        %v883 = vrcp.pop 8192.0
        %s884 = vtos %v883
        %s885 = smul.f32 %s882, %s884
        %v886 = vmul.f32 %v819, %v819
        %v887 = vmul.f32 %v823, %v823
        %v888 = vmul.f32 %v827, %v827
        %v889 = vmul.f32 %v831, %v831
        %v890 = vmul.f32 %v835, %v835
        %v891 = vmul.f32 %v839, %v839
        %v892 = vmul.f32 %v843, %v843
        %v893 = vmul.f32 %v847, %v847
        %v894 = vadd.f32 %v886, %v887
        %v895 = vadd.f32 %v894, %v888
        %v896 = vadd.f32 %v895, %v889
        %v897 = vadd.f32 %v896, %v890
        %v898 = vadd.f32 %v897, %v891
        %v899 = vadd.f32 %v898, %v892
        %v900 = vadd.f32 %v899, %v893
        %901 = vadd.xlane.f32.xlu0 %v900
        %v902 = vpop.xlane.xlu0 %901
        %v903 = vrot.slane %v902, 4
        %v904 = vadd.f32 %v902, %v903
        %v905 = vrot.slane %v904, 2
        %v906 = vadd.f32 %v904, %v905
        %v907 = vrot.slane %v906, 1
        %v908 = vadd.f32 %v906, %v907
        %s909 = vtos %v908
        %v910 = vrcp.pop 8192.0
        %s911 = vtos %v910
        %s912 = smul.f32 %s909, %s911
        %s913 = smul.f32 %s885, %s885
        %s914 = ssub.f32 %s912, %s913
        %s915 = smax.f32 %s914, 0.0
        %s916 = sadd.f32 %s915, 1e-05
        %v917 = vstv %s916
        %v918 = vrsqrt.pop %v917
        %s919 = vtos %v918
        %v920 = vstv %s919
        %v921 = vmul.f32 %v851, %v920
        %v922 = vmul.f32 %v852, %v920
        %v923 = vmul.f32 %v853, %v920
        %v924 = vmul.f32 %v854, %v920
        %v925 = vmul.f32 %v855, %v920
        %v926 = vmul.f32 %v856, %v920
        %v927 = vmul.f32 %v857, %v920
        %v928 = vmul.f32 %v858, %v920
        %s929 = smul.f32 %s885, %s919
        %v930 = vstv %s929
        %v931 = vmul.f32 %v851, %v930
        %v932 = vmul.f32 %v852, %v930
        %v933 = vmul.f32 %v853, %v930
        %v934 = vmul.f32 %v854, %v930
        %v935 = vmul.f32 %v855, %v930
        %v936 = vmul.f32 %v856, %v930
        %v937 = vmul.f32 %v857, %v930
        %v938 = vmul.f32 %v858, %v930
        %v939 = vsub.f32 %v859, %v931
        %v940 = vsub.f32 %v860, %v932
        %v941 = vsub.f32 %v861, %v933
        %v942 = vsub.f32 %v862, %v934
        %v943 = vsub.f32 %v863, %v935
        %v944 = vsub.f32 %v864, %v936
        %v945 = vsub.f32 %v865, %v937
        %v946 = vsub.f32 %v866, %v938
        %948 = vset.pattern.permute.xlu0 0
        %949 = vperm.xlu0 %948, %v921
        %v950 = vpop.permute.xlu0 %949
        %953 = vset.pattern.permute.xlu0 0
        %954 = vperm.xlu0 %953, %v922
        %v955 = vpop.permute.xlu0 %954
        %958 = vset.pattern.permute.xlu0 0
        %959 = vperm.xlu0 %958, %v923
        %v960 = vpop.permute.xlu0 %959
        %963 = vset.pattern.permute.xlu0 0
        %964 = vperm.xlu0 %963, %v924
        %v965 = vpop.permute.xlu0 %964
        %968 = vset.pattern.permute.xlu0 0
        %969 = vperm.xlu0 %968, %v925
        %v970 = vpop.permute.xlu0 %969
        %973 = vset.pattern.permute.xlu0 0
        %974 = vperm.xlu0 %973, %v926
        %v975 = vpop.permute.xlu0 %974
        %978 = vset.pattern.permute.xlu0 0
        %979 = vperm.xlu0 %978, %v927
        %v980 = vpop.permute.xlu0 %979
        %983 = vset.pattern.permute.xlu0 0
        %984 = vperm.xlu0 %983, %v928
        %v985 = vpop.permute.xlu0 %984
        %v987 = vmul.f32 %v819, %v950
        %v988 = vmul.f32 %v823, %v955
        %v989 = vmul.f32 %v827, %v960
        %v990 = vmul.f32 %v831, %v965
        %v991 = vmul.f32 %v835, %v970
        %v992 = vmul.f32 %v839, %v975
        %v993 = vmul.f32 %v843, %v980
        %v994 = vmul.f32 %v847, %v985
        %996 = vset.pattern.permute.xlu0 0
        %997 = vperm.xlu0 %996, %v939
        %v998 = vpop.permute.xlu0 %997
        %1001 = vset.pattern.permute.xlu0 0
        %1002 = vperm.xlu0 %1001, %v940
        %v1003 = vpop.permute.xlu0 %1002
        %1006 = vset.pattern.permute.xlu0 0
        %1007 = vperm.xlu0 %1006, %v941
        %v1008 = vpop.permute.xlu0 %1007
        %1011 = vset.pattern.permute.xlu0 0
        %1012 = vperm.xlu0 %1011, %v942
        %v1013 = vpop.permute.xlu0 %1012
        %1016 = vset.pattern.permute.xlu0 0
        %1017 = vperm.xlu0 %1016, %v943
        %v1018 = vpop.permute.xlu0 %1017
        %1021 = vset.pattern.permute.xlu0 0
        %1022 = vperm.xlu0 %1021, %v944
        %v1023 = vpop.permute.xlu0 %1022
        %1026 = vset.pattern.permute.xlu0 0
        %1027 = vperm.xlu0 %1026, %v945
        %v1028 = vpop.permute.xlu0 %1027
        %1031 = vset.pattern.permute.xlu0 0
        %1032 = vperm.xlu0 %1031, %v946
        %v1033 = vpop.permute.xlu0 %1032
        %v1035 = vadd.f32 %v987, %v998
        %v1036 = vadd.f32 %v988, %v1003
        %v1037 = vadd.f32 %v989, %v1008
        %v1038 = vadd.f32 %v990, %v1013
        %v1039 = vadd.f32 %v991, %v1018
        %v1040 = vadd.f32 %v992, %v1023
        %v1041 = vadd.f32 %v993, %v1028
        %v1042 = vadd.f32 %v994, %v1033
        %v1043 = vadd.f32 %v820, %v824
        %v1044 = vadd.f32 %v1043, %v828
        %v1045 = vadd.f32 %v1044, %v832
        %v1046 = vadd.f32 %v1045, %v836
        %v1047 = vadd.f32 %v1046, %v840
        %v1048 = vadd.f32 %v1047, %v844
        %v1049 = vadd.f32 %v1048, %v848
        %1050 = vadd.xlane.f32.xlu0 %v1049
        %v1051 = vpop.xlane.xlu0 %1050
        %v1052 = vrot.slane %v1051, 4
        %v1053 = vadd.f32 %v1051, %v1052
        %v1054 = vrot.slane %v1053, 2
        %v1055 = vadd.f32 %v1053, %v1054
        %v1056 = vrot.slane %v1055, 1
        %v1057 = vadd.f32 %v1055, %v1056
        %s1058 = vtos %v1057
        %v1059 = vrcp.pop 8192.0
        %s1060 = vtos %v1059
        %s1061 = smul.f32 %s1058, %s1060
        %v1062 = vmul.f32 %v820, %v820
        %v1063 = vmul.f32 %v824, %v824
        %v1064 = vmul.f32 %v828, %v828
        %v1065 = vmul.f32 %v832, %v832
        %v1066 = vmul.f32 %v836, %v836
        %v1067 = vmul.f32 %v840, %v840
        %v1068 = vmul.f32 %v844, %v844
        %v1069 = vmul.f32 %v848, %v848
        %v1070 = vadd.f32 %v1062, %v1063
        %v1071 = vadd.f32 %v1070, %v1064
        %v1072 = vadd.f32 %v1071, %v1065
        %v1073 = vadd.f32 %v1072, %v1066
        %v1074 = vadd.f32 %v1073, %v1067
        %v1075 = vadd.f32 %v1074, %v1068
        %v1076 = vadd.f32 %v1075, %v1069
        %1077 = vadd.xlane.f32.xlu0 %v1076
        %v1078 = vpop.xlane.xlu0 %1077
        %v1079 = vrot.slane %v1078, 4
        %v1080 = vadd.f32 %v1078, %v1079
        %v1081 = vrot.slane %v1080, 2
        %v1082 = vadd.f32 %v1080, %v1081
        %v1083 = vrot.slane %v1082, 1
        %v1084 = vadd.f32 %v1082, %v1083
        %s1085 = vtos %v1084
        %v1086 = vrcp.pop 8192.0
        %s1087 = vtos %v1086
        %s1088 = smul.f32 %s1085, %s1087
        %s1089 = smul.f32 %s1061, %s1061
        %s1090 = ssub.f32 %s1088, %s1089
        %s1091 = smax.f32 %s1090, 0.0
        %s1092 = sadd.f32 %s1091, 1e-05
        %v1093 = vstv %s1092
        %v1094 = vrsqrt.pop %v1093
        %s1095 = vtos %v1094
        %v1096 = vstv %s1095
        %v1097 = vmul.f32 %v851, %v1096
        %v1098 = vmul.f32 %v852, %v1096
        %v1099 = vmul.f32 %v853, %v1096
        %v1100 = vmul.f32 %v854, %v1096
        %v1101 = vmul.f32 %v855, %v1096
        %v1102 = vmul.f32 %v856, %v1096
        %v1103 = vmul.f32 %v857, %v1096
        %v1104 = vmul.f32 %v858, %v1096
        %s1105 = smul.f32 %s1061, %s1095
        %v1106 = vstv %s1105
        %v1107 = vmul.f32 %v851, %v1106
        %v1108 = vmul.f32 %v852, %v1106
        %v1109 = vmul.f32 %v853, %v1106
        %v1110 = vmul.f32 %v854, %v1106
        %v1111 = vmul.f32 %v855, %v1106
        %v1112 = vmul.f32 %v856, %v1106
        %v1113 = vmul.f32 %v857, %v1106
        %v1114 = vmul.f32 %v858, %v1106
        %v1115 = vsub.f32 %v859, %v1107
        %v1116 = vsub.f32 %v860, %v1108
        %v1117 = vsub.f32 %v861, %v1109
        %v1118 = vsub.f32 %v862, %v1110
        %v1119 = vsub.f32 %v863, %v1111
        %v1120 = vsub.f32 %v864, %v1112
        %v1121 = vsub.f32 %v865, %v1113
        %v1122 = vsub.f32 %v866, %v1114
        %1124 = vset.pattern.permute.xlu0 0
        %1125 = vperm.xlu0 %1124, %v1097
        %v1126 = vpop.permute.xlu0 %1125
        %1129 = vset.pattern.permute.xlu0 0
        %1130 = vperm.xlu0 %1129, %v1098
        %v1131 = vpop.permute.xlu0 %1130
        %1134 = vset.pattern.permute.xlu0 0
        %1135 = vperm.xlu0 %1134, %v1099
        %v1136 = vpop.permute.xlu0 %1135
        %1139 = vset.pattern.permute.xlu0 0
        %1140 = vperm.xlu0 %1139, %v1100
        %v1141 = vpop.permute.xlu0 %1140
        %1144 = vset.pattern.permute.xlu0 0
        %1145 = vperm.xlu0 %1144, %v1101
        %v1146 = vpop.permute.xlu0 %1145
        %1149 = vset.pattern.permute.xlu0 0
        %1150 = vperm.xlu0 %1149, %v1102
        %v1151 = vpop.permute.xlu0 %1150
        %1154 = vset.pattern.permute.xlu0 0
        %1155 = vperm.xlu0 %1154, %v1103
        %v1156 = vpop.permute.xlu0 %1155
        %1159 = vset.pattern.permute.xlu0 0
        %1160 = vperm.xlu0 %1159, %v1104
        %v1161 = vpop.permute.xlu0 %1160
        %v1163 = vmul.f32 %v820, %v1126
        %v1164 = vmul.f32 %v824, %v1131
        %v1165 = vmul.f32 %v828, %v1136
        %v1166 = vmul.f32 %v832, %v1141
        %v1167 = vmul.f32 %v836, %v1146
        %v1168 = vmul.f32 %v840, %v1151
        %v1169 = vmul.f32 %v844, %v1156
        %v1170 = vmul.f32 %v848, %v1161
        %1172 = vset.pattern.permute.xlu0 0
        %1173 = vperm.xlu0 %1172, %v1115
        %v1174 = vpop.permute.xlu0 %1173
        %1177 = vset.pattern.permute.xlu0 0
        %1178 = vperm.xlu0 %1177, %v1116
        %v1179 = vpop.permute.xlu0 %1178
        %1182 = vset.pattern.permute.xlu0 0
        %1183 = vperm.xlu0 %1182, %v1117
        %v1184 = vpop.permute.xlu0 %1183
        %1187 = vset.pattern.permute.xlu0 0
        %1188 = vperm.xlu0 %1187, %v1118
        %v1189 = vpop.permute.xlu0 %1188
        %1192 = vset.pattern.permute.xlu0 0
        %1193 = vperm.xlu0 %1192, %v1119
        %v1194 = vpop.permute.xlu0 %1193
        %1197 = vset.pattern.permute.xlu0 0
        %1198 = vperm.xlu0 %1197, %v1120
        %v1199 = vpop.permute.xlu0 %1198
        %1202 = vset.pattern.permute.xlu0 0
        %1203 = vperm.xlu0 %1202, %v1121
        %v1204 = vpop.permute.xlu0 %1203
        %1207 = vset.pattern.permute.xlu0 0
        %1208 = vperm.xlu0 %1207, %v1122
        %v1209 = vpop.permute.xlu0 %1208
        %v1211 = vadd.f32 %v1163, %v1174
        %v1212 = vadd.f32 %v1164, %v1179
        %v1213 = vadd.f32 %v1165, %v1184
        %v1214 = vadd.f32 %v1166, %v1189
        %v1215 = vadd.f32 %v1167, %v1194
        %v1216 = vadd.f32 %v1168, %v1199
        %v1217 = vadd.f32 %v1169, %v1204
        %v1218 = vadd.f32 %v1170, %v1209
        %v1219 = vadd.f32 %v821, %v825
        %v1220 = vadd.f32 %v1219, %v829
        %v1221 = vadd.f32 %v1220, %v833
        %v1222 = vadd.f32 %v1221, %v837
        %v1223 = vadd.f32 %v1222, %v841
        %v1224 = vadd.f32 %v1223, %v845
        %v1225 = vadd.f32 %v1224, %v849
        %1226 = vadd.xlane.f32.xlu0 %v1225
        %v1227 = vpop.xlane.xlu0 %1226
        %v1228 = vrot.slane %v1227, 4
        %v1229 = vadd.f32 %v1227, %v1228
        %v1230 = vrot.slane %v1229, 2
        %v1231 = vadd.f32 %v1229, %v1230
        %v1232 = vrot.slane %v1231, 1
        %v1233 = vadd.f32 %v1231, %v1232
        %s1234 = vtos %v1233
        %v1235 = vrcp.pop 8192.0
        %s1236 = vtos %v1235
        %s1237 = smul.f32 %s1234, %s1236
        %v1238 = vmul.f32 %v821, %v821
        %v1239 = vmul.f32 %v825, %v825
        %v1240 = vmul.f32 %v829, %v829
        %v1241 = vmul.f32 %v833, %v833
        %v1242 = vmul.f32 %v837, %v837
        %v1243 = vmul.f32 %v841, %v841
        %v1244 = vmul.f32 %v845, %v845
        %v1245 = vmul.f32 %v849, %v849
        %v1246 = vadd.f32 %v1238, %v1239
        %v1247 = vadd.f32 %v1246, %v1240
        %v1248 = vadd.f32 %v1247, %v1241
        %v1249 = vadd.f32 %v1248, %v1242
        %v1250 = vadd.f32 %v1249, %v1243
        %v1251 = vadd.f32 %v1250, %v1244
        %v1252 = vadd.f32 %v1251, %v1245
        %1253 = vadd.xlane.f32.xlu0 %v1252
        %v1254 = vpop.xlane.xlu0 %1253
        %v1255 = vrot.slane %v1254, 4
        %v1256 = vadd.f32 %v1254, %v1255
        %v1257 = vrot.slane %v1256, 2
        %v1258 = vadd.f32 %v1256, %v1257
        %v1259 = vrot.slane %v1258, 1
        %v1260 = vadd.f32 %v1258, %v1259
        %s1261 = vtos %v1260
        %v1262 = vrcp.pop 8192.0
        %s1263 = vtos %v1262
        %s1264 = smul.f32 %s1261, %s1263
        %s1265 = smul.f32 %s1237, %s1237
        %s1266 = ssub.f32 %s1264, %s1265
        %s1267 = smax.f32 %s1266, 0.0
        %s1268 = sadd.f32 %s1267, 1e-05
        %v1269 = vstv %s1268
        %v1270 = vrsqrt.pop %v1269
        %s1271 = vtos %v1270
        %v1272 = vstv %s1271
        %v1273 = vmul.f32 %v851, %v1272
        %v1274 = vmul.f32 %v852, %v1272
        %v1275 = vmul.f32 %v853, %v1272
        %v1276 = vmul.f32 %v854, %v1272
        %v1277 = vmul.f32 %v855, %v1272
        %v1278 = vmul.f32 %v856, %v1272
        %v1279 = vmul.f32 %v857, %v1272
        %v1280 = vmul.f32 %v858, %v1272
        %s1281 = smul.f32 %s1237, %s1271
        %v1282 = vstv %s1281
        %v1283 = vmul.f32 %v851, %v1282
        %v1284 = vmul.f32 %v852, %v1282
        %v1285 = vmul.f32 %v853, %v1282
        %v1286 = vmul.f32 %v854, %v1282
        %v1287 = vmul.f32 %v855, %v1282
        %v1288 = vmul.f32 %v856, %v1282
        %v1289 = vmul.f32 %v857, %v1282
        %v1290 = vmul.f32 %v858, %v1282
        %v1291 = vsub.f32 %v859, %v1283
        %v1292 = vsub.f32 %v860, %v1284
        %v1293 = vsub.f32 %v861, %v1285
        %v1294 = vsub.f32 %v862, %v1286
        %v1295 = vsub.f32 %v863, %v1287
        %v1296 = vsub.f32 %v864, %v1288
        %v1297 = vsub.f32 %v865, %v1289
        %v1298 = vsub.f32 %v866, %v1290
        %1300 = vset.pattern.permute.xlu0 0
        %1301 = vperm.xlu0 %1300, %v1273
        %v1302 = vpop.permute.xlu0 %1301
        %1305 = vset.pattern.permute.xlu0 0
        %1306 = vperm.xlu0 %1305, %v1274
        %v1307 = vpop.permute.xlu0 %1306
        %1310 = vset.pattern.permute.xlu0 0
        %1311 = vperm.xlu0 %1310, %v1275
        %v1312 = vpop.permute.xlu0 %1311
        %1315 = vset.pattern.permute.xlu0 0
        %1316 = vperm.xlu0 %1315, %v1276
        %v1317 = vpop.permute.xlu0 %1316
        %1320 = vset.pattern.permute.xlu0 0
        %1321 = vperm.xlu0 %1320, %v1277
        %v1322 = vpop.permute.xlu0 %1321
        %1325 = vset.pattern.permute.xlu0 0
        %1326 = vperm.xlu0 %1325, %v1278
        %v1327 = vpop.permute.xlu0 %1326
        %1330 = vset.pattern.permute.xlu0 0
        %1331 = vperm.xlu0 %1330, %v1279
        %v1332 = vpop.permute.xlu0 %1331
        %1335 = vset.pattern.permute.xlu0 0
        %1336 = vperm.xlu0 %1335, %v1280
        %v1337 = vpop.permute.xlu0 %1336
        %v1339 = vmul.f32 %v821, %v1302
        %v1340 = vmul.f32 %v825, %v1307
        %v1341 = vmul.f32 %v829, %v1312
        %v1342 = vmul.f32 %v833, %v1317
        %v1343 = vmul.f32 %v837, %v1322
        %v1344 = vmul.f32 %v841, %v1327
        %v1345 = vmul.f32 %v845, %v1332
        %v1346 = vmul.f32 %v849, %v1337
        %1348 = vset.pattern.permute.xlu0 0
        %1349 = vperm.xlu0 %1348, %v1291
        %v1350 = vpop.permute.xlu0 %1349
        %1353 = vset.pattern.permute.xlu0 0
        %1354 = vperm.xlu0 %1353, %v1292
        %v1355 = vpop.permute.xlu0 %1354
        %1358 = vset.pattern.permute.xlu0 0
        %1359 = vperm.xlu0 %1358, %v1293
        %v1360 = vpop.permute.xlu0 %1359
        %1363 = vset.pattern.permute.xlu0 0
        %1364 = vperm.xlu0 %1363, %v1294
        %v1365 = vpop.permute.xlu0 %1364
        %1368 = vset.pattern.permute.xlu0 0
        %1369 = vperm.xlu0 %1368, %v1295
        %v1370 = vpop.permute.xlu0 %1369
        %1373 = vset.pattern.permute.xlu0 0
        %1374 = vperm.xlu0 %1373, %v1296
        %v1375 = vpop.permute.xlu0 %1374
        %1378 = vset.pattern.permute.xlu0 0
        %1379 = vperm.xlu0 %1378, %v1297
        %v1380 = vpop.permute.xlu0 %1379
        %1383 = vset.pattern.permute.xlu0 0
        %1384 = vperm.xlu0 %1383, %v1298
        %v1385 = vpop.permute.xlu0 %1384
        %v1387 = vadd.f32 %v1339, %v1350
        %v1388 = vadd.f32 %v1340, %v1355
        %v1389 = vadd.f32 %v1341, %v1360
        %v1390 = vadd.f32 %v1342, %v1365
        %v1391 = vadd.f32 %v1343, %v1370
        %v1392 = vadd.f32 %v1344, %v1375
        %v1393 = vadd.f32 %v1345, %v1380
        %v1394 = vadd.f32 %v1346, %v1385
        %v1395 = vadd.f32 %v822, %v826
        %v1396 = vadd.f32 %v1395, %v830
        %v1397 = vadd.f32 %v1396, %v834
        %v1398 = vadd.f32 %v1397, %v838
        %v1399 = vadd.f32 %v1398, %v842
        %v1400 = vadd.f32 %v1399, %v846
        %v1401 = vadd.f32 %v1400, %v850
        %1402 = vadd.xlane.f32.xlu0 %v1401
        %v1403 = vpop.xlane.xlu0 %1402
        %v1404 = vrot.slane %v1403, 4
        %v1405 = vadd.f32 %v1403, %v1404
        %v1406 = vrot.slane %v1405, 2
        %v1407 = vadd.f32 %v1405, %v1406
        %v1408 = vrot.slane %v1407, 1
        %v1409 = vadd.f32 %v1407, %v1408
        %s1410 = vtos %v1409
        %v1411 = vrcp.pop 8192.0
        %s1412 = vtos %v1411
        %s1413 = smul.f32 %s1410, %s1412
        %v1414 = vmul.f32 %v822, %v822
        %v1415 = vmul.f32 %v826, %v826
        %v1416 = vmul.f32 %v830, %v830
        %v1417 = vmul.f32 %v834, %v834
        %v1418 = vmul.f32 %v838, %v838
        %v1419 = vmul.f32 %v842, %v842
        %v1420 = vmul.f32 %v846, %v846
        %v1421 = vmul.f32 %v850, %v850
        %v1422 = vadd.f32 %v1414, %v1415
        %v1423 = vadd.f32 %v1422, %v1416
        %v1424 = vadd.f32 %v1423, %v1417
        %v1425 = vadd.f32 %v1424, %v1418
        %v1426 = vadd.f32 %v1425, %v1419
        %v1427 = vadd.f32 %v1426, %v1420
        %v1428 = vadd.f32 %v1427, %v1421
        %1429 = vadd.xlane.f32.xlu0 %v1428
        %v1430 = vpop.xlane.xlu0 %1429
        %v1431 = vrot.slane %v1430, 4
        %v1432 = vadd.f32 %v1430, %v1431
        %v1433 = vrot.slane %v1432, 2
        %v1434 = vadd.f32 %v1432, %v1433
        %v1435 = vrot.slane %v1434, 1
        %v1436 = vadd.f32 %v1434, %v1435
        %s1437 = vtos %v1436
        %v1438 = vrcp.pop 8192.0
        %s1439 = vtos %v1438
        %s1440 = smul.f32 %s1437, %s1439
        %s1441 = smul.f32 %s1413, %s1413
        %s1442 = ssub.f32 %s1440, %s1441
        %s1443 = smax.f32 %s1442, 0.0
        %s1444 = sadd.f32 %s1443, 1e-05
        %v1445 = vstv %s1444
        %v1446 = vrsqrt.pop %v1445
        %s1447 = vtos %v1446
        %v1448 = vstv %s1447
        %v1449 = vmul.f32 %v851, %v1448
        %v1450 = vmul.f32 %v852, %v1448
        %v1451 = vmul.f32 %v853, %v1448
        %v1452 = vmul.f32 %v854, %v1448
        %v1453 = vmul.f32 %v855, %v1448
        %v1454 = vmul.f32 %v856, %v1448
        %v1455 = vmul.f32 %v857, %v1448
        %v1456 = vmul.f32 %v858, %v1448
        %s1457 = smul.f32 %s1413, %s1447
        %v1458 = vstv %s1457
        %v1459 = vmul.f32 %v851, %v1458
        %v1460 = vmul.f32 %v852, %v1458
        %v1461 = vmul.f32 %v853, %v1458
        %v1462 = vmul.f32 %v854, %v1458
        %v1463 = vmul.f32 %v855, %v1458
        %v1464 = vmul.f32 %v856, %v1458
        %v1465 = vmul.f32 %v857, %v1458
        %v1466 = vmul.f32 %v858, %v1458
        %v1467 = vsub.f32 %v859, %v1459
        %v1468 = vsub.f32 %v860, %v1460
        %v1469 = vsub.f32 %v861, %v1461
        %v1470 = vsub.f32 %v862, %v1462
        %v1471 = vsub.f32 %v863, %v1463
        %v1472 = vsub.f32 %v864, %v1464
        %v1473 = vsub.f32 %v865, %v1465
        %v1474 = vsub.f32 %v866, %v1466
        %1476 = vset.pattern.permute.xlu0 0
        %1477 = vperm.xlu0 %1476, %v1449
        %v1478 = vpop.permute.xlu0 %1477
        %1481 = vset.pattern.permute.xlu0 0
        %1482 = vperm.xlu0 %1481, %v1450
        %v1483 = vpop.permute.xlu0 %1482
        %1486 = vset.pattern.permute.xlu0 0
        %1487 = vperm.xlu0 %1486, %v1451
        %v1488 = vpop.permute.xlu0 %1487
        %1491 = vset.pattern.permute.xlu0 0
        %1492 = vperm.xlu0 %1491, %v1452
        %v1493 = vpop.permute.xlu0 %1492
        %1496 = vset.pattern.permute.xlu0 0
        %1497 = vperm.xlu0 %1496, %v1453
        %v1498 = vpop.permute.xlu0 %1497
        %1501 = vset.pattern.permute.xlu0 0
        %1502 = vperm.xlu0 %1501, %v1454
        %v1503 = vpop.permute.xlu0 %1502
        %1506 = vset.pattern.permute.xlu0 0
        %1507 = vperm.xlu0 %1506, %v1455
        %v1508 = vpop.permute.xlu0 %1507
        %1511 = vset.pattern.permute.xlu0 0
        %1512 = vperm.xlu0 %1511, %v1456
        %v1513 = vpop.permute.xlu0 %1512
        %v1515 = vmul.f32 %v822, %v1478
        %v1516 = vmul.f32 %v826, %v1483
        %v1517 = vmul.f32 %v830, %v1488
        %v1518 = vmul.f32 %v834, %v1493
        %v1519 = vmul.f32 %v838, %v1498
        %v1520 = vmul.f32 %v842, %v1503
        %v1521 = vmul.f32 %v846, %v1508
        %v1522 = vmul.f32 %v850, %v1513
        %1524 = vset.pattern.permute.xlu0 0
        %1525 = vperm.xlu0 %1524, %v1467
        %v1526 = vpop.permute.xlu0 %1525
        %1529 = vset.pattern.permute.xlu0 0
        %1530 = vperm.xlu0 %1529, %v1468
        %v1531 = vpop.permute.xlu0 %1530
        %1534 = vset.pattern.permute.xlu0 0
        %1535 = vperm.xlu0 %1534, %v1469
        %v1536 = vpop.permute.xlu0 %1535
        %1539 = vset.pattern.permute.xlu0 0
        %1540 = vperm.xlu0 %1539, %v1470
        %v1541 = vpop.permute.xlu0 %1540
        %1544 = vset.pattern.permute.xlu0 0
        %1545 = vperm.xlu0 %1544, %v1471
        %v1546 = vpop.permute.xlu0 %1545
        %1549 = vset.pattern.permute.xlu0 0
        %1550 = vperm.xlu0 %1549, %v1472
        %v1551 = vpop.permute.xlu0 %1550
        %1554 = vset.pattern.permute.xlu0 0
        %1555 = vperm.xlu0 %1554, %v1473
        %v1556 = vpop.permute.xlu0 %1555
        %1559 = vset.pattern.permute.xlu0 0
        %1560 = vperm.xlu0 %1559, %v1474
        %v1561 = vpop.permute.xlu0 %1560
        %v1563 = vadd.f32 %v1515, %v1526
        %v1564 = vadd.f32 %v1516, %v1531
        %v1565 = vadd.f32 %v1517, %v1536
        %v1566 = vadd.f32 %v1518, %v1541
        %v1567 = vadd.f32 %v1519, %v1546
        %v1568 = vadd.f32 %v1520, %v1551
        %v1569 = vadd.f32 %v1521, %v1556
        %v1570 = vadd.f32 %v1522, %v1561
        %v1571 = vlaneseq
        %v1572 = vand.u32 %v1571, 127
        %v1573 = vadd.s32 %v1572, 128
        %v1574 = vadd.s32 %v1572, 256
        %v1575 = vadd.s32 %v1572, 384
        %v1576 = vand.u32 %v1572, 127
        %v1577 = vand.u32 %v1573, 127
        %v1578 = vand.u32 %v1574, 127
        %v1579 = vand.u32 %v1575, 127
        %vm1580 = vcmp.ne.s32.totalorder %v1576, 0
        %vm1581 = vcmp.ne.s32.totalorder %v1577, 0
        %vm1582 = vcmp.ne.s32.totalorder %v1578, 0
        %vm1583 = vcmp.ne.s32.totalorder %v1579, 0
        %v1584 = vsel %vm1580, 1, 0
        %v1585 = vsel %vm1581, 1, 0
        %v1586 = vsel %vm1582, 1, 0
        %v1587 = vsel %vm1583, 1, 0
        %v1588 = vcvt.s32.f32 %v1584
        %v1589 = vcvt.s32.f32 %v1585
        %v1590 = vcvt.s32.f32 %v1586
        %v1591 = vcvt.s32.f32 %v1587
        %vm1592 = vcmp.ne.s32.totalorder %v1576, 127
        %vm1593 = vcmp.ne.s32.totalorder %v1577, 127
        %vm1594 = vcmp.ne.s32.totalorder %v1578, 127
        %vm1595 = vcmp.ne.s32.totalorder %v1579, 127
        %v1596 = vsel %vm1592, 1, 0
        %v1597 = vsel %vm1593, 1, 0
        %v1598 = vsel %vm1594, 1, 0
        %v1599 = vsel %vm1595, 1, 0
        %v1600 = vcvt.s32.f32 %v1596
        %v1601 = vcvt.s32.f32 %v1597
        %v1602 = vcvt.s32.f32 %v1598
        %v1603 = vcvt.s32.f32 %v1599
        %1604 = vrot.lane.b32.xlu0 %v1035, 1
        %v1605 = vpop.permute.xlu0 %1604
        %1606 = vrot.lane.b32.xlu0 %v1036, 1
        %v1607 = vpop.permute.xlu0 %1606
        %1608 = vrot.lane.b32.xlu0 %v1037, 1
        %v1609 = vpop.permute.xlu0 %1608
        %1610 = vrot.lane.b32.xlu0 %v1038, 1
        %v1611 = vpop.permute.xlu0 %1610
        %1612 = vrot.lane.b32.xlu0 %v1039, 1
        %v1613 = vpop.permute.xlu0 %1612
        %1614 = vrot.lane.b32.xlu0 %v1040, 1
        %v1615 = vpop.permute.xlu0 %1614
        %1616 = vrot.lane.b32.xlu0 %v1041, 1
        %v1617 = vpop.permute.xlu0 %1616
        %1618 = vrot.lane.b32.xlu0 %v1042, 1
        %v1619 = vpop.permute.xlu0 %1618
        %1620 = vrot.lane.b32.xlu0 %v1211, 1
        %v1621 = vpop.permute.xlu0 %1620
        %1622 = vrot.lane.b32.xlu0 %v1212, 1
        %v1623 = vpop.permute.xlu0 %1622
        %1624 = vrot.lane.b32.xlu0 %v1213, 1
        %v1625 = vpop.permute.xlu0 %1624
        %1626 = vrot.lane.b32.xlu0 %v1214, 1
        %v1627 = vpop.permute.xlu0 %1626
        %1628 = vrot.lane.b32.xlu0 %v1215, 1
        %v1629 = vpop.permute.xlu0 %1628
        %1630 = vrot.lane.b32.xlu0 %v1216, 1
        %v1631 = vpop.permute.xlu0 %1630
        %1632 = vrot.lane.b32.xlu0 %v1217, 1
        %v1633 = vpop.permute.xlu0 %1632
        %1634 = vrot.lane.b32.xlu0 %v1218, 1
        %v1635 = vpop.permute.xlu0 %1634
        %1636 = vrot.lane.b32.xlu0 %v1387, 1
        %v1637 = vpop.permute.xlu0 %1636
        %1638 = vrot.lane.b32.xlu0 %v1388, 1
        %v1639 = vpop.permute.xlu0 %1638
        %1640 = vrot.lane.b32.xlu0 %v1389, 1
        %v1641 = vpop.permute.xlu0 %1640
        %1642 = vrot.lane.b32.xlu0 %v1390, 1
        %v1643 = vpop.permute.xlu0 %1642
        %1644 = vrot.lane.b32.xlu0 %v1391, 1
        %v1645 = vpop.permute.xlu0 %1644
        %1646 = vrot.lane.b32.xlu0 %v1392, 1
        %v1647 = vpop.permute.xlu0 %1646
        %1648 = vrot.lane.b32.xlu0 %v1393, 1
        %v1649 = vpop.permute.xlu0 %1648
        %1650 = vrot.lane.b32.xlu0 %v1394, 1
        %v1651 = vpop.permute.xlu0 %1650
        %1652 = vrot.lane.b32.xlu0 %v1563, 1
        %v1653 = vpop.permute.xlu0 %1652
        %1654 = vrot.lane.b32.xlu0 %v1564, 1
        %v1655 = vpop.permute.xlu0 %1654
        %1656 = vrot.lane.b32.xlu0 %v1565, 1
        %v1657 = vpop.permute.xlu0 %1656
        %1658 = vrot.lane.b32.xlu0 %v1566, 1
        %v1659 = vpop.permute.xlu0 %1658
        %1660 = vrot.lane.b32.xlu0 %v1567, 1
        %v1661 = vpop.permute.xlu0 %1660
        %1662 = vrot.lane.b32.xlu0 %v1568, 1
        %v1663 = vpop.permute.xlu0 %1662
        %1664 = vrot.lane.b32.xlu0 %v1569, 1
        %v1665 = vpop.permute.xlu0 %1664
        %1666 = vrot.lane.b32.xlu0 %v1570, 1
        %v1667 = vpop.permute.xlu0 %1666
        %vm1668 = vcmp.lt.s32.totalorder %v1572, 1
        %v1669 = vsel %vm1668, %v1637, %v1653
        %v1670 = vsel %vm1668, %v1639, %v1655
        %v1671 = vsel %vm1668, %v1641, %v1657
        %v1672 = vsel %vm1668, %v1643, %v1659
        %v1673 = vsel %vm1668, %v1645, %v1661
        %v1674 = vsel %vm1668, %v1647, %v1663
        %v1675 = vsel %vm1668, %v1649, %v1665
        %v1676 = vsel %vm1668, %v1651, %v1667
        %v1677 = vsel %vm1668, %v1621, %v1637
        %v1678 = vsel %vm1668, %v1623, %v1639
        %v1679 = vsel %vm1668, %v1625, %v1641
        %v1680 = vsel %vm1668, %v1627, %v1643
        %v1681 = vsel %vm1668, %v1629, %v1645
        %v1682 = vsel %vm1668, %v1631, %v1647
        %v1683 = vsel %vm1668, %v1633, %v1649
        %v1684 = vsel %vm1668, %v1635, %v1651
        %v1685 = vsel %vm1668, %v1605, %v1621
        %v1686 = vsel %vm1668, %v1607, %v1623
        %v1687 = vsel %vm1668, %v1609, %v1625
        %v1688 = vsel %vm1668, %v1611, %v1627
        %v1689 = vsel %vm1668, %v1613, %v1629
        %v1690 = vsel %vm1668, %v1615, %v1631
        %v1691 = vsel %vm1668, %v1617, %v1633
        %v1692 = vsel %vm1668, %v1619, %v1635
        %v1693 = vsel %vm1668, %v1653, %v1605
        %v1694 = vsel %vm1668, %v1655, %v1607
        %v1695 = vsel %vm1668, %v1657, %v1609
        %v1696 = vsel %vm1668, %v1659, %v1611
        %v1697 = vsel %vm1668, %v1661, %v1613
        %v1698 = vsel %vm1668, %v1663, %v1615
        %v1699 = vsel %vm1668, %v1665, %v1617
        %v1700 = vsel %vm1668, %v1667, %v1619
        %1701 = vrot.lane.b32.xlu0 %v1035, 127
        %v1702 = vpop.permute.xlu0 %1701
        %1703 = vrot.lane.b32.xlu0 %v1036, 127
        %v1704 = vpop.permute.xlu0 %1703
        %1705 = vrot.lane.b32.xlu0 %v1037, 127
        %v1706 = vpop.permute.xlu0 %1705
        %1707 = vrot.lane.b32.xlu0 %v1038, 127
        %v1708 = vpop.permute.xlu0 %1707
        %1709 = vrot.lane.b32.xlu0 %v1039, 127
        %v1710 = vpop.permute.xlu0 %1709
        %1711 = vrot.lane.b32.xlu0 %v1040, 127
        %v1712 = vpop.permute.xlu0 %1711
        %1713 = vrot.lane.b32.xlu0 %v1041, 127
        %v1714 = vpop.permute.xlu0 %1713
        %1715 = vrot.lane.b32.xlu0 %v1042, 127
        %v1716 = vpop.permute.xlu0 %1715
        %1717 = vrot.lane.b32.xlu0 %v1211, 127
        %v1718 = vpop.permute.xlu0 %1717
        %1719 = vrot.lane.b32.xlu0 %v1212, 127
        %v1720 = vpop.permute.xlu0 %1719
        %1721 = vrot.lane.b32.xlu0 %v1213, 127
        %v1722 = vpop.permute.xlu0 %1721
        %1723 = vrot.lane.b32.xlu0 %v1214, 127
        %v1724 = vpop.permute.xlu0 %1723
        %1725 = vrot.lane.b32.xlu0 %v1215, 127
        %v1726 = vpop.permute.xlu0 %1725
        %1727 = vrot.lane.b32.xlu0 %v1216, 127
        %v1728 = vpop.permute.xlu0 %1727
        %1729 = vrot.lane.b32.xlu0 %v1217, 127
        %v1730 = vpop.permute.xlu0 %1729
        %1731 = vrot.lane.b32.xlu0 %v1218, 127
        %v1732 = vpop.permute.xlu0 %1731
        %1733 = vrot.lane.b32.xlu0 %v1387, 127
        %v1734 = vpop.permute.xlu0 %1733
        %1735 = vrot.lane.b32.xlu0 %v1388, 127
        %v1736 = vpop.permute.xlu0 %1735
        %1737 = vrot.lane.b32.xlu0 %v1389, 127
        %v1738 = vpop.permute.xlu0 %1737
        %1739 = vrot.lane.b32.xlu0 %v1390, 127
        %v1740 = vpop.permute.xlu0 %1739
        %1741 = vrot.lane.b32.xlu0 %v1391, 127
        %v1742 = vpop.permute.xlu0 %1741
        %1743 = vrot.lane.b32.xlu0 %v1392, 127
        %v1744 = vpop.permute.xlu0 %1743
        %1745 = vrot.lane.b32.xlu0 %v1393, 127
        %v1746 = vpop.permute.xlu0 %1745
        %1747 = vrot.lane.b32.xlu0 %v1394, 127
        %v1748 = vpop.permute.xlu0 %1747
        %1749 = vrot.lane.b32.xlu0 %v1563, 127
        %v1750 = vpop.permute.xlu0 %1749
        %1751 = vrot.lane.b32.xlu0 %v1564, 127
        %v1752 = vpop.permute.xlu0 %1751
        %1753 = vrot.lane.b32.xlu0 %v1565, 127
        %v1754 = vpop.permute.xlu0 %1753
        %1755 = vrot.lane.b32.xlu0 %v1566, 127
        %v1756 = vpop.permute.xlu0 %1755
        %1757 = vrot.lane.b32.xlu0 %v1567, 127
        %v1758 = vpop.permute.xlu0 %1757
        %1759 = vrot.lane.b32.xlu0 %v1568, 127
        %v1760 = vpop.permute.xlu0 %1759
        %1761 = vrot.lane.b32.xlu0 %v1569, 127
        %v1762 = vpop.permute.xlu0 %1761
        %1763 = vrot.lane.b32.xlu0 %v1570, 127
        %v1764 = vpop.permute.xlu0 %1763
        %vm1765 = vcmp.lt.s32.totalorder %v1572, 127
        %v1766 = vsel %vm1765, %v1734, %v1750
        %v1767 = vsel %vm1765, %v1736, %v1752
        %v1768 = vsel %vm1765, %v1738, %v1754
        %v1769 = vsel %vm1765, %v1740, %v1756
        %v1770 = vsel %vm1765, %v1742, %v1758
        %v1771 = vsel %vm1765, %v1744, %v1760
        %v1772 = vsel %vm1765, %v1746, %v1762
        %v1773 = vsel %vm1765, %v1748, %v1764
        %v1774 = vsel %vm1765, %v1718, %v1734
        %v1775 = vsel %vm1765, %v1720, %v1736
        %v1776 = vsel %vm1765, %v1722, %v1738
        %v1777 = vsel %vm1765, %v1724, %v1740
        %v1778 = vsel %vm1765, %v1726, %v1742
        %v1779 = vsel %vm1765, %v1728, %v1744
        %v1780 = vsel %vm1765, %v1730, %v1746
        %v1781 = vsel %vm1765, %v1732, %v1748
        %v1782 = vsel %vm1765, %v1702, %v1718
        %v1783 = vsel %vm1765, %v1704, %v1720
        %v1784 = vsel %vm1765, %v1706, %v1722
        %v1785 = vsel %vm1765, %v1708, %v1724
        %v1786 = vsel %vm1765, %v1710, %v1726
        %v1787 = vsel %vm1765, %v1712, %v1728
        %v1788 = vsel %vm1765, %v1714, %v1730
        %v1789 = vsel %vm1765, %v1716, %v1732
        %v1790 = vsel %vm1765, %v1750, %v1702
        %v1791 = vsel %vm1765, %v1752, %v1704
        %v1792 = vsel %vm1765, %v1754, %v1706
        %v1793 = vsel %vm1765, %v1756, %v1708
        %v1794 = vsel %vm1765, %v1758, %v1710
        %v1795 = vsel %vm1765, %v1760, %v1712
        %v1796 = vsel %vm1765, %v1762, %v1714
        %v1797 = vsel %vm1765, %v1764, %v1716
        %v1798 = vld [vmem:[%s6] sm:$0xff]
        %v1799 = vld [vmem:[%s6 + $0x8] sm:$0xff]
        %v1800 = vld [vmem:[%s6 + $0x10] sm:$0xff]
        %v1801 = vld [vmem:[%s6 + $0x18] sm:$0xff]
        %v1802 = vld [vmem:[%s6 + $0x20] sm:$0xff]
        %v1803 = vld [vmem:[%s6 + $0x28] sm:$0xff]
        %v1804 = vld [vmem:[%s6 + $0x30] sm:$0xff]
        %v1805 = vld [vmem:[%s6 + $0x38] sm:$0xff]
        %v1806 = vmul.f32 %v1693, %v1588
        %v1807 = vmul.f32 %v1685, %v1589
        %v1808 = vmul.f32 %v1677, %v1590
        %v1809 = vmul.f32 %v1669, %v1591
        %v1810 = vmul.f32 %v1694, %v1588
        %v1811 = vmul.f32 %v1686, %v1589
        %v1812 = vmul.f32 %v1678, %v1590
        %v1813 = vmul.f32 %v1670, %v1591
        %v1814 = vmul.f32 %v1695, %v1588
        %v1815 = vmul.f32 %v1687, %v1589
        %v1816 = vmul.f32 %v1679, %v1590
        %v1817 = vmul.f32 %v1671, %v1591
        %v1818 = vmul.f32 %v1696, %v1588
        %v1819 = vmul.f32 %v1688, %v1589
        %v1820 = vmul.f32 %v1680, %v1590
        %v1821 = vmul.f32 %v1672, %v1591
        %v1822 = vmul.f32 %v1697, %v1588
        %v1823 = vmul.f32 %v1689, %v1589
        %v1824 = vmul.f32 %v1681, %v1590
        %v1825 = vmul.f32 %v1673, %v1591
        %v1826 = vmul.f32 %v1698, %v1588
        %v1827 = vmul.f32 %v1690, %v1589
        %v1828 = vmul.f32 %v1682, %v1590
        %v1829 = vmul.f32 %v1674, %v1591
        %v1830 = vmul.f32 %v1699, %v1588
        %v1831 = vmul.f32 %v1691, %v1589
        %v1832 = vmul.f32 %v1683, %v1590
        %v1833 = vmul.f32 %v1675, %v1591
        %v1834 = vmul.f32 %v1700, %v1588
        %v1835 = vmul.f32 %v1692, %v1589
        %v1836 = vmul.f32 %v1684, %v1590
        %v1837 = vmul.f32 %v1676, %v1591
        %1839 = vset.pattern.permute.xlu0 0
        %1840 = vperm.xlu0 %1839, %v1798
        %v1841 = vpop.permute.xlu0 %1840
        %1844 = vset.pattern.permute.xlu0 0
        %1845 = vperm.xlu0 %1844, %v1799
        %v1846 = vpop.permute.xlu0 %1845
        %1849 = vset.pattern.permute.xlu0 0
        %1850 = vperm.xlu0 %1849, %v1800
        %v1851 = vpop.permute.xlu0 %1850
        %1854 = vset.pattern.permute.xlu0 0
        %1855 = vperm.xlu0 %1854, %v1801
        %v1856 = vpop.permute.xlu0 %1855
        %1859 = vset.pattern.permute.xlu0 0
        %1860 = vperm.xlu0 %1859, %v1802
        %v1861 = vpop.permute.xlu0 %1860
        %1864 = vset.pattern.permute.xlu0 0
        %1865 = vperm.xlu0 %1864, %v1803
        %v1866 = vpop.permute.xlu0 %1865
        %1869 = vset.pattern.permute.xlu0 0
        %1870 = vperm.xlu0 %1869, %v1804
        %v1871 = vpop.permute.xlu0 %1870
        %1874 = vset.pattern.permute.xlu0 0
        %1875 = vperm.xlu0 %1874, %v1805
        %v1876 = vpop.permute.xlu0 %1875
        %v1878 = vmul.f32 %v1841, %v1806
        %v1879 = vmul.f32 %v1841, %v1807
        %v1880 = vmul.f32 %v1841, %v1808
        %v1881 = vmul.f32 %v1841, %v1809
        %v1882 = vmul.f32 %v1846, %v1810
        %v1883 = vmul.f32 %v1846, %v1811
        %v1884 = vmul.f32 %v1846, %v1812
        %v1885 = vmul.f32 %v1846, %v1813
        %v1886 = vmul.f32 %v1851, %v1814
        %v1887 = vmul.f32 %v1851, %v1815
        %v1888 = vmul.f32 %v1851, %v1816
        %v1889 = vmul.f32 %v1851, %v1817
        %v1890 = vmul.f32 %v1856, %v1818
        %v1891 = vmul.f32 %v1856, %v1819
        %v1892 = vmul.f32 %v1856, %v1820
        %v1893 = vmul.f32 %v1856, %v1821
        %v1894 = vmul.f32 %v1861, %v1822
        %v1895 = vmul.f32 %v1861, %v1823
        %v1896 = vmul.f32 %v1861, %v1824
        %v1897 = vmul.f32 %v1861, %v1825
        %v1898 = vmul.f32 %v1866, %v1826
        %v1899 = vmul.f32 %v1866, %v1827
        %v1900 = vmul.f32 %v1866, %v1828
        %v1901 = vmul.f32 %v1866, %v1829
        %v1902 = vmul.f32 %v1871, %v1830
        %v1903 = vmul.f32 %v1871, %v1831
        %v1904 = vmul.f32 %v1871, %v1832
        %v1905 = vmul.f32 %v1871, %v1833
        %v1906 = vmul.f32 %v1876, %v1834
        %v1907 = vmul.f32 %v1876, %v1835
        %v1908 = vmul.f32 %v1876, %v1836
        %v1909 = vmul.f32 %v1876, %v1837
        %1910 = vset.pattern.permute.xlu0 1
        %1911 = vperm.xlu0 %1910, %v1798
        %v1912 = vpop.permute.xlu0 %1911
        %1914 = vset.pattern.permute.xlu0 1
        %1915 = vperm.xlu0 %1914, %v1799
        %v1916 = vpop.permute.xlu0 %1915
        %1918 = vset.pattern.permute.xlu0 1
        %1919 = vperm.xlu0 %1918, %v1800
        %v1920 = vpop.permute.xlu0 %1919
        %1922 = vset.pattern.permute.xlu0 1
        %1923 = vperm.xlu0 %1922, %v1801
        %v1924 = vpop.permute.xlu0 %1923
        %1926 = vset.pattern.permute.xlu0 1
        %1927 = vperm.xlu0 %1926, %v1802
        %v1928 = vpop.permute.xlu0 %1927
        %1930 = vset.pattern.permute.xlu0 1
        %1931 = vperm.xlu0 %1930, %v1803
        %v1932 = vpop.permute.xlu0 %1931
        %1934 = vset.pattern.permute.xlu0 1
        %1935 = vperm.xlu0 %1934, %v1804
        %v1936 = vpop.permute.xlu0 %1935
        %1938 = vset.pattern.permute.xlu0 1
        %1939 = vperm.xlu0 %1938, %v1805
        %v1940 = vpop.permute.xlu0 %1939
        %v1942 = vmul.f32 %v1912, %v1035
        %v1943 = vmul.f32 %v1912, %v1211
        %v1944 = vmul.f32 %v1912, %v1387
        %v1945 = vmul.f32 %v1912, %v1563
        %v1946 = vmul.f32 %v1916, %v1036
        %v1947 = vmul.f32 %v1916, %v1212
        %v1948 = vmul.f32 %v1916, %v1388
        %v1949 = vmul.f32 %v1916, %v1564
        %v1950 = vmul.f32 %v1920, %v1037
        %v1951 = vmul.f32 %v1920, %v1213
        %v1952 = vmul.f32 %v1920, %v1389
        %v1953 = vmul.f32 %v1920, %v1565
        %v1954 = vmul.f32 %v1924, %v1038
        %v1955 = vmul.f32 %v1924, %v1214
        %v1956 = vmul.f32 %v1924, %v1390
        %v1957 = vmul.f32 %v1924, %v1566
        %v1958 = vmul.f32 %v1928, %v1039
        %v1959 = vmul.f32 %v1928, %v1215
        %v1960 = vmul.f32 %v1928, %v1391
        %v1961 = vmul.f32 %v1928, %v1567
        %v1962 = vmul.f32 %v1932, %v1040
        %v1963 = vmul.f32 %v1932, %v1216
        %v1964 = vmul.f32 %v1932, %v1392
        %v1965 = vmul.f32 %v1932, %v1568
        %v1966 = vmul.f32 %v1936, %v1041
        %v1967 = vmul.f32 %v1936, %v1217
        %v1968 = vmul.f32 %v1936, %v1393
        %v1969 = vmul.f32 %v1936, %v1569
        %v1970 = vmul.f32 %v1940, %v1042
        %v1971 = vmul.f32 %v1940, %v1218
        %v1972 = vmul.f32 %v1940, %v1394
        %v1973 = vmul.f32 %v1940, %v1570
        %v1974 = vadd.f32 %v1878, %v1942
        %v1975 = vadd.f32 %v1879, %v1943
        %v1976 = vadd.f32 %v1880, %v1944
        %v1977 = vadd.f32 %v1881, %v1945
        %v1978 = vadd.f32 %v1882, %v1946
        %v1979 = vadd.f32 %v1883, %v1947
        %v1980 = vadd.f32 %v1884, %v1948
        %v1981 = vadd.f32 %v1885, %v1949
        %v1982 = vadd.f32 %v1886, %v1950
        %v1983 = vadd.f32 %v1887, %v1951
        %v1984 = vadd.f32 %v1888, %v1952
        %v1985 = vadd.f32 %v1889, %v1953
        %v1986 = vadd.f32 %v1890, %v1954
        %v1987 = vadd.f32 %v1891, %v1955
        %v1988 = vadd.f32 %v1892, %v1956
        %v1989 = vadd.f32 %v1893, %v1957
        %v1990 = vadd.f32 %v1894, %v1958
        %v1991 = vadd.f32 %v1895, %v1959
        %v1992 = vadd.f32 %v1896, %v1960
        %v1993 = vadd.f32 %v1897, %v1961
        %v1994 = vadd.f32 %v1898, %v1962
        %v1995 = vadd.f32 %v1899, %v1963
        %v1996 = vadd.f32 %v1900, %v1964
        %v1997 = vadd.f32 %v1901, %v1965
        %v1998 = vadd.f32 %v1902, %v1966
        %v1999 = vadd.f32 %v1903, %v1967
        %v2000 = vadd.f32 %v1904, %v1968
        %v2001 = vadd.f32 %v1905, %v1969
        %v2002 = vadd.f32 %v1906, %v1970
        %v2003 = vadd.f32 %v1907, %v1971
        %v2004 = vadd.f32 %v1908, %v1972
        %v2005 = vadd.f32 %v1909, %v1973
        %v2006 = vmul.f32 %v1782, %v1600
        %v2007 = vmul.f32 %v1774, %v1601
        %v2008 = vmul.f32 %v1766, %v1602
        %v2009 = vmul.f32 %v1790, %v1603
        %v2010 = vmul.f32 %v1783, %v1600
        %v2011 = vmul.f32 %v1775, %v1601
        %v2012 = vmul.f32 %v1767, %v1602
        %v2013 = vmul.f32 %v1791, %v1603
        %v2014 = vmul.f32 %v1784, %v1600
        %v2015 = vmul.f32 %v1776, %v1601
        %v2016 = vmul.f32 %v1768, %v1602
        %v2017 = vmul.f32 %v1792, %v1603
        %v2018 = vmul.f32 %v1785, %v1600
        %v2019 = vmul.f32 %v1777, %v1601
        %v2020 = vmul.f32 %v1769, %v1602
        %v2021 = vmul.f32 %v1793, %v1603
        %v2022 = vmul.f32 %v1786, %v1600
        %v2023 = vmul.f32 %v1778, %v1601
        %v2024 = vmul.f32 %v1770, %v1602
        %v2025 = vmul.f32 %v1794, %v1603
        %v2026 = vmul.f32 %v1787, %v1600
        %v2027 = vmul.f32 %v1779, %v1601
        %v2028 = vmul.f32 %v1771, %v1602
        %v2029 = vmul.f32 %v1795, %v1603
        %v2030 = vmul.f32 %v1788, %v1600
        %v2031 = vmul.f32 %v1780, %v1601
        %v2032 = vmul.f32 %v1772, %v1602
        %v2033 = vmul.f32 %v1796, %v1603
        %v2034 = vmul.f32 %v1789, %v1600
        %v2035 = vmul.f32 %v1781, %v1601
        %v2036 = vmul.f32 %v1773, %v1602
        %v2037 = vmul.f32 %v1797, %v1603
        %2038 = vset.pattern.permute.xlu0 2
        %2039 = vperm.xlu0 %2038, %v1798
        %v2040 = vpop.permute.xlu0 %2039
        %2042 = vset.pattern.permute.xlu0 2
        %2043 = vperm.xlu0 %2042, %v1799
        %v2044 = vpop.permute.xlu0 %2043
        %2046 = vset.pattern.permute.xlu0 2
        %2047 = vperm.xlu0 %2046, %v1800
        %v2048 = vpop.permute.xlu0 %2047
        %2050 = vset.pattern.permute.xlu0 2
        %2051 = vperm.xlu0 %2050, %v1801
        %v2052 = vpop.permute.xlu0 %2051
        %2054 = vset.pattern.permute.xlu0 2
        %2055 = vperm.xlu0 %2054, %v1802
        %v2056 = vpop.permute.xlu0 %2055
        %2058 = vset.pattern.permute.xlu0 2
        %2059 = vperm.xlu0 %2058, %v1803
        %v2060 = vpop.permute.xlu0 %2059
        %2062 = vset.pattern.permute.xlu0 2
        %2063 = vperm.xlu0 %2062, %v1804
        %v2064 = vpop.permute.xlu0 %2063
        %2066 = vset.pattern.permute.xlu0 2
        %2067 = vperm.xlu0 %2066, %v1805
        %v2068 = vpop.permute.xlu0 %2067
        %v2070 = vmul.f32 %v2040, %v2006
        %v2071 = vmul.f32 %v2040, %v2007
        %v2072 = vmul.f32 %v2040, %v2008
        %v2073 = vmul.f32 %v2040, %v2009
        %v2074 = vmul.f32 %v2044, %v2010
        %v2075 = vmul.f32 %v2044, %v2011
        %v2076 = vmul.f32 %v2044, %v2012
        %v2077 = vmul.f32 %v2044, %v2013
        %v2078 = vmul.f32 %v2048, %v2014
        %v2079 = vmul.f32 %v2048, %v2015
        %v2080 = vmul.f32 %v2048, %v2016
        %v2081 = vmul.f32 %v2048, %v2017
        %v2082 = vmul.f32 %v2052, %v2018
        %v2083 = vmul.f32 %v2052, %v2019
        %v2084 = vmul.f32 %v2052, %v2020
        %v2085 = vmul.f32 %v2052, %v2021
        %v2086 = vmul.f32 %v2056, %v2022
        %v2087 = vmul.f32 %v2056, %v2023
        %v2088 = vmul.f32 %v2056, %v2024
        %v2089 = vmul.f32 %v2056, %v2025
        %v2090 = vmul.f32 %v2060, %v2026
        %v2091 = vmul.f32 %v2060, %v2027
        %v2092 = vmul.f32 %v2060, %v2028
        %v2093 = vmul.f32 %v2060, %v2029
        %v2094 = vmul.f32 %v2064, %v2030
        %v2095 = vmul.f32 %v2064, %v2031
        %v2096 = vmul.f32 %v2064, %v2032
        %v2097 = vmul.f32 %v2064, %v2033
        %v2098 = vmul.f32 %v2068, %v2034
        %v2099 = vmul.f32 %v2068, %v2035
        %v2100 = vmul.f32 %v2068, %v2036
        %v2101 = vmul.f32 %v2068, %v2037
        %v2102 = vadd.f32 %v1974, %v2070
        %v2103 = vadd.f32 %v1975, %v2071
        %v2104 = vadd.f32 %v1976, %v2072
        %v2105 = vadd.f32 %v1977, %v2073
        %v2106 = vadd.f32 %v1978, %v2074
        %v2107 = vadd.f32 %v1979, %v2075
        %v2108 = vadd.f32 %v1980, %v2076
        %v2109 = vadd.f32 %v1981, %v2077
        %v2110 = vadd.f32 %v1982, %v2078
        %v2111 = vadd.f32 %v1983, %v2079
        %v2112 = vadd.f32 %v1984, %v2080
        %v2113 = vadd.f32 %v1985, %v2081
        %v2114 = vadd.f32 %v1986, %v2082
        %v2115 = vadd.f32 %v1987, %v2083
        %v2116 = vadd.f32 %v1988, %v2084
        %v2117 = vadd.f32 %v1989, %v2085
        %v2118 = vadd.f32 %v1990, %v2086
        %v2119 = vadd.f32 %v1991, %v2087
        %v2120 = vadd.f32 %v1992, %v2088
        %v2121 = vadd.f32 %v1993, %v2089
        %v2122 = vadd.f32 %v1994, %v2090
        %v2123 = vadd.f32 %v1995, %v2091
        %v2124 = vadd.f32 %v1996, %v2092
        %v2125 = vadd.f32 %v1997, %v2093
        %v2126 = vadd.f32 %v1998, %v2094
        %v2127 = vadd.f32 %v1999, %v2095
        %v2128 = vadd.f32 %v2000, %v2096
        %v2129 = vadd.f32 %v2001, %v2097
        %v2130 = vadd.f32 %v2002, %v2098
        %v2131 = vadd.f32 %v2003, %v2099
        %v2132 = vadd.f32 %v2004, %v2100
        %v2133 = vadd.f32 %v2005, %v2101
        %v2134 = vld [vmem:[%s7] sm:$0xff]
        %v2135 = vld [vmem:[%s7 + $0x8] sm:$0xff]
        %v2136 = vld [vmem:[%s7 + $0x10] sm:$0xff]
        %v2137 = vld [vmem:[%s7 + $0x18] sm:$0xff]
        %v2138 = vld [vmem:[%s7 + $0x20] sm:$0xff]
        %v2139 = vld [vmem:[%s7 + $0x28] sm:$0xff]
        %v2140 = vld [vmem:[%s7 + $0x30] sm:$0xff]
        %v2141 = vld [vmem:[%s7 + $0x38] sm:$0xff]
        %2143 = vset.pattern.permute.xlu0 0
        %2144 = vperm.xlu0 %2143, %v2134
        %v2145 = vpop.permute.xlu0 %2144
        %2148 = vset.pattern.permute.xlu0 0
        %2149 = vperm.xlu0 %2148, %v2135
        %v2150 = vpop.permute.xlu0 %2149
        %2153 = vset.pattern.permute.xlu0 0
        %2154 = vperm.xlu0 %2153, %v2136
        %v2155 = vpop.permute.xlu0 %2154
        %2158 = vset.pattern.permute.xlu0 0
        %2159 = vperm.xlu0 %2158, %v2137
        %v2160 = vpop.permute.xlu0 %2159
        %2163 = vset.pattern.permute.xlu0 0
        %2164 = vperm.xlu0 %2163, %v2138
        %v2165 = vpop.permute.xlu0 %2164
        %2168 = vset.pattern.permute.xlu0 0
        %2169 = vperm.xlu0 %2168, %v2139
        %v2170 = vpop.permute.xlu0 %2169
        %2173 = vset.pattern.permute.xlu0 0
        %2174 = vperm.xlu0 %2173, %v2140
        %v2175 = vpop.permute.xlu0 %2174
        %2178 = vset.pattern.permute.xlu0 0
        %2179 = vperm.xlu0 %2178, %v2141
        %v2180 = vpop.permute.xlu0 %2179
        %v2182 = vadd.f32 %v2102, %v2145
        %v2183 = vadd.f32 %v2103, %v2145
        %v2184 = vadd.f32 %v2104, %v2145
        %v2185 = vadd.f32 %v2105, %v2145
        %v2186 = vadd.f32 %v2106, %v2150
        %v2187 = vadd.f32 %v2107, %v2150
        %v2188 = vadd.f32 %v2108, %v2150
        %v2189 = vadd.f32 %v2109, %v2150
        %v2190 = vadd.f32 %v2110, %v2155
        %v2191 = vadd.f32 %v2111, %v2155
        %v2192 = vadd.f32 %v2112, %v2155
        %v2193 = vadd.f32 %v2113, %v2155
        %v2194 = vadd.f32 %v2114, %v2160
        %v2195 = vadd.f32 %v2115, %v2160
        %v2196 = vadd.f32 %v2116, %v2160
        %v2197 = vadd.f32 %v2117, %v2160
        %v2198 = vadd.f32 %v2118, %v2165
        %v2199 = vadd.f32 %v2119, %v2165
        %v2200 = vadd.f32 %v2120, %v2165
        %v2201 = vadd.f32 %v2121, %v2165
        %v2202 = vadd.f32 %v2122, %v2170
        %v2203 = vadd.f32 %v2123, %v2170
        %v2204 = vadd.f32 %v2124, %v2170
        %v2205 = vadd.f32 %v2125, %v2170
        %v2206 = vadd.f32 %v2126, %v2175
        %v2207 = vadd.f32 %v2127, %v2175
        %v2208 = vadd.f32 %v2128, %v2175
        %v2209 = vadd.f32 %v2129, %v2175
        %v2210 = vadd.f32 %v2130, %v2180
        %v2211 = vadd.f32 %v2131, %v2180
        %v2212 = vadd.f32 %v2132, %v2180
        %v2213 = vadd.f32 %v2133, %v2180
        %s2214 = sld [smem:[#allocation3]]
        %vm2215 = vcmp.gt.f32.partialorder %v2182, 0.0
        %vm2216 = vcmp.gt.f32.partialorder %v2183, 0.0
        %vm2217 = vcmp.gt.f32.partialorder %v2184, 0.0
        %vm2218 = vcmp.gt.f32.partialorder %v2185, 0.0
        %vm2219 = vcmp.gt.f32.partialorder %v2186, 0.0
        %vm2220 = vcmp.gt.f32.partialorder %v2187, 0.0
        %vm2221 = vcmp.gt.f32.partialorder %v2188, 0.0
        %vm2222 = vcmp.gt.f32.partialorder %v2189, 0.0
        %vm2223 = vcmp.gt.f32.partialorder %v2190, 0.0
        %vm2224 = vcmp.gt.f32.partialorder %v2191, 0.0
        %vm2225 = vcmp.gt.f32.partialorder %v2192, 0.0
        %vm2226 = vcmp.gt.f32.partialorder %v2193, 0.0
        %vm2227 = vcmp.gt.f32.partialorder %v2194, 0.0
        %vm2228 = vcmp.gt.f32.partialorder %v2195, 0.0
        %vm2229 = vcmp.gt.f32.partialorder %v2196, 0.0
        %vm2230 = vcmp.gt.f32.partialorder %v2197, 0.0
        %vm2231 = vcmp.gt.f32.partialorder %v2198, 0.0
        %vm2232 = vcmp.gt.f32.partialorder %v2199, 0.0
        %vm2233 = vcmp.gt.f32.partialorder %v2200, 0.0
        %vm2234 = vcmp.gt.f32.partialorder %v2201, 0.0
        %vm2235 = vcmp.gt.f32.partialorder %v2202, 0.0
        %vm2236 = vcmp.gt.f32.partialorder %v2203, 0.0
        %vm2237 = vcmp.gt.f32.partialorder %v2204, 0.0
        %vm2238 = vcmp.gt.f32.partialorder %v2205, 0.0
        %vm2239 = vcmp.gt.f32.partialorder %v2206, 0.0
        %vm2240 = vcmp.gt.f32.partialorder %v2207, 0.0
        %vm2241 = vcmp.gt.f32.partialorder %v2208, 0.0
        %vm2242 = vcmp.gt.f32.partialorder %v2209, 0.0
        %vm2243 = vcmp.gt.f32.partialorder %v2210, 0.0
        %vm2244 = vcmp.gt.f32.partialorder %v2211, 0.0
        %vm2245 = vcmp.gt.f32.partialorder %v2212, 0.0
        %vm2246 = vcmp.gt.f32.partialorder %v2213, 0.0
        %v2247 = vstv %s2214
        %v2248 = vmul.f32 %v2247, %v2182
        %v2249 = vmul.f32 %v2247, %v2183
        %v2250 = vmul.f32 %v2247, %v2184
        %v2251 = vmul.f32 %v2247, %v2185
        %v2252 = vmul.f32 %v2247, %v2186
        %v2253 = vmul.f32 %v2247, %v2187
        %v2254 = vmul.f32 %v2247, %v2188
        %v2255 = vmul.f32 %v2247, %v2189
        %v2256 = vmul.f32 %v2247, %v2190
        %v2257 = vmul.f32 %v2247, %v2191
        %v2258 = vmul.f32 %v2247, %v2192
        %v2259 = vmul.f32 %v2247, %v2193
        %v2260 = vmul.f32 %v2247, %v2194
        %v2261 = vmul.f32 %v2247, %v2195
        %v2262 = vmul.f32 %v2247, %v2196
        %v2263 = vmul.f32 %v2247, %v2197
        %v2264 = vmul.f32 %v2247, %v2198
        %v2265 = vmul.f32 %v2247, %v2199
        %v2266 = vmul.f32 %v2247, %v2200
        %v2267 = vmul.f32 %v2247, %v2201
        %v2268 = vmul.f32 %v2247, %v2202
        %v2269 = vmul.f32 %v2247, %v2203
        %v2270 = vmul.f32 %v2247, %v2204
        %v2271 = vmul.f32 %v2247, %v2205
        %v2272 = vmul.f32 %v2247, %v2206
        %v2273 = vmul.f32 %v2247, %v2207
        %v2274 = vmul.f32 %v2247, %v2208
        %v2275 = vmul.f32 %v2247, %v2209
        %v2276 = vmul.f32 %v2247, %v2210
        %v2277 = vmul.f32 %v2247, %v2211
        %v2278 = vmul.f32 %v2247, %v2212
        %v2279 = vmul.f32 %v2247, %v2213
        %v2280 = vsel %vm2215, %v2182, %v2248
        %v2281 = vsel %vm2216, %v2183, %v2249
        %v2282 = vsel %vm2217, %v2184, %v2250
        %v2283 = vsel %vm2218, %v2185, %v2251
        %v2284 = vsel %vm2219, %v2186, %v2252
        %v2285 = vsel %vm2220, %v2187, %v2253
        %v2286 = vsel %vm2221, %v2188, %v2254
        %v2287 = vsel %vm2222, %v2189, %v2255
        %v2288 = vsel %vm2223, %v2190, %v2256
        %v2289 = vsel %vm2224, %v2191, %v2257
        %v2290 = vsel %vm2225, %v2192, %v2258
        %v2291 = vsel %vm2226, %v2193, %v2259
        %v2292 = vsel %vm2227, %v2194, %v2260
        %v2293 = vsel %vm2228, %v2195, %v2261
        %v2294 = vsel %vm2229, %v2196, %v2262
        %v2295 = vsel %vm2230, %v2197, %v2263
        %v2296 = vsel %vm2231, %v2198, %v2264
        %v2297 = vsel %vm2232, %v2199, %v2265
        %v2298 = vsel %vm2233, %v2200, %v2266
        %v2299 = vsel %vm2234, %v2201, %v2267
        %v2300 = vsel %vm2235, %v2202, %v2268
        %v2301 = vsel %vm2236, %v2203, %v2269
        %v2302 = vsel %vm2237, %v2204, %v2270
        %v2303 = vsel %vm2238, %v2205, %v2271
        %v2304 = vsel %vm2239, %v2206, %v2272
        %v2305 = vsel %vm2240, %v2207, %v2273
        %v2306 = vsel %vm2241, %v2208, %v2274
        %v2307 = vsel %vm2242, %v2209, %v2275
        %v2308 = vsel %vm2243, %v2210, %v2276
        %v2309 = vsel %vm2244, %v2211, %v2277
        %v2310 = vsel %vm2245, %v2212, %v2278
        %v2311 = vsel %vm2246, %v2213, %v2279
        %v2312 = vld [vmem:[%s9] sm:$0xff]
        %v2313 = vld [vmem:[%s9 + $0x8] sm:$0xff]
        %v2314 = vld [vmem:[%s9 + $0x10] sm:$0xff]
        %v2315 = vld [vmem:[%s9 + $0x18] sm:$0xff]
        %v2316 = vld [vmem:[%s9 + $0x20] sm:$0xff]
        %v2317 = vld [vmem:[%s9 + $0x28] sm:$0xff]
        %v2318 = vld [vmem:[%s9 + $0x30] sm:$0xff]
        %v2319 = vld [vmem:[%s9 + $0x38] sm:$0xff]
        %v2320 = vld [vmem:[%s10] sm:$0xff]
        %v2321 = vld [vmem:[%s10 + $0x8] sm:$0xff]
        %v2322 = vld [vmem:[%s10 + $0x10] sm:$0xff]
        %v2323 = vld [vmem:[%s10 + $0x18] sm:$0xff]
        %v2324 = vld [vmem:[%s10 + $0x20] sm:$0xff]
        %v2325 = vld [vmem:[%s10 + $0x28] sm:$0xff]
        %v2326 = vld [vmem:[%s10 + $0x30] sm:$0xff]
        %v2327 = vld [vmem:[%s10 + $0x38] sm:$0xff]
        %v2328 = vadd.f32 %v2280, %v2284
        %v2329 = vadd.f32 %v2328, %v2288
        %v2330 = vadd.f32 %v2329, %v2292
        %v2331 = vadd.f32 %v2330, %v2296
        %v2332 = vadd.f32 %v2331, %v2300
        %v2333 = vadd.f32 %v2332, %v2304
        %v2334 = vadd.f32 %v2333, %v2308
        %2335 = vadd.xlane.f32.xlu0 %v2334
        %v2336 = vpop.xlane.xlu0 %2335
        %v2337 = vrot.slane %v2336, 4
        %v2338 = vadd.f32 %v2336, %v2337
        %v2339 = vrot.slane %v2338, 2
        %v2340 = vadd.f32 %v2338, %v2339
        %v2341 = vrot.slane %v2340, 1
        %v2342 = vadd.f32 %v2340, %v2341
        %s2343 = vtos %v2342
        %v2344 = vrcp.pop 8192.0
        %s2345 = vtos %v2344
        %s2346 = smul.f32 %s2343, %s2345
        %v2347 = vmul.f32 %v2280, %v2280
        %v2348 = vmul.f32 %v2284, %v2284
        %v2349 = vmul.f32 %v2288, %v2288
        %v2350 = vmul.f32 %v2292, %v2292
        %v2351 = vmul.f32 %v2296, %v2296
        %v2352 = vmul.f32 %v2300, %v2300
        %v2353 = vmul.f32 %v2304, %v2304
        %v2354 = vmul.f32 %v2308, %v2308
        %v2355 = vadd.f32 %v2347, %v2348
        %v2356 = vadd.f32 %v2355, %v2349
        %v2357 = vadd.f32 %v2356, %v2350
        %v2358 = vadd.f32 %v2357, %v2351
        %v2359 = vadd.f32 %v2358, %v2352
        %v2360 = vadd.f32 %v2359, %v2353
        %v2361 = vadd.f32 %v2360, %v2354
        %2362 = vadd.xlane.f32.xlu0 %v2361
        %v2363 = vpop.xlane.xlu0 %2362
        %v2364 = vrot.slane %v2363, 4
        %v2365 = vadd.f32 %v2363, %v2364
        %v2366 = vrot.slane %v2365, 2
        %v2367 = vadd.f32 %v2365, %v2366
        %v2368 = vrot.slane %v2367, 1
        %v2369 = vadd.f32 %v2367, %v2368
        %s2370 = vtos %v2369
        %v2371 = vrcp.pop 8192.0
        %s2372 = vtos %v2371
        %s2373 = smul.f32 %s2370, %s2372
        %s2374 = smul.f32 %s2346, %s2346
        %s2375 = ssub.f32 %s2373, %s2374
        %s2376 = smax.f32 %s2375, 0.0
        %s2377 = sadd.f32 %s2376, 1e-05
        %v2378 = vstv %s2377
        %v2379 = vrsqrt.pop %v2378
        %s2380 = vtos %v2379
        %v2381 = vstv %s2380
        %v2382 = vmul.f32 %v2312, %v2381
        %v2383 = vmul.f32 %v2313, %v2381
        %v2384 = vmul.f32 %v2314, %v2381
        %v2385 = vmul.f32 %v2315, %v2381
        %v2386 = vmul.f32 %v2316, %v2381
        %v2387 = vmul.f32 %v2317, %v2381
        %v2388 = vmul.f32 %v2318, %v2381
        %v2389 = vmul.f32 %v2319, %v2381
        %s2390 = smul.f32 %s2346, %s2380
        %v2391 = vstv %s2390
        %v2392 = vmul.f32 %v2312, %v2391
        %v2393 = vmul.f32 %v2313, %v2391
        %v2394 = vmul.f32 %v2314, %v2391
        %v2395 = vmul.f32 %v2315, %v2391
        %v2396 = vmul.f32 %v2316, %v2391
        %v2397 = vmul.f32 %v2317, %v2391
        %v2398 = vmul.f32 %v2318, %v2391
        %v2399 = vmul.f32 %v2319, %v2391
        %v2400 = vsub.f32 %v2320, %v2392
        %v2401 = vsub.f32 %v2321, %v2393
        %v2402 = vsub.f32 %v2322, %v2394
        %v2403 = vsub.f32 %v2323, %v2395
        %v2404 = vsub.f32 %v2324, %v2396
        %v2405 = vsub.f32 %v2325, %v2397
        %v2406 = vsub.f32 %v2326, %v2398
        %v2407 = vsub.f32 %v2327, %v2399
        %2409 = vset.pattern.permute.xlu0 0
        %2410 = vperm.xlu0 %2409, %v2382
        %v2411 = vpop.permute.xlu0 %2410
        %2414 = vset.pattern.permute.xlu0 0
        %2415 = vperm.xlu0 %2414, %v2383
        %v2416 = vpop.permute.xlu0 %2415
        %2419 = vset.pattern.permute.xlu0 0
        %2420 = vperm.xlu0 %2419, %v2384
        %v2421 = vpop.permute.xlu0 %2420
        %2424 = vset.pattern.permute.xlu0 0
        %2425 = vperm.xlu0 %2424, %v2385
        %v2426 = vpop.permute.xlu0 %2425
        %2429 = vset.pattern.permute.xlu0 0
        %2430 = vperm.xlu0 %2429, %v2386
        %v2431 = vpop.permute.xlu0 %2430
        %2434 = vset.pattern.permute.xlu0 0
        %2435 = vperm.xlu0 %2434, %v2387
        %v2436 = vpop.permute.xlu0 %2435
        %2439 = vset.pattern.permute.xlu0 0
        %2440 = vperm.xlu0 %2439, %v2388
        %v2441 = vpop.permute.xlu0 %2440
        %2444 = vset.pattern.permute.xlu0 0
        %2445 = vperm.xlu0 %2444, %v2389
        %v2446 = vpop.permute.xlu0 %2445
        %v2448 = vmul.f32 %v2280, %v2411
        %v2449 = vmul.f32 %v2284, %v2416
        %v2450 = vmul.f32 %v2288, %v2421
        %v2451 = vmul.f32 %v2292, %v2426
        %v2452 = vmul.f32 %v2296, %v2431
        %v2453 = vmul.f32 %v2300, %v2436
        %v2454 = vmul.f32 %v2304, %v2441
        %v2455 = vmul.f32 %v2308, %v2446
        %2457 = vset.pattern.permute.xlu0 0
        %2458 = vperm.xlu0 %2457, %v2400
        %v2459 = vpop.permute.xlu0 %2458
        %2462 = vset.pattern.permute.xlu0 0
        %2463 = vperm.xlu0 %2462, %v2401
        %v2464 = vpop.permute.xlu0 %2463
        %2467 = vset.pattern.permute.xlu0 0
        %2468 = vperm.xlu0 %2467, %v2402
        %v2469 = vpop.permute.xlu0 %2468
        %2472 = vset.pattern.permute.xlu0 0
        %2473 = vperm.xlu0 %2472, %v2403
        %v2474 = vpop.permute.xlu0 %2473
        %2477 = vset.pattern.permute.xlu0 0
        %2478 = vperm.xlu0 %2477, %v2404
        %v2479 = vpop.permute.xlu0 %2478
        %2482 = vset.pattern.permute.xlu0 0
        %2483 = vperm.xlu0 %2482, %v2405
        %v2484 = vpop.permute.xlu0 %2483
        %2487 = vset.pattern.permute.xlu0 0
        %2488 = vperm.xlu0 %2487, %v2406
        %v2489 = vpop.permute.xlu0 %2488
        %2492 = vset.pattern.permute.xlu0 0
        %2493 = vperm.xlu0 %2492, %v2407
        %v2494 = vpop.permute.xlu0 %2493
        %v2496 = vadd.f32 %v2448, %v2459
        %v2497 = vadd.f32 %v2449, %v2464
        %v2498 = vadd.f32 %v2450, %v2469
        %v2499 = vadd.f32 %v2451, %v2474
        %v2500 = vadd.f32 %v2452, %v2479
        %v2501 = vadd.f32 %v2453, %v2484
        %v2502 = vadd.f32 %v2454, %v2489
        %v2503 = vadd.f32 %v2455, %v2494
        %v2504 = vadd.f32 %v2281, %v2285
        %v2505 = vadd.f32 %v2504, %v2289
        %v2506 = vadd.f32 %v2505, %v2293
        %v2507 = vadd.f32 %v2506, %v2297
        %v2508 = vadd.f32 %v2507, %v2301
        %v2509 = vadd.f32 %v2508, %v2305
        %v2510 = vadd.f32 %v2509, %v2309
        %2511 = vadd.xlane.f32.xlu0 %v2510
        %v2512 = vpop.xlane.xlu0 %2511
        %v2513 = vrot.slane %v2512, 4
        %v2514 = vadd.f32 %v2512, %v2513
        %v2515 = vrot.slane %v2514, 2
        %v2516 = vadd.f32 %v2514, %v2515
        %v2517 = vrot.slane %v2516, 1
        %v2518 = vadd.f32 %v2516, %v2517
        %s2519 = vtos %v2518
        %v2520 = vrcp.pop 8192.0
        %s2521 = vtos %v2520
        %s2522 = smul.f32 %s2519, %s2521
        %v2523 = vmul.f32 %v2281, %v2281
        %v2524 = vmul.f32 %v2285, %v2285
        %v2525 = vmul.f32 %v2289, %v2289
        %v2526 = vmul.f32 %v2293, %v2293
        %v2527 = vmul.f32 %v2297, %v2297
        %v2528 = vmul.f32 %v2301, %v2301
        %v2529 = vmul.f32 %v2305, %v2305
        %v2530 = vmul.f32 %v2309, %v2309
        %v2531 = vadd.f32 %v2523, %v2524
        %v2532 = vadd.f32 %v2531, %v2525
        %v2533 = vadd.f32 %v2532, %v2526
        %v2534 = vadd.f32 %v2533, %v2527
        %v2535 = vadd.f32 %v2534, %v2528
        %v2536 = vadd.f32 %v2535, %v2529
        %v2537 = vadd.f32 %v2536, %v2530
        %2538 = vadd.xlane.f32.xlu0 %v2537
        %v2539 = vpop.xlane.xlu0 %2538
        %v2540 = vrot.slane %v2539, 4
        %v2541 = vadd.f32 %v2539, %v2540
        %v2542 = vrot.slane %v2541, 2
        %v2543 = vadd.f32 %v2541, %v2542
        %v2544 = vrot.slane %v2543, 1
        %v2545 = vadd.f32 %v2543, %v2544
        %s2546 = vtos %v2545
        %v2547 = vrcp.pop 8192.0
        %s2548 = vtos %v2547
        %s2549 = smul.f32 %s2546, %s2548
        %s2550 = smul.f32 %s2522, %s2522
        %s2551 = ssub.f32 %s2549, %s2550
        %s2552 = smax.f32 %s2551, 0.0
        %s2553 = sadd.f32 %s2552, 1e-05
        %v2554 = vstv %s2553
        %v2555 = vrsqrt.pop %v2554
        %s2556 = vtos %v2555
        %v2557 = vstv %s2556
        %v2558 = vmul.f32 %v2312, %v2557
        %v2559 = vmul.f32 %v2313, %v2557
        %v2560 = vmul.f32 %v2314, %v2557
        %v2561 = vmul.f32 %v2315, %v2557
        %v2562 = vmul.f32 %v2316, %v2557
        %v2563 = vmul.f32 %v2317, %v2557
        %v2564 = vmul.f32 %v2318, %v2557
        %v2565 = vmul.f32 %v2319, %v2557
        %s2566 = smul.f32 %s2522, %s2556
        %v2567 = vstv %s2566
        %v2568 = vmul.f32 %v2312, %v2567
        %v2569 = vmul.f32 %v2313, %v2567
        %v2570 = vmul.f32 %v2314, %v2567
        %v2571 = vmul.f32 %v2315, %v2567
        %v2572 = vmul.f32 %v2316, %v2567
        %v2573 = vmul.f32 %v2317, %v2567
        %v2574 = vmul.f32 %v2318, %v2567
        %v2575 = vmul.f32 %v2319, %v2567
        %v2576 = vsub.f32 %v2320, %v2568
        %v2577 = vsub.f32 %v2321, %v2569
        %v2578 = vsub.f32 %v2322, %v2570
        %v2579 = vsub.f32 %v2323, %v2571
        %v2580 = vsub.f32 %v2324, %v2572
        %v2581 = vsub.f32 %v2325, %v2573
        %v2582 = vsub.f32 %v2326, %v2574
        %v2583 = vsub.f32 %v2327, %v2575
        %2585 = vset.pattern.permute.xlu0 0
        %2586 = vperm.xlu0 %2585, %v2558
        %v2587 = vpop.permute.xlu0 %2586
        %2590 = vset.pattern.permute.xlu0 0
        %2591 = vperm.xlu0 %2590, %v2559
        %v2592 = vpop.permute.xlu0 %2591
        %2595 = vset.pattern.permute.xlu0 0
        %2596 = vperm.xlu0 %2595, %v2560
        %v2597 = vpop.permute.xlu0 %2596
        %2600 = vset.pattern.permute.xlu0 0
        %2601 = vperm.xlu0 %2600, %v2561
        %v2602 = vpop.permute.xlu0 %2601
        %2605 = vset.pattern.permute.xlu0 0
        %2606 = vperm.xlu0 %2605, %v2562
        %v2607 = vpop.permute.xlu0 %2606
        %2610 = vset.pattern.permute.xlu0 0
        %2611 = vperm.xlu0 %2610, %v2563
        %v2612 = vpop.permute.xlu0 %2611
        %2615 = vset.pattern.permute.xlu0 0
        %2616 = vperm.xlu0 %2615, %v2564
        %v2617 = vpop.permute.xlu0 %2616
        %2620 = vset.pattern.permute.xlu0 0
        %2621 = vperm.xlu0 %2620, %v2565
        %v2622 = vpop.permute.xlu0 %2621
        %v2624 = vmul.f32 %v2281, %v2587
        %v2625 = vmul.f32 %v2285, %v2592
        %v2626 = vmul.f32 %v2289, %v2597
        %v2627 = vmul.f32 %v2293, %v2602
        %v2628 = vmul.f32 %v2297, %v2607
        %v2629 = vmul.f32 %v2301, %v2612
        %v2630 = vmul.f32 %v2305, %v2617
        %v2631 = vmul.f32 %v2309, %v2622
        %2633 = vset.pattern.permute.xlu0 0
        %2634 = vperm.xlu0 %2633, %v2576
        %v2635 = vpop.permute.xlu0 %2634
        %2638 = vset.pattern.permute.xlu0 0
        %2639 = vperm.xlu0 %2638, %v2577
        %v2640 = vpop.permute.xlu0 %2639
        %2643 = vset.pattern.permute.xlu0 0
        %2644 = vperm.xlu0 %2643, %v2578
        %v2645 = vpop.permute.xlu0 %2644
        %2648 = vset.pattern.permute.xlu0 0
        %2649 = vperm.xlu0 %2648, %v2579
        %v2650 = vpop.permute.xlu0 %2649
        %2653 = vset.pattern.permute.xlu0 0
        %2654 = vperm.xlu0 %2653, %v2580
        %v2655 = vpop.permute.xlu0 %2654
        %2658 = vset.pattern.permute.xlu0 0
        %2659 = vperm.xlu0 %2658, %v2581
        %v2660 = vpop.permute.xlu0 %2659
        %2663 = vset.pattern.permute.xlu0 0
        %2664 = vperm.xlu0 %2663, %v2582
        %v2665 = vpop.permute.xlu0 %2664
        %2668 = vset.pattern.permute.xlu0 0
        %2669 = vperm.xlu0 %2668, %v2583
        %v2670 = vpop.permute.xlu0 %2669
        %v2672 = vadd.f32 %v2624, %v2635
        %v2673 = vadd.f32 %v2625, %v2640
        %v2674 = vadd.f32 %v2626, %v2645
        %v2675 = vadd.f32 %v2627, %v2650
        %v2676 = vadd.f32 %v2628, %v2655
        %v2677 = vadd.f32 %v2629, %v2660
        %v2678 = vadd.f32 %v2630, %v2665
        %v2679 = vadd.f32 %v2631, %v2670
        %v2680 = vadd.f32 %v2282, %v2286
        %v2681 = vadd.f32 %v2680, %v2290
        %v2682 = vadd.f32 %v2681, %v2294
        %v2683 = vadd.f32 %v2682, %v2298
        %v2684 = vadd.f32 %v2683, %v2302
        %v2685 = vadd.f32 %v2684, %v2306
        %v2686 = vadd.f32 %v2685, %v2310
        %2687 = vadd.xlane.f32.xlu0 %v2686
        %v2688 = vpop.xlane.xlu0 %2687
        %v2689 = vrot.slane %v2688, 4
        %v2690 = vadd.f32 %v2688, %v2689
        %v2691 = vrot.slane %v2690, 2
        %v2692 = vadd.f32 %v2690, %v2691
        %v2693 = vrot.slane %v2692, 1
        %v2694 = vadd.f32 %v2692, %v2693
        %s2695 = vtos %v2694
        %v2696 = vrcp.pop 8192.0
        %s2697 = vtos %v2696
        %s2698 = smul.f32 %s2695, %s2697
        %v2699 = vmul.f32 %v2282, %v2282
        %v2700 = vmul.f32 %v2286, %v2286
        %v2701 = vmul.f32 %v2290, %v2290
        %v2702 = vmul.f32 %v2294, %v2294
        %v2703 = vmul.f32 %v2298, %v2298
        %v2704 = vmul.f32 %v2302, %v2302
        %v2705 = vmul.f32 %v2306, %v2306
        %v2706 = vmul.f32 %v2310, %v2310
        %v2707 = vadd.f32 %v2699, %v2700
        %v2708 = vadd.f32 %v2707, %v2701
        %v2709 = vadd.f32 %v2708, %v2702
        %v2710 = vadd.f32 %v2709, %v2703
        %v2711 = vadd.f32 %v2710, %v2704
        %v2712 = vadd.f32 %v2711, %v2705
        %v2713 = vadd.f32 %v2712, %v2706
        %2714 = vadd.xlane.f32.xlu0 %v2713
        %v2715 = vpop.xlane.xlu0 %2714
        %v2716 = vrot.slane %v2715, 4
        %v2717 = vadd.f32 %v2715, %v2716
        %v2718 = vrot.slane %v2717, 2
        %v2719 = vadd.f32 %v2717, %v2718
        %v2720 = vrot.slane %v2719, 1
        %v2721 = vadd.f32 %v2719, %v2720
        %s2722 = vtos %v2721
        %v2723 = vrcp.pop 8192.0
        %s2724 = vtos %v2723
        %s2725 = smul.f32 %s2722, %s2724
        %s2726 = smul.f32 %s2698, %s2698
        %s2727 = ssub.f32 %s2725, %s2726
        %s2728 = smax.f32 %s2727, 0.0
        %s2729 = sadd.f32 %s2728, 1e-05
        %v2730 = vstv %s2729
        %v2731 = vrsqrt.pop %v2730
        %s2732 = vtos %v2731
        %v2733 = vstv %s2732
        %v2734 = vmul.f32 %v2312, %v2733
        %v2735 = vmul.f32 %v2313, %v2733
        %v2736 = vmul.f32 %v2314, %v2733
        %v2737 = vmul.f32 %v2315, %v2733
        %v2738 = vmul.f32 %v2316, %v2733
        %v2739 = vmul.f32 %v2317, %v2733
        %v2740 = vmul.f32 %v2318, %v2733
        %v2741 = vmul.f32 %v2319, %v2733
        %s2742 = smul.f32 %s2698, %s2732
        %v2743 = vstv %s2742
        %v2744 = vmul.f32 %v2312, %v2743
        %v2745 = vmul.f32 %v2313, %v2743
        %v2746 = vmul.f32 %v2314, %v2743
        %v2747 = vmul.f32 %v2315, %v2743
        %v2748 = vmul.f32 %v2316, %v2743
        %v2749 = vmul.f32 %v2317, %v2743
        %v2750 = vmul.f32 %v2318, %v2743
        %v2751 = vmul.f32 %v2319, %v2743
        %v2752 = vsub.f32 %v2320, %v2744
        %v2753 = vsub.f32 %v2321, %v2745
        %v2754 = vsub.f32 %v2322, %v2746
        %v2755 = vsub.f32 %v2323, %v2747
        %v2756 = vsub.f32 %v2324, %v2748
        %v2757 = vsub.f32 %v2325, %v2749
        %v2758 = vsub.f32 %v2326, %v2750
        %v2759 = vsub.f32 %v2327, %v2751
        %2761 = vset.pattern.permute.xlu0 0
        %2762 = vperm.xlu0 %2761, %v2734
        %v2763 = vpop.permute.xlu0 %2762
        %2766 = vset.pattern.permute.xlu0 0
        %2767 = vperm.xlu0 %2766, %v2735
        %v2768 = vpop.permute.xlu0 %2767
        %2771 = vset.pattern.permute.xlu0 0
        %2772 = vperm.xlu0 %2771, %v2736
        %v2773 = vpop.permute.xlu0 %2772
        %2776 = vset.pattern.permute.xlu0 0
        %2777 = vperm.xlu0 %2776, %v2737
        %v2778 = vpop.permute.xlu0 %2777
        %2781 = vset.pattern.permute.xlu0 0
        %2782 = vperm.xlu0 %2781, %v2738
        %v2783 = vpop.permute.xlu0 %2782
        %2786 = vset.pattern.permute.xlu0 0
        %2787 = vperm.xlu0 %2786, %v2739
        %v2788 = vpop.permute.xlu0 %2787
        %2791 = vset.pattern.permute.xlu0 0
        %2792 = vperm.xlu0 %2791, %v2740
        %v2793 = vpop.permute.xlu0 %2792
        %2796 = vset.pattern.permute.xlu0 0
        %2797 = vperm.xlu0 %2796, %v2741
        %v2798 = vpop.permute.xlu0 %2797
        %v2800 = vmul.f32 %v2282, %v2763
        %v2801 = vmul.f32 %v2286, %v2768
        %v2802 = vmul.f32 %v2290, %v2773
        %v2803 = vmul.f32 %v2294, %v2778
        %v2804 = vmul.f32 %v2298, %v2783
        %v2805 = vmul.f32 %v2302, %v2788
        %v2806 = vmul.f32 %v2306, %v2793
        %v2807 = vmul.f32 %v2310, %v2798
        %2809 = vset.pattern.permute.xlu0 0
        %2810 = vperm.xlu0 %2809, %v2752
        %v2811 = vpop.permute.xlu0 %2810
        %2814 = vset.pattern.permute.xlu0 0
        %2815 = vperm.xlu0 %2814, %v2753
        %v2816 = vpop.permute.xlu0 %2815
        %2819 = vset.pattern.permute.xlu0 0
        %2820 = vperm.xlu0 %2819, %v2754
        %v2821 = vpop.permute.xlu0 %2820
        %2824 = vset.pattern.permute.xlu0 0
        %2825 = vperm.xlu0 %2824, %v2755
        %v2826 = vpop.permute.xlu0 %2825
        %2829 = vset.pattern.permute.xlu0 0
        %2830 = vperm.xlu0 %2829, %v2756
        %v2831 = vpop.permute.xlu0 %2830
        %2834 = vset.pattern.permute.xlu0 0
        %2835 = vperm.xlu0 %2834, %v2757
        %v2836 = vpop.permute.xlu0 %2835
        %2839 = vset.pattern.permute.xlu0 0
        %2840 = vperm.xlu0 %2839, %v2758
        %v2841 = vpop.permute.xlu0 %2840
        %2844 = vset.pattern.permute.xlu0 0
        %2845 = vperm.xlu0 %2844, %v2759
        %v2846 = vpop.permute.xlu0 %2845
        %v2848 = vadd.f32 %v2800, %v2811
        %v2849 = vadd.f32 %v2801, %v2816
        %v2850 = vadd.f32 %v2802, %v2821
        %v2851 = vadd.f32 %v2803, %v2826
        %v2852 = vadd.f32 %v2804, %v2831
        %v2853 = vadd.f32 %v2805, %v2836
        %v2854 = vadd.f32 %v2806, %v2841
        %v2855 = vadd.f32 %v2807, %v2846
        %v2856 = vadd.f32 %v2283, %v2287
        %v2857 = vadd.f32 %v2856, %v2291
        %v2858 = vadd.f32 %v2857, %v2295
        %v2859 = vadd.f32 %v2858, %v2299
        %v2860 = vadd.f32 %v2859, %v2303
        %v2861 = vadd.f32 %v2860, %v2307
        %v2862 = vadd.f32 %v2861, %v2311
        %2863 = vadd.xlane.f32.xlu0 %v2862
        %v2864 = vpop.xlane.xlu0 %2863
        %v2865 = vrot.slane %v2864, 4
        %v2866 = vadd.f32 %v2864, %v2865
        %v2867 = vrot.slane %v2866, 2
        %v2868 = vadd.f32 %v2866, %v2867
        %v2869 = vrot.slane %v2868, 1
        %v2870 = vadd.f32 %v2868, %v2869
        %s2871 = vtos %v2870
        %v2872 = vrcp.pop 8192.0
        %s2873 = vtos %v2872
        %s2874 = smul.f32 %s2871, %s2873
        %v2875 = vmul.f32 %v2283, %v2283
        %v2876 = vmul.f32 %v2287, %v2287
        %v2877 = vmul.f32 %v2291, %v2291
        %v2878 = vmul.f32 %v2295, %v2295
        %v2879 = vmul.f32 %v2299, %v2299
        %v2880 = vmul.f32 %v2303, %v2303
        %v2881 = vmul.f32 %v2307, %v2307
        %v2882 = vmul.f32 %v2311, %v2311
        %v2883 = vadd.f32 %v2875, %v2876
        %v2884 = vadd.f32 %v2883, %v2877
        %v2885 = vadd.f32 %v2884, %v2878
        %v2886 = vadd.f32 %v2885, %v2879
        %v2887 = vadd.f32 %v2886, %v2880
        %v2888 = vadd.f32 %v2887, %v2881
        %v2889 = vadd.f32 %v2888, %v2882
        %2890 = vadd.xlane.f32.xlu0 %v2889
        %v2891 = vpop.xlane.xlu0 %2890
        %v2892 = vrot.slane %v2891, 4
        %v2893 = vadd.f32 %v2891, %v2892
        %v2894 = vrot.slane %v2893, 2
        %v2895 = vadd.f32 %v2893, %v2894
        %v2896 = vrot.slane %v2895, 1
        %v2897 = vadd.f32 %v2895, %v2896
        %s2898 = vtos %v2897
        %v2899 = vrcp.pop 8192.0
        %s2900 = vtos %v2899
        %s2901 = smul.f32 %s2898, %s2900
        %s2902 = smul.f32 %s2874, %s2874
        %s2903 = ssub.f32 %s2901, %s2902
        %s2904 = smax.f32 %s2903, 0.0
        %s2905 = sadd.f32 %s2904, 1e-05
        %v2906 = vstv %s2905
        %v2907 = vrsqrt.pop %v2906
        %s2908 = vtos %v2907
        %v2909 = vstv %s2908
        %v2910 = vmul.f32 %v2312, %v2909
        %v2911 = vmul.f32 %v2313, %v2909
        %v2912 = vmul.f32 %v2314, %v2909
        %v2913 = vmul.f32 %v2315, %v2909
        %v2914 = vmul.f32 %v2316, %v2909
        %v2915 = vmul.f32 %v2317, %v2909
        %v2916 = vmul.f32 %v2318, %v2909
        %v2917 = vmul.f32 %v2319, %v2909
        %s2918 = smul.f32 %s2874, %s2908
        %v2919 = vstv %s2918
        %v2920 = vmul.f32 %v2312, %v2919
        %v2921 = vmul.f32 %v2313, %v2919
        %v2922 = vmul.f32 %v2314, %v2919
        %v2923 = vmul.f32 %v2315, %v2919
        %v2924 = vmul.f32 %v2316, %v2919
        %v2925 = vmul.f32 %v2317, %v2919
        %v2926 = vmul.f32 %v2318, %v2919
        %v2927 = vmul.f32 %v2319, %v2919
        %v2928 = vsub.f32 %v2320, %v2920
        %v2929 = vsub.f32 %v2321, %v2921
        %v2930 = vsub.f32 %v2322, %v2922
        %v2931 = vsub.f32 %v2323, %v2923
        %v2932 = vsub.f32 %v2324, %v2924
        %v2933 = vsub.f32 %v2325, %v2925
        %v2934 = vsub.f32 %v2326, %v2926
        %v2935 = vsub.f32 %v2327, %v2927
        %2937 = vset.pattern.permute.xlu0 0
        %2938 = vperm.xlu0 %2937, %v2910
        %v2939 = vpop.permute.xlu0 %2938
        %2942 = vset.pattern.permute.xlu0 0
        %2943 = vperm.xlu0 %2942, %v2911
        %v2944 = vpop.permute.xlu0 %2943
        %2947 = vset.pattern.permute.xlu0 0
        %2948 = vperm.xlu0 %2947, %v2912
        %v2949 = vpop.permute.xlu0 %2948
        %2952 = vset.pattern.permute.xlu0 0
        %2953 = vperm.xlu0 %2952, %v2913
        %v2954 = vpop.permute.xlu0 %2953
        %2957 = vset.pattern.permute.xlu0 0
        %2958 = vperm.xlu0 %2957, %v2914
        %v2959 = vpop.permute.xlu0 %2958
        %2962 = vset.pattern.permute.xlu0 0
        %2963 = vperm.xlu0 %2962, %v2915
        %v2964 = vpop.permute.xlu0 %2963
        %2967 = vset.pattern.permute.xlu0 0
        %2968 = vperm.xlu0 %2967, %v2916
        %v2969 = vpop.permute.xlu0 %2968
        %2972 = vset.pattern.permute.xlu0 0
        %2973 = vperm.xlu0 %2972, %v2917
        %v2974 = vpop.permute.xlu0 %2973
        %v2976 = vmul.f32 %v2283, %v2939
        %v2977 = vmul.f32 %v2287, %v2944
        %v2978 = vmul.f32 %v2291, %v2949
        %v2979 = vmul.f32 %v2295, %v2954
        %v2980 = vmul.f32 %v2299, %v2959
        %v2981 = vmul.f32 %v2303, %v2964
        %v2982 = vmul.f32 %v2307, %v2969
        %v2983 = vmul.f32 %v2311, %v2974
        %2985 = vset.pattern.permute.xlu0 0
        %2986 = vperm.xlu0 %2985, %v2928
        %v2987 = vpop.permute.xlu0 %2986
        %2990 = vset.pattern.permute.xlu0 0
        %2991 = vperm.xlu0 %2990, %v2929
        %v2992 = vpop.permute.xlu0 %2991
        %2995 = vset.pattern.permute.xlu0 0
        %2996 = vperm.xlu0 %2995, %v2930
        %v2997 = vpop.permute.xlu0 %2996
        %3000 = vset.pattern.permute.xlu0 0
        %3001 = vperm.xlu0 %3000, %v2931
        %v3002 = vpop.permute.xlu0 %3001
        %3005 = vset.pattern.permute.xlu0 0
        %3006 = vperm.xlu0 %3005, %v2932
        %v3007 = vpop.permute.xlu0 %3006
        %3010 = vset.pattern.permute.xlu0 0
        %3011 = vperm.xlu0 %3010, %v2933
        %v3012 = vpop.permute.xlu0 %3011
        %3015 = vset.pattern.permute.xlu0 0
        %3016 = vperm.xlu0 %3015, %v2934
        %v3017 = vpop.permute.xlu0 %3016
        %3020 = vset.pattern.permute.xlu0 0
        %3021 = vperm.xlu0 %3020, %v2935
        %v3022 = vpop.permute.xlu0 %3021
        %v3024 = vadd.f32 %v2976, %v2987
        %v3025 = vadd.f32 %v2977, %v2992
        %v3026 = vadd.f32 %v2978, %v2997
        %v3027 = vadd.f32 %v2979, %v3002
        %v3028 = vadd.f32 %v2980, %v3007
        %v3029 = vadd.f32 %v2981, %v3012
        %v3030 = vadd.f32 %v2982, %v3017
        %v3031 = vadd.f32 %v2983, %v3022
        %v3032 = vld [vmem:[%s11] sm:$0xf]
        %v3033 = vld [vmem:[%s11 + $0x4] sm:$0xf]
        %v3034 = vld [vmem:[%s11 + $0x8] sm:$0xf]
        %v3035 = vld [vmem:[%s11 + $0xc] sm:$0xf]
        %v3036 = vpack.c.bf16 %v2497, %v2496
        %v3037 = vpack.c.bf16 %v2673, %v2672
        %v3038 = vpack.c.bf16 %v2849, %v2848
        %v3039 = vpack.c.bf16 %v3025, %v3024
        %v3040 = vpack.c.bf16 %v2499, %v2498
        %v3041 = vpack.c.bf16 %v2675, %v2674
        %v3042 = vpack.c.bf16 %v2851, %v2850
        %v3043 = vpack.c.bf16 %v3027, %v3026
        %v3044 = vpack.c.bf16 %v2501, %v2500
        %v3045 = vpack.c.bf16 %v2677, %v2676
        %v3046 = vpack.c.bf16 %v2853, %v2852
        %v3047 = vpack.c.bf16 %v3029, %v3028
        %v3048 = vpack.c.bf16 %v2503, %v2502
        %v3049 = vpack.c.bf16 %v2679, %v2678
        %v3050 = vpack.c.bf16 %v2855, %v2854
        %v3051 = vpack.c.bf16 %v3031, %v3030
        %v3052 = vld [vmem:[%s12] sm:$0xff]
        %v3053 = vld [vmem:[%s12 + $0x8] sm:$0xff]
        %v3054 = vld [vmem:[%s12 + $0x10] sm:$0xff]
        %v3055 = vld [vmem:[%s12 + $0x18] sm:$0xff]
        %3057 = vset.pattern.permute.xlu0 0
        %3058 = vperm.xlu0 %3057, %v3052
        %v3059 = vpop.permute.xlu0 %3058
        %3062 = vset.pattern.permute.xlu0 0
        %3063 = vperm.xlu0 %3062, %v3053
        %v3064 = vpop.permute.xlu0 %3063
        %3067 = vset.pattern.permute.xlu0 0
        %3068 = vperm.xlu0 %3067, %v3054
        %v3069 = vpop.permute.xlu0 %3068
        %3072 = vset.pattern.permute.xlu0 0
        %3073 = vperm.xlu0 %3072, %v3055
        %v3074 = vpop.permute.xlu0 %3073
        %v3080 = vunpack.c.l.b16 %v3032
        %v3081 = vunpack.c.l.b16 %v3033
        %v3082 = vunpack.c.l.b16 %v3034
        %v3083 = vunpack.c.l.b16 %v3035
        %v3084 = vpack.c.b16 %v3081, %v3080
        %v3085 = vpack.c.b16 %v3083, %v3082
        %vm3086 = vcmask 523264
        %v3088 = vsel %vm3086, %v3084, 0
        %v3091 = vsel %vm3086, %v3085, 0
        %3093 = vmatprep.subr.bf16.mxu0 0
        %3094 = vmatpush1.bf16.msra.mxu0 0
        %3095 = vmatprep.subr.bf16.mxu0 0
        %3096 = vmatpush1.bf16.msra.mxu0 0
        %3097 = vmatprep.subr.bf16.mxu0 0
        %3098 = vmatpush1.bf16.msra.mxu0 0
        %3099 = vmatprep.subr.bf16.mxu0 0
        %3100 = vmatpush1.bf16.msra.mxu0 0
        %3101 = vmatprep.subr.bf16.mxu0 %v3049
        %3102 = vmatpush1.bf16.msra.mxu0 %v3048
        %3103 = vmatprep.subr.bf16.mxu0 %v3045
        %3104 = vmatpush1.bf16.msra.mxu0 %v3044
        %3105 = vmatprep.subr.bf16.mxu0 %v3041
        %3106 = vmatpush1.bf16.msra.mxu0 %v3040
        %3107 = vmatprep.subr.bf16.mxu0 %v3037
        %3108 = vmatpush1.bf16.msra.mxu0 %v3036
        %3109 = vmatprep.subr.bf16.mxu0 0
        %3110 = vmatpush2.bf16.msra.mxu0 0
        %3111 = vmatprep.subr.bf16.mxu0 0
        %3112 = vmatpush2.bf16.msra.mxu0 0
        %3113 = vmatprep.subr.bf16.mxu0 0
        %3114 = vmatpush2.bf16.msra.mxu0 0
        %3115 = vmatprep.subr.bf16.mxu0 0
        %3116 = vmatpush2.bf16.msra.mxu0 0
        %3117 = vmatprep.subr.bf16.mxu0 0
        %3118 = vmatpush2.bf16.msra.mxu0 0
        %3119 = vmatprep.subr.bf16.mxu0 0
        %3120 = vmatpush2.bf16.msra.mxu0 0
        %3121 = vmatprep.subr.bf16.mxu0 0
        %3122 = vmatpush2.bf16.msra.mxu0 0
        %3123 = vmatprep.subr.bf16.mxu0 0
        %3124 = vmatpush2.bf16.msra.mxu0 0
        %3125 = vmatprep.mubr.bf16.mxu0 0
        %3126 = vmatmul.mubr.bf16.gmra.mxu0 %v3088
        %v3127 = vpop.f32.mrf.mxu0
        %v3128 = vadd.f32 %v3059, %v3127
        %v3129 = vpop.f32.mrf.mxu0
        %v3130 = vadd.f32 %v3059, %v3129
        %v3131 = vpop.f32.mrf.mxu0
        %v3132 = vadd.f32 %v3064, %v3131
        %v3133 = vpop.f32.mrf.mxu0
        %v3134 = vadd.f32 %v3064, %v3133
        %3135 = vmatprep.mubr.bf16.mxu0 0
        %3136 = vmatmul.mubr.bf16.gmra.mxu0 %v3091
        %v3137 = vpop.f32.mrf.mxu0
        %v3138 = vadd.f32 %v3069, %v3137
        %v3139 = vpop.f32.mrf.mxu0
        %v3140 = vadd.f32 %v3069, %v3139
        %v3141 = vpop.f32.mrf.mxu0
        %v3142 = vadd.f32 %v3074, %v3141
        %v3143 = vpop.f32.mrf.mxu0
        %v3144 = vadd.f32 %v3074, %v3143
        %3145 = vdwg.mxu0
        %3146 = vmatprep.subr.bf16.mxu0 0
        %3147 = vmatpush1.bf16.msra.mxu0 0
        %3148 = vmatprep.subr.bf16.mxu0 0
        %3149 = vmatpush1.bf16.msra.mxu0 0
        %3150 = vmatprep.subr.bf16.mxu0 0
        %3151 = vmatpush1.bf16.msra.mxu0 0
        %3152 = vmatprep.subr.bf16.mxu0 0
        %3153 = vmatpush1.bf16.msra.mxu0 0
        %3154 = vmatprep.subr.bf16.mxu0 %v3051
        %3155 = vmatpush1.bf16.msra.mxu0 %v3050
        %3156 = vmatprep.subr.bf16.mxu0 %v3047
        %3157 = vmatpush1.bf16.msra.mxu0 %v3046
        %3158 = vmatprep.subr.bf16.mxu0 %v3043
        %3159 = vmatpush1.bf16.msra.mxu0 %v3042
        %3160 = vmatprep.subr.bf16.mxu0 %v3039
        %3161 = vmatpush1.bf16.msra.mxu0 %v3038
        %3162 = vmatprep.subr.bf16.mxu0 0
        %3163 = vmatpush2.bf16.msra.mxu0 0
        %3164 = vmatprep.subr.bf16.mxu0 0
        %3165 = vmatpush2.bf16.msra.mxu0 0
        %3166 = vmatprep.subr.bf16.mxu0 0
        %3167 = vmatpush2.bf16.msra.mxu0 0
        %3168 = vmatprep.subr.bf16.mxu0 0
        %3169 = vmatpush2.bf16.msra.mxu0 0
        %3170 = vmatprep.subr.bf16.mxu0 0
        %3171 = vmatpush2.bf16.msra.mxu0 0
        %3172 = vmatprep.subr.bf16.mxu0 0
        %3173 = vmatpush2.bf16.msra.mxu0 0
        %3174 = vmatprep.subr.bf16.mxu0 0
        %3175 = vmatpush2.bf16.msra.mxu0 0
        %3176 = vmatprep.subr.bf16.mxu0 0
        %3177 = vmatpush2.bf16.msra.mxu0 0
        %3178 = vmatprep.mubr.bf16.mxu0 0
        %3179 = vmatmul.mubr.bf16.gmra.mxu0 %v3088
        %v3180 = vpop.f32.mrf.mxu0
        %v3181 = vadd.f32 %v3059, %v3180
        %v3182 = vpop.f32.mrf.mxu0
        %v3183 = vadd.f32 %v3059, %v3182
        %v3184 = vpop.f32.mrf.mxu0
        %v3185 = vadd.f32 %v3064, %v3184
        %v3186 = vpop.f32.mrf.mxu0
        %v3187 = vadd.f32 %v3064, %v3186
        %3188 = vmatprep.mubr.bf16.mxu0 0
        %3189 = vmatmul.mubr.bf16.gmra.mxu0 %v3091
        %v3190 = vpop.f32.mrf.mxu0
        %v3191 = vadd.f32 %v3069, %v3190
        %v3192 = vpop.f32.mrf.mxu0
        %v3193 = vadd.f32 %v3069, %v3192
        %v3194 = vpop.f32.mrf.mxu0
        %v3195 = vadd.f32 %v3074, %v3194
        %v3196 = vpop.f32.mrf.mxu0
        %v3197 = vadd.f32 %v3074, %v3196
        %3198 = vdwg.mxu0
        %v3199 = vadd.f32 %v494, %v3128
        %v3200 = vadd.f32 %v495, %v3130
        %v3201 = vadd.f32 %v496, %v3181
        %v3202 = vadd.f32 %v497, %v3183
        %v3203 = vadd.f32 %v498, %v3132
        %v3204 = vadd.f32 %v499, %v3134
        %v3205 = vadd.f32 %v500, %v3185
        %v3206 = vadd.f32 %v501, %v3187
        %v3207 = vadd.f32 %v502, %v3138
        %v3208 = vadd.f32 %v503, %v3140
        %v3209 = vadd.f32 %v504, %v3191
        %v3210 = vadd.f32 %v505, %v3193
        %v3211 = vadd.f32 %v506, %v3142
        %v3212 = vadd.f32 %v507, %v3144
        %v3213 = vadd.f32 %v508, %v3195
        %v3214 = vadd.f32 %v509, %v3197
        %3215 = vst [vmem:[%s490] sm:$0xff] %v3199
        %3216 = vst [vmem:[%s490 + $0x8] sm:$0xff] %v3200
        %3217 = vst [vmem:[%s490 + $0x10] sm:$0xff] %v3201
        %3218 = vst [vmem:[%s490 + $0x18] sm:$0xff] %v3202
        %3219 = vst [vmem:[%s490 + $0x20] sm:$0xff] %v3203
        %3220 = vst [vmem:[%s490 + $0x28] sm:$0xff] %v3204
        %3221 = vst [vmem:[%s490 + $0x30] sm:$0xff] %v3205
        %3222 = vst [vmem:[%s490 + $0x38] sm:$0xff] %v3206
        %3223 = vst [vmem:[%s490 + $0x40] sm:$0xff] %v3207
        %3224 = vst [vmem:[%s490 + $0x48] sm:$0xff] %v3208
        %3225 = vst [vmem:[%s490 + $0x50] sm:$0xff] %v3209
        %3226 = vst [vmem:[%s490 + $0x58] sm:$0xff] %v3210
        %3227 = vst [vmem:[%s490 + $0x60] sm:$0xff] %v3211
        %3228 = vst [vmem:[%s490 + $0x68] sm:$0xff] %v3212
        %3229 = vst [vmem:[%s490 + $0x70] sm:$0xff] %v3213
        %3230 = vst [vmem:[%s490 + $0x78] sm:$0xff] %v3214
        %s3231 = sand.u32 %s315, 1
        %s3232 = scalar_lea.sflag [#allocation6], %s3231
        %s3233 = sand.u32 %s315, 1
        %s3234 = smul.addr %s3233, 128
        %s3235 = scalar_lea.vmem [#allocation5], %s3234
        // Predicated region
        $region96: #{tpu_custom_call.1} parent=90 // pred_check
          %p3236 = pneg %p325
        $region97: #{tpu_custom_call.1} parent=90 // pred_check_branch
          %3238 = sbr.rel (%p3236) target = $region99
        $region98: #{tpu_custom_call.1} parent=90 // pred_region
          %s3239 = smul.u32 4, %s29
          %s3241 = ssub.s32 2048, 2048
          %3242 = vsyncadd %s3232, %s3241
          %s3243 = smul.addr %s3239, 128
          %s3244 = scalar_lea.hbm %s13, %s3243
          %s3245 = sshll.u32 %s3235, 4
          %s3246 = int_to_ptr.vmem [resolvable:$true] %s3245
          %3251 = dma.vmem_to_hbm [thread:$0]  %s3246, 2048, %s3244, %s3232, 512, 1024, 32
        $region99: #{tpu_custom_call.1} parent=90 // pred_fallthru
          _
      $region91: #{tpu_custom_call.1} parent=5 // pred_fallthru
        _
      %p3252 = scmp.le.s32.totalorder 2, %s24
      // Predicated region
      $region100: #{tpu_custom_call.1} parent=5 // pred_check
        %p3253 = pneg %p3252
      $region101: #{tpu_custom_call.1} parent=5 // pred_check_branch
        %3255 = sbr.rel (%p3253) target = $region103
      $region102: #{tpu_custom_call.1} parent=5 // pred_region
        %s3256 = ssub.s32 %s24, 2
        // Predicated region
        $region104: #{tpu_custom_call.1} parent=102 // pred_check
          %p3257 = pneg %p331
        $region105: #{tpu_custom_call.1} parent=102 // pred_check_branch
          %3259 = sbr.rel (%p3257) target = $region107
        $region106: #{tpu_custom_call.1} parent=102 // pred_region
          %s3260 = sand.u32 %s316, 1
          %s3261 = scalar_lea.sflag [#allocation6], %s3260
          %s3262 = sand.u32 %s316, 1
          %s3263 = smul.addr %s3262, 128
          %s3264 = scalar_lea.vmem [#allocation5], %s3263
          %3265 = dma.done %s3261, 2048
        $region107: #{tpu_custom_call.1} parent=102 // pred_fallthru
          _
      $region103: #{tpu_custom_call.1} parent=5 // pred_fallthru
        _
    $region6: #{tpu_custom_call.1} parent=1 // loop_footer
      %s28 = sadd.s32 1, %s24
    $region7: #{tpu_custom_call.1} parent=1 // loop_footer_branch
      %23 = sbr.rel target = $region3
    $region8: #{tpu_custom_call.1} parent=1 // loop_exit
      _
    %3266 = vsyncpa [#allocation6], 1
    %s3267 = scalar_lea.sflag [#allocation6], 1
    %3268 = vsyncpa %s3267, 1

</llo_original>
